<compile_context>
chip_gen: v5e
topology: v5e:2x2
jax: 0.10.0
libtpu: 0.0.40
codegen_flags: <defaults>
</compile_context>

<pallas_src>
import functools

import jax
import jax.numpy as jnp
import numpy as np
from jax.experimental import pallas as pl
from jax.experimental.pallas import tpu as pltpu


# ----------------------------------------------------------------------------
# Pallas kernel: one (batch, row-block) per grid step, whole BasicBlock fused.
# ----------------------------------------------------------------------------
def basic_block_kernel(xc_ref, xr_ref, w1_ref, b1_ref, w2_ref, b2_ref,
                       o_ref, patch1_ref, patch2_ref):
    # xc_ref:     (1, H+4, W+2, C) bf16  H/W zero-padded conv input (full image)
    # xr_ref:     (1, TH, W, C)    f32   unpadded residual block (aligned)
    # w1/w2_ref:  (3, 3C, C)       bf16  BN-scale-folded 3x3 weights, dx in K
    # b1/b2_ref:  (1, C)           f32   folded BatchNorm shifts
    # o_ref:      (1, TH, W, C)          output row-block
    # patch1_ref: (TH+4, W, 3C)    bf16  dx-im2col'd conv1 input window
    # patch2_ref: (TH+2, W, 3C)    bf16  dx-im2col'd h1 (conv2 input)
    _, TH, W, C = o_ref.shape
    H = xc_ref.shape[1] - 4
    K = 3 * C
    r0 = pl.multiple_of(pl.program_id(1) * TH, TH)   # first output row of block

    def conv3x3_mm(patch_ref, w_ref, n_rows):
        # Patch was dx-concatenated ONCE; each dy step is an aligned row slice
        # + reshape feeding a K=3C MXU matmul.  Accumulator starts at the dy=0
        # dot (no zero-fill + add).
        acc = jnp.dot(patch_ref[0:n_rows].reshape(n_rows * W, K), w_ref[0],
                      preferred_element_type=jnp.float32)
        for dy in (1, 2):
            acc = acc + jnp.dot(
                patch_ref[dy:dy + n_rows].reshape(n_rows * W, K), w_ref[dy],
                preferred_element_type=jnp.float32)
        return acc

    # ---- conv1 im2col: build the dx-concatenated patch once ----------------
    xwin = xc_ref[:, pl.ds(r0, TH + 4), :, :]            # (1, TH+4, W+2, C) bf16
    patch1_ref[...] = jnp.concatenate(
        [xwin[:, :, 0:W, :], xwin[:, :, 1:W + 1, :], xwin[:, :, 2:W + 2, :]],
        axis=-1).reshape(TH + 4, W, K)

    # ---- conv1 (BN1 scale pre-folded into weights) + shift + ReLU ----------
    h1 = conv3x3_mm(patch1_ref, w1_ref, TH + 2)          # ((TH+2)*W, C) f32
    h1 = jnp.maximum(h1 + b1_ref[...], 0.0)
    h1 = h1.reshape(TH + 2, W, C).astype(jnp.bfloat16)

    # ---- conv2 im2col: scratch holds h1 already dx-concatenated ------------
    zcol = jnp.zeros((TH + 2, 1, C), jnp.bfloat16)
    left = jnp.concatenate([zcol, h1[:, 0:W - 1, :]], axis=1)   # h1[w-1]
    right = jnp.concatenate([h1[:, 1:W, :], zcol], axis=1)      # h1[w+1]
    patch2_ref[...] = jnp.concatenate([left, h1, right], axis=-1)

    # Halo rows that fall outside the image act as conv2's zero padding and
    # must be zeroed (they were recomputed from conv1's own padding, which is
    # not the same thing).
    @pl.when(r0 == 0)
    def _():
        patch2_ref[0:1, :, :] = jnp.zeros((1, W, K), jnp.bfloat16)

    @pl.when(r0 + TH == H)
    def _():
        patch2_ref[TH + 1:TH + 2, :, :] = jnp.zeros((1, W, K), jnp.bfloat16)

    # ---- conv2 (BN2 scale pre-folded) + shift + f32 residual + ReLU --------
    h2 = conv3x3_mm(patch2_ref, w2_ref, TH) + b2_ref[...]
    out = jnp.maximum(h2 + xr_ref[...].reshape(TH * W, C), 0.0)
    o_ref[...] = out.reshape(1, TH, W, C).astype(o_ref.dtype)


# ----------------------------------------------------------------------------
# Row-tile heuristic: smallest divisor of H with TH*W >= 256 (keep MXU M fed,
# per-step overhead amortized), preferring sublane-friendly multiples of 8;
# falls back to TH=H for small images (14x14 / 7x7 stages).
# ----------------------------------------------------------------------------
def _pick_row_tile(H, W):
    cands = [d for d in range(1, H + 1) if H % d == 0 and d * W >= 256]
    if not cands:
        return H
    mult8 = [d for d in cands if d % 8 == 0]
    return (mult8 or cands)[0]


# ----------------------------------------------------------------------------
# Wrapper: NCHW in / NCHW out, weights pre-folded into kernel-friendly form.
# ----------------------------------------------------------------------------
@functools.partial(jax.jit, static_argnames=("row_tile",))
def basic_block_forward(x_nchw, w1_k, b1, w2_k, b2, *, row_tile=None):
    x = jnp.transpose(x_nchw, (0, 2, 3, 1))              # NCHW -> NHWC
    N, H, W, C = x.shape
    TH = _pick_row_tile(H, W) if row_tile is None else min(int(row_tile), H)
    if H % TH != 0:
        raise ValueError("row_tile must divide H")
    R = H // TH
    K = 3 * C

    # Conv input as bf16: 2 zero rows top+bottom (3x3-conv-chain halo; the
    # outermost row only feeds halo outputs that are re-zeroed in-kernel) and
    # 1 zero column left+right (conv1's W padding).  The residual stays a
    # separate exact-f32, unpadded input with aligned blocks.
    x_conv = jnp.pad(x.astype(jnp.bfloat16), ((0, 0), (2, 2), (1, 1), (0, 0)))

    # VMEM budget: Pallas double-buffers EVERY BlockSpec input (including the
    # grid-invariant weights and the full-image conv block), so count those
    # twice; scratches are single-buffered; add an allowance for in-kernel f32
    # temporaries.  Floor leaves headroom for compiler internals; cap stays
    # under 128 MiB parts (shrink row_tile if this approaches 64 MiB on v7x).
    xc_blk = (H + 4) * (W + 2) * C * 2
    xr_blk = TH * W * C * 4
    o_blk = TH * W * C * x.dtype.itemsize
    w_blk = 3 * K * C * 2
    b_blk = C * 4
    scr = ((TH + 4) + (TH + 2)) * W * K * 2
    tmp = 4 * (TH + 2) * W * C * 4 + (TH + 4) * W * K * 2
    vmem_bytes = int(min(max(2 * (xc_blk + xr_blk + o_blk + 2 * w_blk + 2 * b_blk)
                             + scr + tmp + (4 << 20), 32 << 20), 100 << 20))

    out_nhwc = pl.pallas_call(
        basic_block_kernel,
        out_shape=jax.ShapeDtypeStruct((N, H, W, C), x.dtype),
        grid=(N, R),
        in_specs=[
            pl.BlockSpec((1, H + 4, W + 2, C), lambda n, r: (n, 0, 0, 0)),
            pl.BlockSpec((1, TH, W, C), lambda n, r: (n, r, 0, 0)),
            pl.BlockSpec((3, K, C), lambda n, r: (0, 0, 0)),
            pl.BlockSpec((1, C), lambda n, r: (0, 0)),
            pl.BlockSpec((3, K, C), lambda n, r: (0, 0, 0)),
            pl.BlockSpec((1, C), lambda n, r: (0, 0)),
        ],
        out_specs=pl.BlockSpec((1, TH, W, C), lambda n, r: (n, r, 0, 0)),
        scratch_shapes=[
            pltpu.VMEM((TH + 4, W, K), jnp.bfloat16),     # conv1 dx-im2col patch
            pltpu.VMEM((TH + 2, W, K), jnp.bfloat16),     # conv2 dx-im2col patch
        ],
        compiler_params=pltpu.CompilerParams(
            dimension_semantics=("parallel", "parallel"),
            vmem_limit_bytes=vmem_bytes,
        ),
    )(x_conv, x, w1_k, b1, w2_k, b2)

    return jnp.transpose(out_nhwc, (0, 3, 1, 2))          # NHWC -> NCHW


# ----------------------------------------------------------------------------
# Parameter prep: fold eval-mode BatchNorm into the conv weights.
#   bn(conv(x, w)) = conv(x, w) * scale + shift = conv(x, w*scale) + shift
# ----------------------------------------------------------------------------
def fold_bn_into_conv(w_oihw, gamma, beta, mean, var, eps=1e-5):  # PyTorch eps
    scale = gamma / jnp.sqrt(var + eps)
    shift = (beta - mean * scale).astype(jnp.float32)
    w_f = w_oihw * scale[:, None, None, None]              # per-output-channel
    co, ci = w_oihw.shape[0], w_oihw.shape[1]
    # OIHW -> (kh, kw, Cin, Cout) -> (3, 3*Cin, Cout): dx taps contiguous in K.
    w_k = jnp.transpose(w_f, (2, 3, 1, 0)).reshape(3, 3 * ci, co).astype(jnp.bfloat16)
    return w_k, shift.reshape(1, co), w_f.astype(jnp.bfloat16)


# ----------------------------------------------------------------------------
# Pure-JAX reference with the same mixed precision as the kernel
# (bf16 conv operands with BN scale pre-folded; f32 accumulation / shift /
#  ReLU / residual).  Same math as the eval-mode PyTorch BasicBlock.
# ----------------------------------------------------------------------------
def reference_forward(x, w1_bf16_oihw, b1, w2_bf16_oihw, b2):
    def conv3x3(t, w):
        return jax.lax.conv_general_dilated(
            t.astype(jnp.bfloat16), w, (1, 1), [(1, 1), (1, 1)],
            dimension_numbers=("NCHW", "OIHW", "NCHW"),
            preferred_element_type=jnp.float32)

    h1 = jax.nn.relu(conv3x3(x, w1_bf16_oihw) + b1[None, :, None, None])
    h2 = conv3x3(h1, w2_bf16_oihw) + b2[None, :, None, None]
    return jax.nn.relu(h2 + x)


if __name__ == "__main__":
    # BasicBlock identity-residual config: inplanes == planes (expansion = 1).
    N, C, H, W = 2, 64, 16, 16

    key = jax.random.PRNGKey(0)
    ks = jax.random.split(key, 5)

    x = jax.random.normal(ks[0], (N, C, H, W), jnp.float32)

    std = (2.0 / (9 * C)) ** 0.5   # He init, like the PyTorch model
    w1 = std * jax.random.normal(ks[1], (C, C, 3, 3), jnp.float32)
    w2 = std * jax.random.normal(ks[2], (C, C, 3, 3), jnp.float32)

    def bn_params(k, c):
        k1, k2, k3, k4 = jax.random.split(k, 4)
        gamma = 1.0 + 0.1 * jax.random.normal(k1, (c,), jnp.float32)
        beta = 0.1 * jax.random.normal(k2, (c,), jnp.float32)
        mean = 0.1 * jax.random.normal(k3, (c,), jnp.float32)
        var = jnp.abs(jax.random.normal(k4, (c,), jnp.float32)) + 0.5
        return gamma, beta, mean, var

    w1_k, b1, w1_ref = fold_bn_into_conv(w1, *bn_params(ks[3], C))
    w2_k, b2, w2_ref = fold_bn_into_conv(w2, *bn_params(ks[4], C))

    ref = jax.block_until_ready(reference_forward(x, w1_ref, b1[0], w2_ref, b2[0]))

    # Auto row tile (TH=H here -> grid (N,1)) and a small explicit tile
    # (TH=4 -> grid (N,4)) to exercise interior + both boundary halo paths.
    for rt in (None, 4):
        out = jax.block_until_ready(
            basic_block_forward(x, w1_k, b1, w2_k, b2, row_tile=rt))
        np.testing.assert_allclose(np.asarray(out), np.asarray(ref),
                                   rtol=2e-3, atol=2e-3)

    print("KERNEL_OK")
</pallas_src>

<mosaic_0001>
module attributes {stable_mosaic.version = 11 : i64} {
  func.func @basic_block_kernel(%arg0: i32, %arg1: i32, %arg2: memref<1x20x18x64xbf16, #tpu.memory_space<vmem>>, %arg3: memref<1x16x16x64xf32, #tpu.memory_space<vmem>>, %arg4: memref<3x192x64xbf16, #tpu.memory_space<vmem>>, %arg5: memref<1x64xf32, #tpu.memory_space<vmem>>, %arg6: memref<3x192x64xbf16, #tpu.memory_space<vmem>>, %arg7: memref<1x64xf32, #tpu.memory_space<vmem>>, %arg8: memref<1x16x16x64xf32, #tpu.memory_space<vmem>>, %arg9: memref<20x16x192xbf16, #tpu.memory_space<vmem>>, %arg10: memref<18x16x192xbf16, #tpu.memory_space<vmem>>) attributes {dimension_semantics = [#tpu.dimension_semantics<parallel>, #tpu.dimension_semantics<parallel>], iteration_bounds = array<i64: 2, 1>, scalar_prefetch = 0 : i64, scratch_operands = 2 : i64, tpu.core_type = #tpu.core_type<tc>, window_params = [{transform_indices = @transform_0, window_bounds = array<i64: 1, 20, 18, 64>}, {transform_indices = @transform_1, window_bounds = array<i64: 1, 16, 16, 64>}, {pipeline_mode = #tpu.pipeline_mode<synchronous>, transform_indices = @transform_2, window_bounds = array<i64: 3, 192, 64>}, {pipeline_mode = #tpu.pipeline_mode<synchronous>, transform_indices = @transform_3, window_bounds = array<i64: 1, 64>}, {pipeline_mode = #tpu.pipeline_mode<synchronous>, transform_indices = @transform_4, window_bounds = array<i64: 3, 192, 64>}, {pipeline_mode = #tpu.pipeline_mode<synchronous>, transform_indices = @transform_5, window_bounds = array<i64: 1, 64>}, {transform_indices = @transform_6, window_bounds = array<i64: 1, 16, 16, 64>}]} {
    %c16_i32 = arith.constant 16 : i32
    %0 = arith.muli %arg1, %c16_i32 : i32
    %1 = tpu.assume_multiple %0, 16 : i32
    %c0 = arith.constant 0 : index
    %2 = arith.index_cast %1 : i32 to index
    %c0_0 = arith.constant 0 : index
    %c0_1 = arith.constant 0 : index
    %3 = vector.load %arg2[%c0, %2, %c0_0, %c0_1] : memref<1x20x18x64xbf16, #tpu.memory_space<vmem>>, vector<1x20x18x64xbf16>
    %4 = vector.extract_strided_slice %3 {offsets = [0, 0, 0, 0], sizes = [1, 20, 16, 64], strides = [1, 1, 1, 1]} : vector<1x20x18x64xbf16> to vector<1x20x16x64xbf16>
    %5 = vector.extract_strided_slice %3 {offsets = [0, 0, 1, 0], sizes = [1, 20, 16, 64], strides = [1, 1, 1, 1]} : vector<1x20x18x64xbf16> to vector<1x20x16x64xbf16>
    %6 = vector.extract_strided_slice %3 {offsets = [0, 0, 2, 0], sizes = [1, 20, 16, 64], strides = [1, 1, 1, 1]} : vector<1x20x18x64xbf16> to vector<1x20x16x64xbf16>
    %7 = tpu.concatenate %4, %5, %6 in 3 : vector<1x20x16x64xbf16>, vector<1x20x16x64xbf16>, vector<1x20x16x64xbf16> -> vector<1x20x16x192xbf16>
    %8 = vector.shape_cast %7 : vector<1x20x16x192xbf16> to vector<20x16x192xbf16>
    %c0_2 = arith.constant 0 : index
    %c0_3 = arith.constant 0 : index
    %c0_4 = arith.constant 0 : index
    %9 = vector.load %arg9[%c0_2, %c0_3, %c0_4] : memref<20x16x192xbf16, #tpu.memory_space<vmem>>, vector<20x16x192xbf16>
    tpu.vector_store %arg9[%c0_2, %c0_3, %c0_4], %8 {strides = array<i32>} : memref<20x16x192xbf16, #tpu.memory_space<vmem>>, vector<20x16x192xbf16>,
    %c0_5 = arith.constant 0 : index
    %c0_6 = arith.constant 0 : index
    %c0_7 = arith.constant 0 : index
    %10 = vector.load %arg9[%c0_5, %c0_6, %c0_7] : memref<20x16x192xbf16, #tpu.memory_space<vmem>>, vector<18x16x192xbf16>
    %11 = vector.shape_cast %10 : vector<18x16x192xbf16> to vector<288x192xbf16>
    %c0_8 = arith.constant 0 : index
    %c0_9 = arith.constant 0 : index
    %c0_10 = arith.constant 0 : index
    %12 = vector.load %arg4[%c0_8, %c0_9, %c0_10] : memref<3x192x64xbf16, #tpu.memory_space<vmem>>, vector<1x192x64xbf16>
    %13 = vector.shape_cast %12 : vector<1x192x64xbf16> to vector<192x64xbf16>
    %cst = arith.constant dense<0.000000e+00> : vector<288x64xf32>
    %14 = tpu.matmul %11, %13, %cst {dimension_numbers = #tpu.dot_dimension_numbers<[1], [0], [0], [1], [0, 0, 1, 1], [], []>} : vector<288x192xbf16>, vector<192x64xbf16>, vector<288x64xf32> -> vector<288x64xf32>
    %c1 = arith.constant 1 : index
    %c0_11 = arith.constant 0 : index
    %c0_12 = arith.constant 0 : index
    %15 = vector.load %arg9[%c1, %c0_11, %c0_12] : memref<20x16x192xbf16, #tpu.memory_space<vmem>>, vector<18x16x192xbf16>
    %16 = vector.shape_cast %15 : vector<18x16x192xbf16> to vector<288x192xbf16>
    %c1_13 = arith.constant 1 : index
    %c0_14 = arith.constant 0 : index
    %c0_15 = arith.constant 0 : index
    %17 = vector.load %arg4[%c1_13, %c0_14, %c0_15] : memref<3x192x64xbf16, #tpu.memory_space<vmem>>, vector<1x192x64xbf16>
    %18 = vector.shape_cast %17 : vector<1x192x64xbf16> to vector<192x64xbf16>
    %cst_16 = arith.constant dense<0.000000e+00> : vector<288x64xf32>
    %19 = tpu.matmul %16, %18, %cst_16 {dimension_numbers = #tpu.dot_dimension_numbers<[1], [0], [0], [1], [0, 0, 1, 1], [], []>} : vector<288x192xbf16>, vector<192x64xbf16>, vector<288x64xf32> -> vector<288x64xf32>
    %20 = arith.addf %14, %19 : vector<288x64xf32>
    %c2 = arith.constant 2 : index
    %c0_17 = arith.constant 0 : index
    %c0_18 = arith.constant 0 : index
    %21 = vector.load %arg9[%c2, %c0_17, %c0_18] : memref<20x16x192xbf16, #tpu.memory_space<vmem>>, vector<18x16x192xbf16>
    %22 = vector.shape_cast %21 : vector<18x16x192xbf16> to vector<288x192xbf16>
    %c2_19 = arith.constant 2 : index
    %c0_20 = arith.constant 0 : index
    %c0_21 = arith.constant 0 : index
    %23 = vector.load %arg4[%c2_19, %c0_20, %c0_21] : memref<3x192x64xbf16, #tpu.memory_space<vmem>>, vector<1x192x64xbf16>
    %24 = vector.shape_cast %23 : vector<1x192x64xbf16> to vector<192x64xbf16>
    %cst_22 = arith.constant dense<0.000000e+00> : vector<288x64xf32>
    %25 = tpu.matmul %22, %24, %cst_22 {dimension_numbers = #tpu.dot_dimension_numbers<[1], [0], [0], [1], [0, 0, 1, 1], [], []>} : vector<288x192xbf16>, vector<192x64xbf16>, vector<288x64xf32> -> vector<288x64xf32>
    %26 = arith.addf %20, %25 : vector<288x64xf32>
    %c0_23 = arith.constant 0 : index
    %c0_24 = arith.constant 0 : index
    %27 = vector.load %arg5[%c0_23, %c0_24] : memref<1x64xf32, #tpu.memory_space<vmem>>, vector<1x64xf32>
    %28 = vector.broadcast %27 : vector<1x64xf32> to vector<288x64xf32>
    %29 = arith.addf %26, %28 : vector<288x64xf32>
    %cst_25 = arith.constant 0.000000e+00 : f32
    %30 = vector.broadcast %cst_25 : f32 to vector<288x64xf32>
    %31 = arith.maximumf %29, %30 : vector<288x64xf32>
    %32 = vector.shape_cast %31 : vector<288x64xf32> to vector<18x16x64xf32>
    %33 = arith.truncf %32 : vector<18x16x64xf32> to vector<18x16x64xbf16>
    %cst_26 = arith.constant 0.000000e+00 : bf16
    %34 = vector.broadcast %cst_26 : bf16 to vector<18x1x64xbf16>
    %35 = vector.extract_strided_slice %33 {offsets = [0, 0, 0], sizes = [18, 15, 64], strides = [1, 1, 1]} : vector<18x16x64xbf16> to vector<18x15x64xbf16>
    %36 = tpu.concatenate %34, %35 in 1 : vector<18x1x64xbf16>, vector<18x15x64xbf16> -> vector<18x16x64xbf16>
    %37 = vector.extract_strided_slice %33 {offsets = [0, 1, 0], sizes = [18, 15, 64], strides = [1, 1, 1]} : vector<18x16x64xbf16> to vector<18x15x64xbf16>
    %38 = tpu.concatenate %37, %34 in 1 : vector<18x15x64xbf16>, vector<18x1x64xbf16> -> vector<18x16x64xbf16>
    %39 = tpu.concatenate %36, %33, %38 in 2 : vector<18x16x64xbf16>, vector<18x16x64xbf16>, vector<18x16x64xbf16> -> vector<18x16x192xbf16>
    %c0_27 = arith.constant 0 : index
    %c0_28 = arith.constant 0 : index
    %c0_29 = arith.constant 0 : index
    %40 = vector.load %arg10[%c0_27, %c0_28, %c0_29] : memref<18x16x192xbf16, #tpu.memory_space<vmem>>, vector<18x16x192xbf16>
    tpu.vector_store %arg10[%c0_27, %c0_28, %c0_29], %39 {strides = array<i32>} : memref<18x16x192xbf16, #tpu.memory_space<vmem>>, vector<18x16x192xbf16>,
    %c0_i32 = arith.constant 0 : i32
    %41 = arith.cmpi eq, %1, %c0_i32 : i32
    %42 = arith.extui %41 : i1 to i32
    %c0_i32_30 = arith.constant 0 : i32
    %43 = arith.cmpi ne, %42, %c0_i32_30 : i32
    scf.if %43 {
      %cst_66 = arith.constant 0.000000e+00 : bf16
      %75 = vector.broadcast %cst_66 : bf16 to vector<1x16x192xbf16>
      %c0_67 = arith.constant 0 : index
      %c0_68 = arith.constant 0 : index
      %c0_69 = arith.constant 0 : index
      %76 = vector.load %arg10[%c0_67, %c0_68, %c0_69] : memref<18x16x192xbf16, #tpu.memory_space<vmem>>, vector<1x16x192xbf16>
      tpu.vector_store %arg10[%c0_67, %c0_68, %c0_69], %75 {strides = array<i32>} : memref<18x16x192xbf16, #tpu.memory_space<vmem>>, vector<1x16x192xbf16>,
    } else {
    }
    %c16_i32_31 = arith.constant 16 : i32
    %44 = arith.addi %1, %c16_i32_31 : i32
    %c16_i32_32 = arith.constant 16 : i32
    %45 = arith.cmpi eq, %44, %c16_i32_32 : i32
    %46 = arith.extui %45 : i1 to i32
    %c0_i32_33 = arith.constant 0 : i32
    %47 = arith.cmpi ne, %46, %c0_i32_33 : i32
    scf.if %47 {
      %cst_66 = arith.constant 0.000000e+00 : bf16
      %75 = vector.broadcast %cst_66 : bf16 to vector<1x16x192xbf16>
      %c17 = arith.constant 17 : index
      %c0_67 = arith.constant 0 : index
      %c0_68 = arith.constant 0 : index
      %76 = vector.load %arg10[%c17, %c0_67, %c0_68] : memref<18x16x192xbf16, #tpu.memory_space<vmem>>, vector<1x16x192xbf16>
      tpu.vector_store %arg10[%c17, %c0_67, %c0_68], %75 {strides = array<i32>} : memref<18x16x192xbf16, #tpu.memory_space<vmem>>, vector<1x16x192xbf16>,
    } else {
    }
    %c0_34 = arith.constant 0 : index
    %c0_35 = arith.constant 0 : index
    %c0_36 = arith.constant 0 : index
    %48 = vector.load %arg10[%c0_34, %c0_35, %c0_36] : memref<18x16x192xbf16, #tpu.memory_space<vmem>>, vector<16x16x192xbf16>
    %49 = vector.shape_cast %48 : vector<16x16x192xbf16> to vector<256x192xbf16>
    %c0_37 = arith.constant 0 : index
    %c0_38 = arith.constant 0 : index
    %c0_39 = arith.constant 0 : index
    %50 = vector.load %arg6[%c0_37, %c0_38, %c0_39] : memref<3x192x64xbf16, #tpu.memory_space<vmem>>, vector<1x192x64xbf16>
    %51 = vector.shape_cast %50 : vector<1x192x64xbf16> to vector<192x64xbf16>
    %cst_40 = arith.constant dense<0.000000e+00> : vector<256x64xf32>
    %52 = tpu.matmul %49, %51, %cst_40 {dimension_numbers = #tpu.dot_dimension_numbers<[1], [0], [0], [1], [0, 0, 1, 1], [], []>} : vector<256x192xbf16>, vector<192x64xbf16>, vector<256x64xf32> -> vector<256x64xf32>
    %c1_41 = arith.constant 1 : index
    %c0_42 = arith.constant 0 : index
    %c0_43 = arith.constant 0 : index
    %53 = vector.load %arg10[%c1_41, %c0_42, %c0_43] : memref<18x16x192xbf16, #tpu.memory_space<vmem>>, vector<16x16x192xbf16>
    %54 = vector.shape_cast %53 : vector<16x16x192xbf16> to vector<256x192xbf16>
    %c1_44 = arith.constant 1 : index
    %c0_45 = arith.constant 0 : index
    %c0_46 = arith.constant 0 : index
    %55 = vector.load %arg6[%c1_44, %c0_45, %c0_46] : memref<3x192x64xbf16, #tpu.memory_space<vmem>>, vector<1x192x64xbf16>
    %56 = vector.shape_cast %55 : vector<1x192x64xbf16> to vector<192x64xbf16>
    %cst_47 = arith.constant dense<0.000000e+00> : vector<256x64xf32>
    %57 = tpu.matmul %54, %56, %cst_47 {dimension_numbers = #tpu.dot_dimension_numbers<[1], [0], [0], [1], [0, 0, 1, 1], [], []>} : vector<256x192xbf16>, vector<192x64xbf16>, vector<256x64xf32> -> vector<256x64xf32>
    %58 = arith.addf %52, %57 : vector<256x64xf32>
    %c2_48 = arith.constant 2 : index
    %c0_49 = arith.constant 0 : index
    %c0_50 = arith.constant 0 : index
    %59 = vector.load %arg10[%c2_48, %c0_49, %c0_50] : memref<18x16x192xbf16, #tpu.memory_space<vmem>>, vector<16x16x192xbf16>
    %60 = vector.shape_cast %59 : vector<16x16x192xbf16> to vector<256x192xbf16>
    %c2_51 = arith.constant 2 : index
    %c0_52 = arith.constant 0 : index
    %c0_53 = arith.constant 0 : index
    %61 = vector.load %arg6[%c2_51, %c0_52, %c0_53] : memref<3x192x64xbf16, #tpu.memory_space<vmem>>, vector<1x192x64xbf16>
    %62 = vector.shape_cast %61 : vector<1x192x64xbf16> to vector<192x64xbf16>
    %cst_54 = arith.constant dense<0.000000e+00> : vector<256x64xf32>
    %63 = tpu.matmul %60, %62, %cst_54 {dimension_numbers = #tpu.dot_dimension_numbers<[1], [0], [0], [1], [0, 0, 1, 1], [], []>} : vector<256x192xbf16>, vector<192x64xbf16>, vector<256x64xf32> -> vector<256x64xf32>
    %64 = arith.addf %58, %63 : vector<256x64xf32>
    %c0_55 = arith.constant 0 : index
    %c0_56 = arith.constant 0 : index
    %65 = vector.load %arg7[%c0_55, %c0_56] : memref<1x64xf32, #tpu.memory_space<vmem>>, vector<1x64xf32>
    %66 = vector.broadcast %65 : vector<1x64xf32> to vector<256x64xf32>
    %67 = arith.addf %64, %66 : vector<256x64xf32>
    %c0_57 = arith.constant 0 : index
    %c0_58 = arith.constant 0 : index
    %c0_59 = arith.constant 0 : index
    %c0_60 = arith.constant 0 : index
    %68 = vector.load %arg3[%c0_57, %c0_58, %c0_59, %c0_60] : memref<1x16x16x64xf32, #tpu.memory_space<vmem>>, vector<1x16x16x64xf32>
    %69 = vector.shape_cast %68 : vector<1x16x16x64xf32> to vector<256x64xf32>
    %70 = arith.addf %67, %69 : vector<256x64xf32>
    %cst_61 = arith.constant 0.000000e+00 : f32
    %71 = vector.broadcast %cst_61 : f32 to vector<256x64xf32>
    %72 = arith.maximumf %70, %71 : vector<256x64xf32>
    %73 = vector.shape_cast %72 : vector<256x64xf32> to vector<1x16x16x64xf32>
    %c0_62 = arith.constant 0 : index
    %c0_63 = arith.constant 0 : index
    %c0_64 = arith.constant 0 : index
    %c0_65 = arith.constant 0 : index
    %74 = vector.load %arg8[%c0_62, %c0_63, %c0_64, %c0_65] : memref<1x16x16x64xf32, #tpu.memory_space<vmem>>, vector<1x16x16x64xf32>
    tpu.vector_store %arg8[%c0_62, %c0_63, %c0_64, %c0_65], %73 {strides = array<i32>} : memref<1x16x16x64xf32, #tpu.memory_space<vmem>>, vector<1x16x16x64xf32>,
    return
  }
  func.func @transform_0(%arg0: i32, %arg1: i32) -> (i32, i32, i32, i32) {
    %c0_i32 = arith.constant 0 : i32
    %c0_i32_0 = arith.constant 0 : i32
    %c0_i32_1 = arith.constant 0 : i32
    %c0_i32_2 = arith.constant 0 : i32
    return %arg0, %c0_i32, %c0_i32_0, %c0_i32_1 : i32, i32, i32, i32
  }
  func.func @transform_1(%arg0: i32, %arg1: i32) -> (i32, i32, i32, i32) {
    %c0_i32 = arith.constant 0 : i32
    %c0_i32_0 = arith.constant 0 : i32
    %c0_i32_1 = arith.constant 0 : i32
    return %arg0, %arg1, %c0_i32, %c0_i32_0 : i32, i32, i32, i32
  }
  func.func @transform_2(%arg0: i32, %arg1: i32) -> (i32, i32, i32) {
    %c0_i32 = arith.constant 0 : i32
    %c0_i32_0 = arith.constant 0 : i32
    %c0_i32_1 = arith.constant 0 : i32
    %c0_i32_2 = arith.constant 0 : i32
    return %c0_i32, %c0_i32_0, %c0_i32_1 : i32, i32, i32
  }
  func.func @transform_3(%arg0: i32, %arg1: i32) -> (i32, i32) {
    %c0_i32 = arith.constant 0 : i32
    %c0_i32_0 = arith.constant 0 : i32
    %c0_i32_1 = arith.constant 0 : i32
    return %c0_i32, %c0_i32_0 : i32, i32
  }
  func.func @transform_4(%arg0: i32, %arg1: i32) -> (i32, i32, i32) {
    %c0_i32 = arith.constant 0 : i32
    %c0_i32_0 = arith.constant 0 : i32
    %c0_i32_1 = arith.constant 0 : i32
    %c0_i32_2 = arith.constant 0 : i32
    return %c0_i32, %c0_i32_0, %c0_i32_1 : i32, i32, i32
  }
  func.func @transform_5(%arg0: i32, %arg1: i32) -> (i32, i32) {
    %c0_i32 = arith.constant 0 : i32
    %c0_i32_0 = arith.constant 0 : i32
    %c0_i32_1 = arith.constant 0 : i32
    return %c0_i32, %c0_i32_0 : i32, i32
  }
  func.func @transform_6(%arg0: i32, %arg1: i32) -> (i32, i32, i32, i32) {
    %c0_i32 = arith.constant 0 : i32
    %c0_i32_0 = arith.constant 0 : i32
    %c0_i32_1 = arith.constant 0 : i32
    return %arg0, %arg1, %c0_i32, %c0_i32_0 : i32, i32, i32, i32
  }
}

</mosaic_0001>

<llo_original>
// kernel: basic_block_forward.1
$region0: #{basic_block_forward.1}
  #allocation0 [shape = 'u32[]', space=smem, size = 0x4, offset = 0x4, fixed_abs, tag = 'smem constant byte address 0x4 - core index']
  #allocation1 [shape = 'u32[72,128]{1,0:T(1,128)}', space=vmem, size = 0x9000, scoped, tag = 'internal scratch']
  #allocation2 [shape = 'bf16[20,16,192]{2,1,0:T(8,128)(2,1)}', space=vmem, size = 0x28000, scoped, tag = 'scratch operand']
  #allocation3 [shape = 'bf16[18,16,192]{2,1,0:T(8,128)(2,1)}', space=vmem, size = 0x24000, scoped, tag = 'scratch operand']
  %s0 = inlined_call_operand.vmem [shape: bf16[2,20,18,64], index: 0, kind: input, shape index: {}]
  %s1 = inlined_call_operand.vmem [shape: f32[2,16,16,64], index: 1, kind: input, shape index: {}]
  %s2 = inlined_call_operand.vmem [shape: bf16[3,192,64], index: 2, kind: input, shape index: {}]
  %s3 = inlined_call_operand.vmem [shape: f32[1,64], index: 3, kind: input, shape index: {}]
  %s4 = inlined_call_operand.vmem [shape: bf16[3,192,64], index: 4, kind: input, shape index: {}]
  %s5 = inlined_call_operand.vmem [shape: f32[1,64], index: 5, kind: input, shape index: {}]
  %s6 = inlined_call_operand.hbm [shape: f32[2,16,16,64], index: 6, kind: output, shape index: {}]
  %s7 = sld [smem:[#allocation0]]
  $region65: #{basic_block_forward.1} parent=0
    _
  %s9 = ssub.s32 1, %s7
  %s10 = scalar_select 0, %s9, %s7
  $region1: #{basic_block_forward.1} parent=0
    #allocation4 [shape = 'u8[262144]{0}', space=vmem, size = 0x40000, scoped, tag = 'output window, operand 0']
    #allocation5 [shape = 's32[2]{0}', space=sflag, size = 0x8, scoped, tag = 'scoped memory for basic_block_forward.1']
    %11 = vsyncpa [#allocation5], 0
    %s12 = scalar_lea.sflag [#allocation5], 1
    %13 = vsyncpa %s12, 0
    loop: start=0, step=1, limit=4
    $region2: #{basic_block_forward.1} parent=1 // loop_pre_header
      _
    $region3: #{basic_block_forward.1} parent=1 // loop_header
      %s15 = sphi 0, %s19
      %p16 = scmp.ge.s32.totalorder %s15, 4
      %s22 = sphi 0, %s34
      %s23 = sphi 0, %s30
      %s24 = sphi 0, %s22
      %s25 = sphi 0, %s23
      %s26 = sphi 0, %s24
      %s27 = sphi 0, %s25
      %s37 = sphi 0, %s39
      %s40 = sphi 0, %s37
      %s41 = sphi 0, %s40
      %s57 = sphi 0, %s41
      %s65 = sphi 0, %s67
      %s68 = sphi 0, %s65
      %s69 = sphi 0, %s68
      %s85 = sphi 0, %s69
      %s89 = sphi 0, %s89
      %s91 = sphi 0, %s89
      %s92 = sphi 0, %s91
      %s106 = sphi 0, %s92
      %s110 = sphi 0, %s110
      %s112 = sphi 0, %s110
      %s113 = sphi 0, %s112
      %s127 = sphi 0, %s113
      %s131 = sphi 0, %s131
      %s133 = sphi 0, %s131
      %s134 = sphi 0, %s133
      %s148 = sphi 0, %s134
      %s152 = sphi 0, %s152
      %s154 = sphi 0, %s152
      %s155 = sphi 0, %s154
      %s169 = sphi 0, %s155
      %s177 = sphi 0, %s179
      %s180 = sphi 0, %s177
      %s181 = sphi 0, %s180
      %s197 = sphi 0, %s181
    $region4: #{basic_block_forward.1} parent=1 // loop_header_branch
      %18 = sbr.rel (%p16) target = $region8
    $region5: #{basic_block_forward.1} parent=1 // loop_body
      %s20 = ssub.s32 %s15, 1
      %s21 = ssub.s32 %s15, 2
      %s28 = sadd.s32 1, %s23
      %p29 = scmp.ge.s32.totalorder %s28, 1
      %s30 = scalar_select %p29, 0, %s28
      %s31 = sadd.s32 1, %s22
      %s32 = scalar_select %p29, %s31, %s22
      %p33 = scmp.ge.s32.totalorder %s32, 2
      %s34 = scalar_select %p33, 0, %s32
      %s35 = ssub.s32 %s22, %s34
      %p36 = scmp.eq.s32.totalorder %s35, 0
      %s38 = sadd.s32 %s37, 1
      %s39 = scalar_select %p36, %s37, %s38
      %p42 = pneg %p36
      %p43 = scmp.eq.s32.totalorder %s15, 1
      %p44 = por %p42, %p43
      %p45 = scmp.ne.s32.totalorder %s37, %s40
      %p46 = scmp.eq.s32.totalorder %s15, 0
      %p47 = por %p45, %p46
      %p48 = scmp.ne.s32.totalorder %s37, %s40
      %p49 = scmp.eq.s32.totalorder %s20, 1
      %p50 = por %p48, %p49
      %p51 = scmp.ne.s32.totalorder %s40, %s41
      %p52 = scmp.eq.s32.totalorder %s20, 0
      %p53 = por %p51, %p52
      %p54 = scmp.ne.s32.totalorder %s40, %s41
      %p55 = scmp.eq.s32.totalorder %s21, 1
      %p56 = por %p54, %p55
      %p58 = scmp.ne.s32.totalorder %s41, %s57
      %p59 = scmp.eq.s32.totalorder %s21, 0
      %p60 = por %p58, %p59
      %s61 = ssub.s32 %s22, %s34
      %s62 = ssub.s32 %s23, %s30
      %s63 = sor.u32 %s61, %s62
      %p64 = scmp.eq.s32.totalorder %s63, 0
      %s66 = sadd.s32 %s65, 1
      %s67 = scalar_select %p64, %s65, %s66
      %p70 = pneg %p64
      %p71 = scmp.eq.s32.totalorder %s15, 1
      %p72 = por %p70, %p71
      %p73 = scmp.ne.s32.totalorder %s65, %s68
      %p74 = scmp.eq.s32.totalorder %s15, 0
      %p75 = por %p73, %p74
      %p76 = scmp.ne.s32.totalorder %s65, %s68
      %p77 = scmp.eq.s32.totalorder %s20, 1
      %p78 = por %p76, %p77
      %p79 = scmp.ne.s32.totalorder %s68, %s69
      %p80 = scmp.eq.s32.totalorder %s20, 0
      %p81 = por %p79, %p80
      %p82 = scmp.ne.s32.totalorder %s68, %s69
      %p83 = scmp.eq.s32.totalorder %s21, 1
      %p84 = por %p82, %p83
      %p86 = scmp.ne.s32.totalorder %s69, %s85
      %p87 = scmp.eq.s32.totalorder %s21, 0
      %p88 = por %p86, %p87
      %s90 = sadd.s32 %s89, 1
      %p93 = scmp.eq.s32.totalorder %s15, 1
      %p94 = scmp.ne.s32.totalorder %s89, %s91
      %p95 = scmp.eq.s32.totalorder %s15, 0
      %p96 = por %p94, %p95
      %p97 = scmp.ne.s32.totalorder %s89, %s91
      %p98 = scmp.eq.s32.totalorder %s20, 1
      %p99 = por %p97, %p98
      %p100 = scmp.ne.s32.totalorder %s91, %s92
      %p101 = scmp.eq.s32.totalorder %s20, 0
      %p102 = por %p100, %p101
      %p103 = scmp.ne.s32.totalorder %s91, %s92
      %p104 = scmp.eq.s32.totalorder %s21, 1
      %p105 = por %p103, %p104
      %p107 = scmp.ne.s32.totalorder %s92, %s106
      %p108 = scmp.eq.s32.totalorder %s21, 0
      %p109 = por %p107, %p108
      %s111 = sadd.s32 %s110, 1
      %p114 = scmp.eq.s32.totalorder %s15, 1
      %p115 = scmp.ne.s32.totalorder %s110, %s112
      %p116 = scmp.eq.s32.totalorder %s15, 0
      %p117 = por %p115, %p116
      %p118 = scmp.ne.s32.totalorder %s110, %s112
      %p119 = scmp.eq.s32.totalorder %s20, 1
      %p120 = por %p118, %p119
      %p121 = scmp.ne.s32.totalorder %s112, %s113
      %p122 = scmp.eq.s32.totalorder %s20, 0
      %p123 = por %p121, %p122
      %p124 = scmp.ne.s32.totalorder %s112, %s113
      %p125 = scmp.eq.s32.totalorder %s21, 1
      %p126 = por %p124, %p125
      %p128 = scmp.ne.s32.totalorder %s113, %s127
      %p129 = scmp.eq.s32.totalorder %s21, 0
      %p130 = por %p128, %p129
      %s132 = sadd.s32 %s131, 1
      %p135 = scmp.eq.s32.totalorder %s15, 1
      %p136 = scmp.ne.s32.totalorder %s131, %s133
      %p137 = scmp.eq.s32.totalorder %s15, 0
      %p138 = por %p136, %p137
      %p139 = scmp.ne.s32.totalorder %s131, %s133
      %p140 = scmp.eq.s32.totalorder %s20, 1
      %p141 = por %p139, %p140
      %p142 = scmp.ne.s32.totalorder %s133, %s134
      %p143 = scmp.eq.s32.totalorder %s20, 0
      %p144 = por %p142, %p143
      %p145 = scmp.ne.s32.totalorder %s133, %s134
      %p146 = scmp.eq.s32.totalorder %s21, 1
      %p147 = por %p145, %p146
      %p149 = scmp.ne.s32.totalorder %s134, %s148
      %p150 = scmp.eq.s32.totalorder %s21, 0
      %p151 = por %p149, %p150
      %s153 = sadd.s32 %s152, 1
      %p156 = scmp.eq.s32.totalorder %s15, 1
      %p157 = scmp.ne.s32.totalorder %s152, %s154
      %p158 = scmp.eq.s32.totalorder %s15, 0
      %p159 = por %p157, %p158
      %p160 = scmp.ne.s32.totalorder %s152, %s154
      %p161 = scmp.eq.s32.totalorder %s20, 1
      %p162 = por %p160, %p161
      %p163 = scmp.ne.s32.totalorder %s154, %s155
      %p164 = scmp.eq.s32.totalorder %s20, 0
      %p165 = por %p163, %p164
      %p166 = scmp.ne.s32.totalorder %s154, %s155
      %p167 = scmp.eq.s32.totalorder %s21, 1
      %p168 = por %p166, %p167
      %p170 = scmp.ne.s32.totalorder %s155, %s169
      %p171 = scmp.eq.s32.totalorder %s21, 0
      %p172 = por %p170, %p171
      %s173 = ssub.s32 %s22, %s34
      %s174 = ssub.s32 %s23, %s30
      %s175 = sor.u32 %s173, %s174
      %p176 = scmp.eq.s32.totalorder %s175, 0
      %s178 = sadd.s32 %s177, 1
      %s179 = scalar_select %p176, %s177, %s178
      %p182 = pneg %p176
      %p183 = scmp.eq.s32.totalorder %s15, 1
      %p184 = por %p182, %p183
      %p185 = scmp.ne.s32.totalorder %s177, %s180
      %p186 = scmp.eq.s32.totalorder %s15, 0
      %p187 = por %p185, %p186
      %p188 = scmp.ne.s32.totalorder %s177, %s180
      %p189 = scmp.eq.s32.totalorder %s20, 1
      %p190 = por %p188, %p189
      %p191 = scmp.ne.s32.totalorder %s180, %s181
      %p192 = scmp.eq.s32.totalorder %s20, 0
      %p193 = por %p191, %p192
      %p194 = scmp.ne.s32.totalorder %s180, %s181
      %p195 = scmp.eq.s32.totalorder %s21, 1
      %p196 = por %p194, %p195
      %p198 = scmp.ne.s32.totalorder %s181, %s197
      %p199 = scmp.eq.s32.totalorder %s21, 0
      %p200 = por %p198, %p199
      %p201 = scmp.le.s32.totalorder 1, %s15
      %p202 = scmp.lt.s32.totalorder %s15, 3
      %p203 = pnand %p201, %p202
      %p204 = pneg %p203
      // Predicated region
      $region9: #{basic_block_forward.1} parent=5 // pred_check
        _
      $region10: #{basic_block_forward.1} parent=5 // pred_check_branch
        %206 = sbr.rel (%p203) target = $region12
      $region11: #{basic_block_forward.1} parent=5 // pred_region
        %s207 = ssub.s32 %s15, 1
        // Predicated region
        $region13: #{basic_block_forward.1} parent=11 // pred_check
          %p208 = pneg %p102
        $region14: #{basic_block_forward.1} parent=11 // pred_check_branch
          %210 = sbr.rel (%p208) target = $region16
        $region15: #{basic_block_forward.1} parent=11 // pred_region
          _
        $region16: #{basic_block_forward.1} parent=11 // pred_fallthru
          _
        // Predicated region
        $region17: #{basic_block_forward.1} parent=11 // pred_check
          %p211 = pneg %p123
        $region18: #{basic_block_forward.1} parent=11 // pred_check_branch
          %213 = sbr.rel (%p211) target = $region20
        $region19: #{basic_block_forward.1} parent=11 // pred_region
          _
        $region20: #{basic_block_forward.1} parent=11 // pred_fallthru
          _
        // Predicated region
        $region21: #{basic_block_forward.1} parent=11 // pred_check
          %p214 = pneg %p144
        $region22: #{basic_block_forward.1} parent=11 // pred_check_branch
          %216 = sbr.rel (%p214) target = $region24
        $region23: #{basic_block_forward.1} parent=11 // pred_region
          _
        $region24: #{basic_block_forward.1} parent=11 // pred_fallthru
          _
        // Predicated region
        $region25: #{basic_block_forward.1} parent=11 // pred_check
          %p217 = pneg %p165
        $region26: #{basic_block_forward.1} parent=11 // pred_check_branch
          %219 = sbr.rel (%p217) target = $region28
        $region27: #{basic_block_forward.1} parent=11 // pred_region
          _
        $region28: #{basic_block_forward.1} parent=11 // pred_fallthru
          _
      $region12: #{basic_block_forward.1} parent=5 // pred_fallthru
        _
      %p220 = scmp.lt.s32.totalorder %s15, 2
      // Predicated region
      $region29: #{basic_block_forward.1} parent=5 // pred_check
        %p221 = pneg %p220
      $region30: #{basic_block_forward.1} parent=5 // pred_check_branch
        %223 = sbr.rel (%p221) target = $region32
      $region31: #{basic_block_forward.1} parent=5 // pred_region
        // Predicated region
        $region33: #{basic_block_forward.1} parent=31 // pred_check
          %p224 = pneg %p47
        $region34: #{basic_block_forward.1} parent=31 // pred_check_branch
          %226 = sbr.rel (%p224) target = $region36
        $region35: #{basic_block_forward.1} parent=31 // pred_region
          %p227 = scmp.lt.s32.totalorder %s22, 1
          %s228 = scalar_select %p227, %s22, 1
          %s229 = smul.addr %s228, 60
          %s230 = smul.addr %s229, 4
          %s231 = scalar_lea.vmem %s0, %s230
        $region36: #{basic_block_forward.1} parent=31 // pred_fallthru
          _
        // Predicated region
        $region37: #{basic_block_forward.1} parent=31 // pred_check
          %p232 = pneg %p75
        $region38: #{basic_block_forward.1} parent=31 // pred_check_branch
          %234 = sbr.rel (%p232) target = $region40
        $region39: #{basic_block_forward.1} parent=31 // pred_region
          %s235 = smul.u32 16, %s23
          %p236 = scmp.lt.s32.totalorder %s22, 1
          %s237 = scalar_select %p236, %s22, 1
          %p238 = scmp.lt.s32.totalorder %s235, 15
          %s239 = scalar_select %p238, %s235, 15
          %s240 = smul.addr %s239, 2
          %s241 = smul.addr %s237, 32
          %s242 = sadd.s32 %s240, %s241
          %s243 = smul.addr %s242, 8
          %s244 = scalar_lea.vmem %s1, %s243
          %s245 = smul.u32 16, %s23
        $region40: #{basic_block_forward.1} parent=31 // pred_fallthru
          _
      $region32: #{basic_block_forward.1} parent=5 // pred_fallthru
        _
      %p246 = scmp.le.s32.totalorder 1, %s15
      %p247 = scmp.lt.s32.totalorder %s15, 3
      %p248 = pnand %p246, %p247
      %p249 = pneg %p248
      // Predicated region
      $region41: #{basic_block_forward.1} parent=5 // pred_check
        _
      $region42: #{basic_block_forward.1} parent=5 // pred_check_branch
        %251 = sbr.rel (%p248) target = $region44
      $region43: #{basic_block_forward.1} parent=5 // pred_region
        %s252 = ssub.s32 %s15, 1
        %p253 = scmp.lt.s32.totalorder %s24, 1
        %s254 = scalar_select %p253, %s24, 1
        %s255 = smul.addr %s254, 60
        %s256 = smul.addr %s255, 4
        %s257 = scalar_lea.vmem %s0, %s256
        %p258 = pneg %p53
        %p259 = pneg %p50
        %s260 = smul.u32 16, %s25
        %p261 = scmp.lt.s32.totalorder %s24, 1
        %s262 = scalar_select %p261, %s24, 1
        %p263 = scmp.lt.s32.totalorder %s260, 15
        %s264 = scalar_select %p263, %s260, 15
        %s265 = smul.addr %s264, 2
        %s266 = smul.addr %s262, 32
        %s267 = sadd.s32 %s265, %s266
        %s268 = smul.addr %s267, 8
        %s269 = scalar_lea.vmem %s1, %s268
        %p270 = pneg %p81
        %p271 = pneg %p78
        %p272 = pneg %p102
        %p273 = pneg %p99
        %p274 = pneg %p123
        %p275 = pneg %p120
        %p276 = pneg %p144
        %p277 = pneg %p141
        %p278 = pneg %p165
        %p279 = pneg %p162
        %p280 = pneg %p193
        %p281 = pneg %p190
        %s282 = sand.u32 %s180, 1
        %s283 = scalar_lea.sflag [#allocation5], %s282
        %s284 = sand.u32 %s180, 1
        %s285 = smul.addr %s284, 256
        %s286 = scalar_lea.vmem [#allocation4], %s285
        %p287 = scmp.lt.s32.totalorder %s24, 1
        %s288 = scalar_select %p287, %s24, 1
        %s289 = smul.addr %s288, 60
        %s290 = smul.addr %s289, 4
        %s291 = scalar_lea.vmem %s0, %s290
        %s292 = smul.u32 16, %s25
        %p293 = scmp.lt.s32.totalorder %s24, 1
        %s294 = scalar_select %p293, %s24, 1
        %p295 = scmp.lt.s32.totalorder %s292, 15
        %s296 = scalar_select %p295, %s292, 15
        %s297 = smul.addr %s296, 2
        %s298 = smul.addr %s294, 32
        %s299 = sadd.s32 %s297, %s298
        %s300 = smul.addr %s299, 8
        %s301 = scalar_lea.vmem %s1, %s300
        %s302 = smul.u32 16, %s25
        %s303 = smul.u32 16, %s25
        %s305 = smul.u32 %s25, 16
        %s306 = smul.u32 %s305, 3
        %s307 = smul.addr %s306, 4
        %s308 = scalar_lea.vmem %s291, %s307
        %v309 = vld [vmem:[%s308] sm:$0xf]
        %v310 = vld [vmem:[%s308 + $0x4] sm:$0xf]
        %v311 = vld [vmem:[%s308 + $0x8] sm:$0x1]
        %v312 = vld [vmem:[%s308 + $0xc] sm:$0xf]
        %v313 = vld [vmem:[%s308 + $0x10] sm:$0xf]
        %v314 = vld [vmem:[%s308 + $0x14] sm:$0x1]
        %v315 = vld [vmem:[%s308 + $0x18] sm:$0xf]
        %v316 = vld [vmem:[%s308 + $0x1c] sm:$0xf]
        %v317 = vld [vmem:[%s308 + $0x20] sm:$0x1]
        %v318 = vld [vmem:[%s308 + $0x24] sm:$0xf]
        %v319 = vld [vmem:[%s308 + $0x28] sm:$0xf]
        %v320 = vld [vmem:[%s308 + $0x2c] sm:$0x1]
        %v321 = vld [vmem:[%s308 + $0x30] sm:$0xf]
        %v322 = vld [vmem:[%s308 + $0x34] sm:$0xf]
        %v323 = vld [vmem:[%s308 + $0x38] sm:$0x1]
        %v324 = vld [vmem:[%s308 + $0x3c] sm:$0xf]
        %v325 = vld [vmem:[%s308 + $0x40] sm:$0xf]
        %v326 = vld [vmem:[%s308 + $0x44] sm:$0x1]
        %v327 = vld [vmem:[%s308 + $0x48] sm:$0xf]
        %v328 = vld [vmem:[%s308 + $0x4c] sm:$0xf]
        %v329 = vld [vmem:[%s308 + $0x50] sm:$0x1]
        %v330 = vld [vmem:[%s308 + $0x54] sm:$0xf]
        %v331 = vld [vmem:[%s308 + $0x58] sm:$0xf]
        %v332 = vld [vmem:[%s308 + $0x5c] sm:$0x1]
        %v333 = vld [vmem:[%s308 + $0x60] sm:$0xf]
        %v334 = vld [vmem:[%s308 + $0x64] sm:$0xf]
        %v335 = vld [vmem:[%s308 + $0x68] sm:$0x1]
        %v336 = vld [vmem:[%s308 + $0x6c] sm:$0xf]
        %v337 = vld [vmem:[%s308 + $0x70] sm:$0xf]
        %v338 = vld [vmem:[%s308 + $0x74] sm:$0x1]
        %v339 = vld [vmem:[%s308 + $0x78] sm:$0xf]
        %v340 = vld [vmem:[%s308 + $0x7c] sm:$0xf]
        %v341 = vld [vmem:[%s308 + $0x80] sm:$0x1]
        %v342 = vld [vmem:[%s308 + $0x84] sm:$0xf]
        %v343 = vld [vmem:[%s308 + $0x88] sm:$0xf]
        %v344 = vld [vmem:[%s308 + $0x8c] sm:$0x1]
        %v345 = vld [vmem:[%s308 + $0x90] sm:$0xf]
        %v346 = vld [vmem:[%s308 + $0x94] sm:$0xf]
        %v347 = vld [vmem:[%s308 + $0x98] sm:$0x1]
        %v348 = vld [vmem:[%s308 + $0x9c] sm:$0xf]
        %v349 = vld [vmem:[%s308 + $0xa0] sm:$0xf]
        %v350 = vld [vmem:[%s308 + $0xa4] sm:$0x1]
        %v351 = vld [vmem:[%s308 + $0xa8] sm:$0xf]
        %v352 = vld [vmem:[%s308 + $0xac] sm:$0xf]
        %v353 = vld [vmem:[%s308 + $0xb0] sm:$0x1]
        %v354 = vld [vmem:[%s308 + $0xb4] sm:$0xf]
        %v355 = vld [vmem:[%s308 + $0xb8] sm:$0xf]
        %v356 = vld [vmem:[%s308 + $0xbc] sm:$0x1]
        %v357 = vld [vmem:[%s308 + $0xc0] sm:$0xf]
        %v358 = vld [vmem:[%s308 + $0xc4] sm:$0xf]
        %v359 = vld [vmem:[%s308 + $0xc8] sm:$0x1]
        %v360 = vld [vmem:[%s308 + $0xcc] sm:$0xf]
        %v361 = vld [vmem:[%s308 + $0xd0] sm:$0xf]
        %v362 = vld [vmem:[%s308 + $0xd4] sm:$0x1]
        %v363 = vld [vmem:[%s308 + $0xd8] sm:$0xf]
        %v364 = vld [vmem:[%s308 + $0xdc] sm:$0xf]
        %v365 = vld [vmem:[%s308 + $0xe0] sm:$0x1]
        %v366 = vld [vmem:[%s308 + $0xe4] sm:$0xf]
        %v367 = vld [vmem:[%s308 + $0xe8] sm:$0xf]
        %v368 = vld [vmem:[%s308 + $0xec] sm:$0x1]
        %v409 = vunpack.c.l.b16 %v309
        %v410 = vunpack.c.l.b16 %v310
        %v411 = vunpack.c.l.b16 %v312
        %v412 = vunpack.c.l.b16 %v313
        %v413 = vunpack.c.l.b16 %v315
        %v414 = vunpack.c.l.b16 %v316
        %v415 = vunpack.c.l.b16 %v318
        %v416 = vunpack.c.l.b16 %v319
        %v417 = vunpack.c.l.b16 %v321
        %v418 = vunpack.c.l.b16 %v322
        %v419 = vunpack.c.l.b16 %v324
        %v420 = vunpack.c.l.b16 %v325
        %v421 = vunpack.c.l.b16 %v327
        %v422 = vunpack.c.l.b16 %v328
        %v423 = vunpack.c.l.b16 %v330
        %v424 = vunpack.c.l.b16 %v331
        %v425 = vunpack.c.l.b16 %v333
        %v426 = vunpack.c.l.b16 %v334
        %v427 = vunpack.c.l.b16 %v336
        %v428 = vunpack.c.l.b16 %v337
        %v429 = vunpack.c.l.b16 %v339
        %v430 = vunpack.c.l.b16 %v340
        %v431 = vunpack.c.l.b16 %v342
        %v432 = vunpack.c.l.b16 %v343
        %v433 = vunpack.c.l.b16 %v345
        %v434 = vunpack.c.l.b16 %v346
        %v435 = vunpack.c.l.b16 %v348
        %v436 = vunpack.c.l.b16 %v349
        %v437 = vunpack.c.l.b16 %v351
        %v438 = vunpack.c.l.b16 %v352
        %v439 = vunpack.c.l.b16 %v354
        %v440 = vunpack.c.l.b16 %v355
        %v441 = vunpack.c.l.b16 %v357
        %v442 = vunpack.c.l.b16 %v358
        %v443 = vunpack.c.l.b16 %v360
        %v444 = vunpack.c.l.b16 %v361
        %v445 = vunpack.c.l.b16 %v363
        %v446 = vunpack.c.l.b16 %v364
        %v447 = vunpack.c.l.b16 %v366
        %v448 = vunpack.c.l.b16 %v367
        %v449 = vpack.c.b16 %v410, %v409
        %v450 = vpack.c.b16 %v412, %v411
        %v451 = vpack.c.b16 %v414, %v413
        %v452 = vpack.c.b16 %v416, %v415
        %v453 = vpack.c.b16 %v418, %v417
        %v454 = vpack.c.b16 %v420, %v419
        %v455 = vpack.c.b16 %v422, %v421
        %v456 = vpack.c.b16 %v424, %v423
        %v457 = vpack.c.b16 %v426, %v425
        %v458 = vpack.c.b16 %v428, %v427
        %v459 = vpack.c.b16 %v430, %v429
        %v460 = vpack.c.b16 %v432, %v431
        %v461 = vpack.c.b16 %v434, %v433
        %v462 = vpack.c.b16 %v436, %v435
        %v463 = vpack.c.b16 %v438, %v437
        %v464 = vpack.c.b16 %v440, %v439
        %v465 = vpack.c.b16 %v442, %v441
        %v466 = vpack.c.b16 %v444, %v443
        %v467 = vpack.c.b16 %v446, %v445
        %v468 = vpack.c.b16 %v448, %v447
        %v489 = vunpack.c.l.b16 %v311
        %v490 = vunpack.c.l.b16 %v314
        %v491 = vunpack.c.l.b16 %v317
        %v492 = vunpack.c.l.b16 %v320
        %v493 = vunpack.c.l.b16 %v323
        %v494 = vunpack.c.l.b16 %v326
        %v495 = vunpack.c.l.b16 %v329
        %v496 = vunpack.c.l.b16 %v332
        %v497 = vunpack.c.l.b16 %v335
        %v498 = vunpack.c.l.b16 %v338
        %v499 = vunpack.c.l.b16 %v341
        %v500 = vunpack.c.l.b16 %v344
        %v501 = vunpack.c.l.b16 %v347
        %v502 = vunpack.c.l.b16 %v350
        %v503 = vunpack.c.l.b16 %v353
        %v504 = vunpack.c.l.b16 %v356
        %v505 = vunpack.c.l.b16 %v359
        %v506 = vunpack.c.l.b16 %v362
        %v507 = vunpack.c.l.b16 %v365
        %v508 = vunpack.c.l.b16 %v368
        %v509 = vpack.c.b16 %v489, %v489
        %v510 = vpack.c.b16 %v490, %v490
        %v511 = vpack.c.b16 %v491, %v491
        %v512 = vpack.c.b16 %v492, %v492
        %v513 = vpack.c.b16 %v493, %v493
        %v514 = vpack.c.b16 %v494, %v494
        %v515 = vpack.c.b16 %v495, %v495
        %v516 = vpack.c.b16 %v496, %v496
        %v517 = vpack.c.b16 %v497, %v497
        %v518 = vpack.c.b16 %v498, %v498
        %v519 = vpack.c.b16 %v499, %v499
        %v520 = vpack.c.b16 %v500, %v500
        %v521 = vpack.c.b16 %v501, %v501
        %v522 = vpack.c.b16 %v502, %v502
        %v523 = vpack.c.b16 %v503, %v503
        %v524 = vpack.c.b16 %v504, %v504
        %v525 = vpack.c.b16 %v505, %v505
        %v526 = vpack.c.b16 %v506, %v506
        %v527 = vpack.c.b16 %v507, %v507
        %v528 = vpack.c.b16 %v508, %v508
        %vm529 = vsmask.f32 7424
        %v531 = vshrl.u32 %v449, 16
        %v533 = vshll.u32 %v449, 16
        %v535 = vrot.slane %v533, 1
        %v536 = vor.u32 %v531, %v535
        %v538 = vshll.u32 %v509, 16
        %v540 = vrot.slane %v538, 1
        %v541 = vsel %vm529, %v536, %v540
        %v543 = vshrl.u32 %v450, 16
        %v545 = vshll.u32 %v450, 16
        %v547 = vrot.slane %v545, 1
        %v548 = vor.u32 %v543, %v547
        %v550 = vshll.u32 %v510, 16
        %v552 = vrot.slane %v550, 1
        %v553 = vsel %vm529, %v548, %v552
        %v555 = vshrl.u32 %v451, 16
        %v557 = vshll.u32 %v451, 16
        %v559 = vrot.slane %v557, 1
        %v560 = vor.u32 %v555, %v559
        %v562 = vshll.u32 %v511, 16
        %v564 = vrot.slane %v562, 1
        %v565 = vsel %vm529, %v560, %v564
        %v567 = vshrl.u32 %v452, 16
        %v569 = vshll.u32 %v452, 16
        %v571 = vrot.slane %v569, 1
        %v572 = vor.u32 %v567, %v571
        %v574 = vshll.u32 %v512, 16
        %v576 = vrot.slane %v574, 1
        %v577 = vsel %vm529, %v572, %v576
        %v579 = vshrl.u32 %v453, 16
        %v581 = vshll.u32 %v453, 16
        %v583 = vrot.slane %v581, 1
        %v584 = vor.u32 %v579, %v583
        %v586 = vshll.u32 %v513, 16
        %v588 = vrot.slane %v586, 1
        %v589 = vsel %vm529, %v584, %v588
        %v591 = vshrl.u32 %v454, 16
        %v593 = vshll.u32 %v454, 16
        %v595 = vrot.slane %v593, 1
        %v596 = vor.u32 %v591, %v595
        %v598 = vshll.u32 %v514, 16
        %v600 = vrot.slane %v598, 1
        %v601 = vsel %vm529, %v596, %v600
        %v603 = vshrl.u32 %v455, 16
        %v605 = vshll.u32 %v455, 16
        %v607 = vrot.slane %v605, 1
        %v608 = vor.u32 %v603, %v607
        %v610 = vshll.u32 %v515, 16
        %v612 = vrot.slane %v610, 1
        %v613 = vsel %vm529, %v608, %v612
        %v615 = vshrl.u32 %v456, 16
        %v617 = vshll.u32 %v456, 16
        %v619 = vrot.slane %v617, 1
        %v620 = vor.u32 %v615, %v619
        %v622 = vshll.u32 %v516, 16
        %v624 = vrot.slane %v622, 1
        %v625 = vsel %vm529, %v620, %v624
        %v627 = vshrl.u32 %v457, 16
        %v629 = vshll.u32 %v457, 16
        %v631 = vrot.slane %v629, 1
        %v632 = vor.u32 %v627, %v631
        %v634 = vshll.u32 %v517, 16
        %v636 = vrot.slane %v634, 1
        %v637 = vsel %vm529, %v632, %v636
        %v639 = vshrl.u32 %v458, 16
        %v641 = vshll.u32 %v458, 16
        %v643 = vrot.slane %v641, 1
        %v644 = vor.u32 %v639, %v643
        %v646 = vshll.u32 %v518, 16
        %v648 = vrot.slane %v646, 1
        %v649 = vsel %vm529, %v644, %v648
        %v651 = vshrl.u32 %v459, 16
        %v653 = vshll.u32 %v459, 16
        %v655 = vrot.slane %v653, 1
        %v656 = vor.u32 %v651, %v655
        %v658 = vshll.u32 %v519, 16
        %v660 = vrot.slane %v658, 1
        %v661 = vsel %vm529, %v656, %v660
        %v663 = vshrl.u32 %v460, 16
        %v665 = vshll.u32 %v460, 16
        %v667 = vrot.slane %v665, 1
        %v668 = vor.u32 %v663, %v667
        %v670 = vshll.u32 %v520, 16
        %v672 = vrot.slane %v670, 1
        %v673 = vsel %vm529, %v668, %v672
        %v675 = vshrl.u32 %v461, 16
        %v677 = vshll.u32 %v461, 16
        %v679 = vrot.slane %v677, 1
        %v680 = vor.u32 %v675, %v679
        %v682 = vshll.u32 %v521, 16
        %v684 = vrot.slane %v682, 1
        %v685 = vsel %vm529, %v680, %v684
        %v687 = vshrl.u32 %v462, 16
        %v689 = vshll.u32 %v462, 16
        %v691 = vrot.slane %v689, 1
        %v692 = vor.u32 %v687, %v691
        %v694 = vshll.u32 %v522, 16
        %v696 = vrot.slane %v694, 1
        %v697 = vsel %vm529, %v692, %v696
        %v699 = vshrl.u32 %v463, 16
        %v701 = vshll.u32 %v463, 16
        %v703 = vrot.slane %v701, 1
        %v704 = vor.u32 %v699, %v703
        %v706 = vshll.u32 %v523, 16
        %v708 = vrot.slane %v706, 1
        %v709 = vsel %vm529, %v704, %v708
        %v711 = vshrl.u32 %v464, 16
        %v713 = vshll.u32 %v464, 16
        %v715 = vrot.slane %v713, 1
        %v716 = vor.u32 %v711, %v715
        %v718 = vshll.u32 %v524, 16
        %v720 = vrot.slane %v718, 1
        %v721 = vsel %vm529, %v716, %v720
        %v723 = vshrl.u32 %v465, 16
        %v725 = vshll.u32 %v465, 16
        %v727 = vrot.slane %v725, 1
        %v728 = vor.u32 %v723, %v727
        %v730 = vshll.u32 %v525, 16
        %v732 = vrot.slane %v730, 1
        %v733 = vsel %vm529, %v728, %v732
        %v735 = vshrl.u32 %v466, 16
        %v737 = vshll.u32 %v466, 16
        %v739 = vrot.slane %v737, 1
        %v740 = vor.u32 %v735, %v739
        %v742 = vshll.u32 %v526, 16
        %v744 = vrot.slane %v742, 1
        %v745 = vsel %vm529, %v740, %v744
        %v747 = vshrl.u32 %v467, 16
        %v749 = vshll.u32 %v467, 16
        %v751 = vrot.slane %v749, 1
        %v752 = vor.u32 %v747, %v751
        %v754 = vshll.u32 %v527, 16
        %v756 = vrot.slane %v754, 1
        %v757 = vsel %vm529, %v752, %v756
        %v759 = vshrl.u32 %v468, 16
        %v761 = vshll.u32 %v468, 16
        %v763 = vrot.slane %v761, 1
        %v764 = vor.u32 %v759, %v763
        %v766 = vshll.u32 %v528, 16
        %v768 = vrot.slane %v766, 1
        %v769 = vsel %vm529, %v764, %v768
        %770 = vrot.lane.b32.xlu0 %v541, 64
        %v771 = vpop.permute.xlu0 %770
        %772 = vrot.lane.b32.xlu0 %v553, 64
        %v773 = vpop.permute.xlu0 %772
        %774 = vrot.lane.b32.xlu0 %v565, 64
        %v775 = vpop.permute.xlu0 %774
        %776 = vrot.lane.b32.xlu0 %v577, 64
        %v777 = vpop.permute.xlu0 %776
        %778 = vrot.lane.b32.xlu0 %v589, 64
        %v779 = vpop.permute.xlu0 %778
        %780 = vrot.lane.b32.xlu0 %v601, 64
        %v781 = vpop.permute.xlu0 %780
        %782 = vrot.lane.b32.xlu0 %v613, 64
        %v783 = vpop.permute.xlu0 %782
        %784 = vrot.lane.b32.xlu0 %v625, 64
        %v785 = vpop.permute.xlu0 %784
        %786 = vrot.lane.b32.xlu0 %v637, 64
        %v787 = vpop.permute.xlu0 %786
        %788 = vrot.lane.b32.xlu0 %v649, 64
        %v789 = vpop.permute.xlu0 %788
        %790 = vrot.lane.b32.xlu0 %v661, 64
        %v791 = vpop.permute.xlu0 %790
        %792 = vrot.lane.b32.xlu0 %v673, 64
        %v793 = vpop.permute.xlu0 %792
        %794 = vrot.lane.b32.xlu0 %v685, 64
        %v795 = vpop.permute.xlu0 %794
        %796 = vrot.lane.b32.xlu0 %v697, 64
        %v797 = vpop.permute.xlu0 %796
        %798 = vrot.lane.b32.xlu0 %v709, 64
        %v799 = vpop.permute.xlu0 %798
        %800 = vrot.lane.b32.xlu0 %v721, 64
        %v801 = vpop.permute.xlu0 %800
        %802 = vrot.lane.b32.xlu0 %v733, 64
        %v803 = vpop.permute.xlu0 %802
        %804 = vrot.lane.b32.xlu0 %v745, 64
        %v805 = vpop.permute.xlu0 %804
        %806 = vrot.lane.b32.xlu0 %v757, 64
        %v807 = vpop.permute.xlu0 %806
        %808 = vrot.lane.b32.xlu0 %v769, 64
        %v809 = vpop.permute.xlu0 %808
        %vm810 = vcmask 1046528
        %v811 = vrot.slane %v449, 1
        %v812 = vrot.slane %v509, 1
        %v813 = vsel %vm810, %v811, %v812
        %v814 = vrot.slane %v450, 1
        %v815 = vrot.slane %v510, 1
        %v816 = vsel %vm810, %v814, %v815
        %v817 = vrot.slane %v451, 1
        %v818 = vrot.slane %v511, 1
        %v819 = vsel %vm810, %v817, %v818
        %v820 = vrot.slane %v452, 1
        %v821 = vrot.slane %v512, 1
        %v822 = vsel %vm810, %v820, %v821
        %v823 = vrot.slane %v453, 1
        %v824 = vrot.slane %v513, 1
        %v825 = vsel %vm810, %v823, %v824
        %v826 = vrot.slane %v454, 1
        %v827 = vrot.slane %v514, 1
        %v828 = vsel %vm810, %v826, %v827
        %v829 = vrot.slane %v455, 1
        %v830 = vrot.slane %v515, 1
        %v831 = vsel %vm810, %v829, %v830
        %v832 = vrot.slane %v456, 1
        %v833 = vrot.slane %v516, 1
        %v834 = vsel %vm810, %v832, %v833
        %v835 = vrot.slane %v457, 1
        %v836 = vrot.slane %v517, 1
        %v837 = vsel %vm810, %v835, %v836
        %v838 = vrot.slane %v458, 1
        %v839 = vrot.slane %v518, 1
        %v840 = vsel %vm810, %v838, %v839
        %v841 = vrot.slane %v459, 1
        %v842 = vrot.slane %v519, 1
        %v843 = vsel %vm810, %v841, %v842
        %v844 = vrot.slane %v460, 1
        %v845 = vrot.slane %v520, 1
        %v846 = vsel %vm810, %v844, %v845
        %v847 = vrot.slane %v461, 1
        %v848 = vrot.slane %v521, 1
        %v849 = vsel %vm810, %v847, %v848
        %v850 = vrot.slane %v462, 1
        %v851 = vrot.slane %v522, 1
        %v852 = vsel %vm810, %v850, %v851
        %v853 = vrot.slane %v463, 1
        %v854 = vrot.slane %v523, 1
        %v855 = vsel %vm810, %v853, %v854
        %v856 = vrot.slane %v464, 1
        %v857 = vrot.slane %v524, 1
        %v858 = vsel %vm810, %v856, %v857
        %v859 = vrot.slane %v465, 1
        %v860 = vrot.slane %v525, 1
        %v861 = vsel %vm810, %v859, %v860
        %v862 = vrot.slane %v466, 1
        %v863 = vrot.slane %v526, 1
        %v864 = vsel %vm810, %v862, %v863
        %v865 = vrot.slane %v467, 1
        %v866 = vrot.slane %v527, 1
        %v867 = vsel %vm810, %v865, %v866
        %v868 = vrot.slane %v468, 1
        %v869 = vrot.slane %v528, 1
        %v870 = vsel %vm810, %v868, %v869
        %vm871 = vcmask 523264
        %v873 = vsel %vm871, %v449, %v771
        %v875 = vsel %vm871, %v450, %v773
        %v877 = vsel %vm871, %v451, %v775
        %v879 = vsel %vm871, %v452, %v777
        %v881 = vsel %vm871, %v453, %v779
        %v883 = vsel %vm871, %v454, %v781
        %v885 = vsel %vm871, %v455, %v783
        %v887 = vsel %vm871, %v456, %v785
        %v889 = vsel %vm871, %v457, %v787
        %v891 = vsel %vm871, %v458, %v789
        %v893 = vsel %vm871, %v459, %v791
        %v895 = vsel %vm871, %v460, %v793
        %v897 = vsel %vm871, %v461, %v795
        %v899 = vsel %vm871, %v462, %v797
        %v901 = vsel %vm871, %v463, %v799
        %v903 = vsel %vm871, %v464, %v801
        %v905 = vsel %vm871, %v465, %v803
        %v907 = vsel %vm871, %v466, %v805
        %v909 = vsel %vm871, %v467, %v807
        %v911 = vsel %vm871, %v468, %v809
        %v932 = vunpack.c.l.b16 %v873
        %v933 = vunpack.c.l.b16 %v813
        %v934 = vunpack.c.h.b16 %v873
        %v935 = vunpack.c.h.b16 %v813
        %v936 = vunpack.c.l.b16 %v875
        %v937 = vunpack.c.l.b16 %v816
        %v938 = vunpack.c.h.b16 %v875
        %v939 = vunpack.c.h.b16 %v816
        %v940 = vunpack.c.l.b16 %v877
        %v941 = vunpack.c.l.b16 %v819
        %v942 = vunpack.c.h.b16 %v877
        %v943 = vunpack.c.h.b16 %v819
        %v944 = vunpack.c.l.b16 %v879
        %v945 = vunpack.c.l.b16 %v822
        %v946 = vunpack.c.h.b16 %v879
        %v947 = vunpack.c.h.b16 %v822
        %v948 = vunpack.c.l.b16 %v881
        %v949 = vunpack.c.l.b16 %v825
        %v950 = vunpack.c.h.b16 %v881
        %v951 = vunpack.c.h.b16 %v825
        %v952 = vunpack.c.l.b16 %v883
        %v953 = vunpack.c.l.b16 %v828
        %v954 = vunpack.c.h.b16 %v883
        %v955 = vunpack.c.h.b16 %v828
        %v956 = vunpack.c.l.b16 %v885
        %v957 = vunpack.c.l.b16 %v831
        %v958 = vunpack.c.h.b16 %v885
        %v959 = vunpack.c.h.b16 %v831
        %v960 = vunpack.c.l.b16 %v887
        %v961 = vunpack.c.l.b16 %v834
        %v962 = vunpack.c.h.b16 %v887
        %v963 = vunpack.c.h.b16 %v834
        %v964 = vunpack.c.l.b16 %v889
        %v965 = vunpack.c.l.b16 %v837
        %v966 = vunpack.c.h.b16 %v889
        %v967 = vunpack.c.h.b16 %v837
        %v968 = vunpack.c.l.b16 %v891
        %v969 = vunpack.c.l.b16 %v840
        %v970 = vunpack.c.h.b16 %v891
        %v971 = vunpack.c.h.b16 %v840
        %v972 = vunpack.c.l.b16 %v893
        %v973 = vunpack.c.l.b16 %v843
        %v974 = vunpack.c.h.b16 %v893
        %v975 = vunpack.c.h.b16 %v843
        %v976 = vunpack.c.l.b16 %v895
        %v977 = vunpack.c.l.b16 %v846
        %v978 = vunpack.c.h.b16 %v895
        %v979 = vunpack.c.h.b16 %v846
        %v980 = vunpack.c.l.b16 %v897
        %v981 = vunpack.c.l.b16 %v849
        %v982 = vunpack.c.h.b16 %v897
        %v983 = vunpack.c.h.b16 %v849
        %v984 = vunpack.c.l.b16 %v899
        %v985 = vunpack.c.l.b16 %v852
        %v986 = vunpack.c.h.b16 %v899
        %v987 = vunpack.c.h.b16 %v852
        %v988 = vunpack.c.l.b16 %v901
        %v989 = vunpack.c.l.b16 %v855
        %v990 = vunpack.c.h.b16 %v901
        %v991 = vunpack.c.h.b16 %v855
        %v992 = vunpack.c.l.b16 %v903
        %v993 = vunpack.c.l.b16 %v858
        %v994 = vunpack.c.h.b16 %v903
        %v995 = vunpack.c.h.b16 %v858
        %v996 = vunpack.c.l.b16 %v905
        %v997 = vunpack.c.l.b16 %v861
        %v998 = vunpack.c.h.b16 %v905
        %v999 = vunpack.c.h.b16 %v861
        %v1000 = vunpack.c.l.b16 %v907
        %v1001 = vunpack.c.l.b16 %v864
        %v1002 = vunpack.c.h.b16 %v907
        %v1003 = vunpack.c.h.b16 %v864
        %v1004 = vunpack.c.l.b16 %v909
        %v1005 = vunpack.c.l.b16 %v867
        %v1006 = vunpack.c.h.b16 %v909
        %v1007 = vunpack.c.h.b16 %v867
        %v1008 = vunpack.c.l.b16 %v911
        %v1009 = vunpack.c.l.b16 %v870
        %v1010 = vunpack.c.h.b16 %v911
        %v1011 = vunpack.c.h.b16 %v870
        %v1012 = vpack.c.b16 %v933, %v932
        %v1013 = vpack.c.b16 %v935, %v934
        %v1014 = vpack.c.b16 %v937, %v936
        %v1015 = vpack.c.b16 %v939, %v938
        %v1016 = vpack.c.b16 %v941, %v940
        %v1017 = vpack.c.b16 %v943, %v942
        %v1018 = vpack.c.b16 %v945, %v944
        %v1019 = vpack.c.b16 %v947, %v946
        %v1020 = vpack.c.b16 %v949, %v948
        %v1021 = vpack.c.b16 %v951, %v950
        %v1022 = vpack.c.b16 %v953, %v952
        %v1023 = vpack.c.b16 %v955, %v954
        %v1024 = vpack.c.b16 %v957, %v956
        %v1025 = vpack.c.b16 %v959, %v958
        %v1026 = vpack.c.b16 %v961, %v960
        %v1027 = vpack.c.b16 %v963, %v962
        %v1028 = vpack.c.b16 %v965, %v964
        %v1029 = vpack.c.b16 %v967, %v966
        %v1030 = vpack.c.b16 %v969, %v968
        %v1031 = vpack.c.b16 %v971, %v970
        %v1032 = vpack.c.b16 %v973, %v972
        %v1033 = vpack.c.b16 %v975, %v974
        %v1034 = vpack.c.b16 %v977, %v976
        %v1035 = vpack.c.b16 %v979, %v978
        %v1036 = vpack.c.b16 %v981, %v980
        %v1037 = vpack.c.b16 %v983, %v982
        %v1038 = vpack.c.b16 %v985, %v984
        %v1039 = vpack.c.b16 %v987, %v986
        %v1040 = vpack.c.b16 %v989, %v988
        %v1041 = vpack.c.b16 %v991, %v990
        %v1042 = vpack.c.b16 %v993, %v992
        %v1043 = vpack.c.b16 %v995, %v994
        %v1044 = vpack.c.b16 %v997, %v996
        %v1045 = vpack.c.b16 %v999, %v998
        %v1046 = vpack.c.b16 %v1001, %v1000
        %v1047 = vpack.c.b16 %v1003, %v1002
        %v1048 = vpack.c.b16 %v1005, %v1004
        %v1049 = vpack.c.b16 %v1007, %v1006
        %v1050 = vpack.c.b16 %v1009, %v1008
        %v1051 = vpack.c.b16 %v1011, %v1010
        %vm1092 = vcmask 1043456
        %vm1093 = vcmask 523268
        %vm1094 = vmor %vm1093, %vm1092
        %1095 = vst.msk [vmem:[#allocation2] sm:$0xff] %vm1094, %v1012
        %1096 = vst.msk [vmem:[#allocation2 + $0x8] sm:$0xff] %vm1094, %v1013
        %1097 = vst.msk [vmem:[#allocation2 + $0x10] sm:$0xff] %vm1094, %v1014
        %1098 = vst.msk [vmem:[#allocation2 + $0x18] sm:$0xff] %vm1094, %v1015
        %1099 = vst.msk [vmem:[#allocation2 + $0x20] sm:$0xff] %vm1094, %v1016
        %1100 = vst.msk [vmem:[#allocation2 + $0x28] sm:$0xff] %vm1094, %v1017
        %1101 = vst.msk [vmem:[#allocation2 + $0x30] sm:$0xff] %vm1094, %v1018
        %1102 = vst.msk [vmem:[#allocation2 + $0x38] sm:$0xff] %vm1094, %v1019
        %1103 = vst.msk [vmem:[#allocation2 + $0x40] sm:$0xff] %vm1094, %v1020
        %1104 = vst.msk [vmem:[#allocation2 + $0x48] sm:$0xff] %vm1094, %v1021
        %1105 = vst.msk [vmem:[#allocation2 + $0x50] sm:$0xff] %vm1094, %v1022
        %1106 = vst.msk [vmem:[#allocation2 + $0x58] sm:$0xff] %vm1094, %v1023
        %1107 = vst.msk [vmem:[#allocation2 + $0x60] sm:$0xff] %vm1094, %v1024
        %1108 = vst.msk [vmem:[#allocation2 + $0x68] sm:$0xff] %vm1094, %v1025
        %1109 = vst.msk [vmem:[#allocation2 + $0x70] sm:$0xff] %vm1094, %v1026
        %1110 = vst.msk [vmem:[#allocation2 + $0x78] sm:$0xff] %vm1094, %v1027
        %1111 = vst.msk [vmem:[#allocation2 + $0x80] sm:$0xff] %vm1094, %v1028
        %1112 = vst.msk [vmem:[#allocation2 + $0x88] sm:$0xff] %vm1094, %v1029
        %1113 = vst.msk [vmem:[#allocation2 + $0x90] sm:$0xff] %vm1094, %v1030
        %1114 = vst.msk [vmem:[#allocation2 + $0x98] sm:$0xff] %vm1094, %v1031
        %1115 = vst.msk [vmem:[#allocation2 + $0xa0] sm:$0xff] %vm1094, %v1032
        %1116 = vst.msk [vmem:[#allocation2 + $0xa8] sm:$0xff] %vm1094, %v1033
        %1117 = vst.msk [vmem:[#allocation2 + $0xb0] sm:$0xff] %vm1094, %v1034
        %1118 = vst.msk [vmem:[#allocation2 + $0xb8] sm:$0xff] %vm1094, %v1035
        %1119 = vst.msk [vmem:[#allocation2 + $0xc0] sm:$0xff] %vm1094, %v1036
        %1120 = vst.msk [vmem:[#allocation2 + $0xc8] sm:$0xff] %vm1094, %v1037
        %1121 = vst.msk [vmem:[#allocation2 + $0xd0] sm:$0xff] %vm1094, %v1038
        %1122 = vst.msk [vmem:[#allocation2 + $0xd8] sm:$0xff] %vm1094, %v1039
        %1123 = vst.msk [vmem:[#allocation2 + $0xe0] sm:$0xff] %vm1094, %v1040
        %1124 = vst.msk [vmem:[#allocation2 + $0xe8] sm:$0xff] %vm1094, %v1041
        %1125 = vst.msk [vmem:[#allocation2 + $0xf0] sm:$0xff] %vm1094, %v1042
        %1126 = vst.msk [vmem:[#allocation2 + $0xf8] sm:$0xff] %vm1094, %v1043
        %1127 = vst.msk [vmem:[#allocation2 + $0x100] sm:$0xff] %vm1094, %v1044
        %1128 = vst.msk [vmem:[#allocation2 + $0x108] sm:$0xff] %vm1094, %v1045
        %1129 = vst.msk [vmem:[#allocation2 + $0x110] sm:$0xff] %vm1094, %v1046
        %1130 = vst.msk [vmem:[#allocation2 + $0x118] sm:$0xff] %vm1094, %v1047
        %1131 = vst.msk [vmem:[#allocation2 + $0x120] sm:$0xff] %vm1094, %v1048
        %1132 = vst.msk [vmem:[#allocation2 + $0x128] sm:$0xff] %vm1094, %v1049
        %1133 = vst.msk [vmem:[#allocation2 + $0x130] sm:$0xff] %vm1094, %v1050
        %1134 = vst.msk [vmem:[#allocation2 + $0x138] sm:$0xff] %vm1094, %v1051
        %v1135 = vld [vmem:[#allocation2] sm:$0xff]
        %v1136 = vld [vmem:[#allocation2 + $0x8] sm:$0xff]
        %v1137 = vld [vmem:[#allocation2 + $0x10] sm:$0xff]
        %v1138 = vld [vmem:[#allocation2 + $0x18] sm:$0xff]
        %v1139 = vld [vmem:[#allocation2 + $0x20] sm:$0xff]
        %v1140 = vld [vmem:[#allocation2 + $0x28] sm:$0xff]
        %v1141 = vld [vmem:[#allocation2 + $0x30] sm:$0xff]
        %v1142 = vld [vmem:[#allocation2 + $0x38] sm:$0xff]
        %v1143 = vld [vmem:[#allocation2 + $0x40] sm:$0xff]
        %v1144 = vld [vmem:[#allocation2 + $0x48] sm:$0xff]
        %v1145 = vld [vmem:[#allocation2 + $0x50] sm:$0xff]
        %v1146 = vld [vmem:[#allocation2 + $0x58] sm:$0xff]
        %v1147 = vld [vmem:[#allocation2 + $0x60] sm:$0xff]
        %v1148 = vld [vmem:[#allocation2 + $0x68] sm:$0xff]
        %v1149 = vld [vmem:[#allocation2 + $0x70] sm:$0xff]
        %v1150 = vld [vmem:[#allocation2 + $0x78] sm:$0xff]
        %v1151 = vld [vmem:[#allocation2 + $0x80] sm:$0xff]
        %v1152 = vld [vmem:[#allocation2 + $0x88] sm:$0xff]
        %v1153 = vld [vmem:[#allocation2 + $0x90] sm:$0xff]
        %v1154 = vld [vmem:[#allocation2 + $0x98] sm:$0xff]
        %v1155 = vld [vmem:[#allocation2 + $0xa0] sm:$0xff]
        %v1156 = vld [vmem:[#allocation2 + $0xa8] sm:$0xff]
        %v1157 = vld [vmem:[#allocation2 + $0xb0] sm:$0xff]
        %v1158 = vld [vmem:[#allocation2 + $0xb8] sm:$0xff]
        %v1159 = vld [vmem:[#allocation2 + $0xc0] sm:$0xff]
        %v1160 = vld [vmem:[#allocation2 + $0xc8] sm:$0xff]
        %v1161 = vld [vmem:[#allocation2 + $0xd0] sm:$0xff]
        %v1162 = vld [vmem:[#allocation2 + $0xd8] sm:$0xff]
        %v1163 = vld [vmem:[#allocation2 + $0xe0] sm:$0xff]
        %v1164 = vld [vmem:[#allocation2 + $0xe8] sm:$0xff]
        %v1165 = vld [vmem:[#allocation2 + $0xf0] sm:$0xff]
        %v1166 = vld [vmem:[#allocation2 + $0xf8] sm:$0xff]
        %v1167 = vld [vmem:[#allocation2 + $0x100] sm:$0xff]
        %v1168 = vld [vmem:[#allocation2 + $0x108] sm:$0xff]
        %v1169 = vld [vmem:[#allocation2 + $0x110] sm:$0xff]
        %v1170 = vld [vmem:[#allocation2 + $0x118] sm:$0xff]
        %v1171 = vld [vmem:[%s2] sm:$0xf]
        %v1172 = vld [vmem:[%s2 + $0x4] sm:$0xf]
        %v1173 = vld [vmem:[%s2 + $0x8] sm:$0xf]
        %v1174 = vld [vmem:[%s2 + $0xc] sm:$0xf]
        %v1175 = vld [vmem:[%s2 + $0x10] sm:$0xf]
        %v1176 = vld [vmem:[%s2 + $0x14] sm:$0xf]
        %v1177 = vld [vmem:[%s2 + $0x18] sm:$0xf]
        %v1178 = vld [vmem:[%s2 + $0x1c] sm:$0xf]
        %v1179 = vld [vmem:[%s2 + $0x20] sm:$0xf]
        %v1180 = vld [vmem:[%s2 + $0x24] sm:$0xf]
        %v1181 = vld [vmem:[%s2 + $0x28] sm:$0xf]
        %v1182 = vld [vmem:[%s2 + $0x2c] sm:$0xf]
        %v1183 = vld [vmem:[%s2 + $0x30] sm:$0xf]
        %v1184 = vld [vmem:[%s2 + $0x34] sm:$0xf]
        %v1185 = vld [vmem:[%s2 + $0x38] sm:$0xf]
        %v1186 = vld [vmem:[%s2 + $0x3c] sm:$0xf]
        %v1187 = vld [vmem:[%s2 + $0x40] sm:$0xf]
        %v1188 = vld [vmem:[%s2 + $0x44] sm:$0xf]
        %v1189 = vld [vmem:[%s2 + $0x48] sm:$0xf]
        %v1190 = vld [vmem:[%s2 + $0x4c] sm:$0xf]
        %v1191 = vld [vmem:[%s2 + $0x50] sm:$0xf]
        %v1192 = vld [vmem:[%s2 + $0x54] sm:$0xf]
        %v1193 = vld [vmem:[%s2 + $0x58] sm:$0xf]
        %v1194 = vld [vmem:[%s2 + $0x5c] sm:$0xf]
        %s1195 = scalar_lea.vmem [#allocation2], 16
        %v1196 = vld [vmem:[%s1195] sm:$0xff]
        %v1197 = vld [vmem:[%s1195 + $0x8] sm:$0xff]
        %v1198 = vld [vmem:[%s1195 + $0x10] sm:$0xff]
        %v1199 = vld [vmem:[%s1195 + $0x18] sm:$0xff]
        %v1200 = vld [vmem:[%s1195 + $0x20] sm:$0xff]
        %v1201 = vld [vmem:[%s1195 + $0x28] sm:$0xff]
        %v1202 = vld [vmem:[%s1195 + $0x30] sm:$0xff]
        %v1203 = vld [vmem:[%s1195 + $0x38] sm:$0xff]
        %v1204 = vld [vmem:[%s1195 + $0x40] sm:$0xff]
        %v1205 = vld [vmem:[%s1195 + $0x48] sm:$0xff]
        %v1206 = vld [vmem:[%s1195 + $0x50] sm:$0xff]
        %v1207 = vld [vmem:[%s1195 + $0x58] sm:$0xff]
        %v1208 = vld [vmem:[%s1195 + $0x60] sm:$0xff]
        %v1209 = vld [vmem:[%s1195 + $0x68] sm:$0xff]
        %v1210 = vld [vmem:[%s1195 + $0x70] sm:$0xff]
        %v1211 = vld [vmem:[%s1195 + $0x78] sm:$0xff]
        %v1212 = vld [vmem:[%s1195 + $0x80] sm:$0xff]
        %v1213 = vld [vmem:[%s1195 + $0x88] sm:$0xff]
        %v1214 = vld [vmem:[%s1195 + $0x90] sm:$0xff]
        %v1215 = vld [vmem:[%s1195 + $0x98] sm:$0xff]
        %v1216 = vld [vmem:[%s1195 + $0xa0] sm:$0xff]
        %v1217 = vld [vmem:[%s1195 + $0xa8] sm:$0xff]
        %v1218 = vld [vmem:[%s1195 + $0xb0] sm:$0xff]
        %v1219 = vld [vmem:[%s1195 + $0xb8] sm:$0xff]
        %v1220 = vld [vmem:[%s1195 + $0xc0] sm:$0xff]
        %v1221 = vld [vmem:[%s1195 + $0xc8] sm:$0xff]
        %v1222 = vld [vmem:[%s1195 + $0xd0] sm:$0xff]
        %v1223 = vld [vmem:[%s1195 + $0xd8] sm:$0xff]
        %v1224 = vld [vmem:[%s1195 + $0xe0] sm:$0xff]
        %v1225 = vld [vmem:[%s1195 + $0xe8] sm:$0xff]
        %v1226 = vld [vmem:[%s1195 + $0xf0] sm:$0xff]
        %v1227 = vld [vmem:[%s1195 + $0xf8] sm:$0xff]
        %v1228 = vld [vmem:[%s1195 + $0x100] sm:$0xff]
        %v1229 = vld [vmem:[%s1195 + $0x108] sm:$0xff]
        %v1230 = vld [vmem:[%s1195 + $0x110] sm:$0xff]
        %v1231 = vld [vmem:[%s1195 + $0x118] sm:$0xff]
        %s1232 = scalar_lea.vmem %s2, 96
        %v1233 = vld [vmem:[%s1232] sm:$0xf]
        %v1234 = vld [vmem:[%s1232 + $0x4] sm:$0xf]
        %v1235 = vld [vmem:[%s1232 + $0x8] sm:$0xf]
        %v1236 = vld [vmem:[%s1232 + $0xc] sm:$0xf]
        %v1237 = vld [vmem:[%s1232 + $0x10] sm:$0xf]
        %v1238 = vld [vmem:[%s1232 + $0x14] sm:$0xf]
        %v1239 = vld [vmem:[%s1232 + $0x18] sm:$0xf]
        %v1240 = vld [vmem:[%s1232 + $0x1c] sm:$0xf]
        %v1241 = vld [vmem:[%s1232 + $0x20] sm:$0xf]
        %v1242 = vld [vmem:[%s1232 + $0x24] sm:$0xf]
        %v1243 = vld [vmem:[%s1232 + $0x28] sm:$0xf]
        %v1244 = vld [vmem:[%s1232 + $0x2c] sm:$0xf]
        %v1245 = vld [vmem:[%s1232 + $0x30] sm:$0xf]
        %v1246 = vld [vmem:[%s1232 + $0x34] sm:$0xf]
        %v1247 = vld [vmem:[%s1232 + $0x38] sm:$0xf]
        %v1248 = vld [vmem:[%s1232 + $0x3c] sm:$0xf]
        %v1249 = vld [vmem:[%s1232 + $0x40] sm:$0xf]
        %v1250 = vld [vmem:[%s1232 + $0x44] sm:$0xf]
        %v1251 = vld [vmem:[%s1232 + $0x48] sm:$0xf]
        %v1252 = vld [vmem:[%s1232 + $0x4c] sm:$0xf]
        %v1253 = vld [vmem:[%s1232 + $0x50] sm:$0xf]
        %v1254 = vld [vmem:[%s1232 + $0x54] sm:$0xf]
        %v1255 = vld [vmem:[%s1232 + $0x58] sm:$0xf]
        %v1256 = vld [vmem:[%s1232 + $0x5c] sm:$0xf]
        %v1293 = vunpack.c.l.b16 %v1196
        %v1294 = vunpack.c.h.b16 %v1196
        %v1295 = vunpack.c.l.b16 %v1197
        %v1296 = vunpack.c.h.b16 %v1197
        %v1297 = vunpack.c.l.b16 %v1198
        %v1298 = vunpack.c.h.b16 %v1198
        %v1299 = vunpack.c.l.b16 %v1199
        %v1300 = vunpack.c.h.b16 %v1199
        %v1301 = vunpack.c.l.b16 %v1200
        %v1302 = vunpack.c.h.b16 %v1200
        %v1303 = vunpack.c.l.b16 %v1201
        %v1304 = vunpack.c.h.b16 %v1201
        %v1305 = vunpack.c.l.b16 %v1202
        %v1306 = vunpack.c.h.b16 %v1202
        %v1307 = vunpack.c.l.b16 %v1203
        %v1308 = vunpack.c.h.b16 %v1203
        %v1309 = vunpack.c.l.b16 %v1204
        %v1310 = vunpack.c.h.b16 %v1204
        %v1311 = vunpack.c.l.b16 %v1205
        %v1312 = vunpack.c.h.b16 %v1205
        %v1313 = vunpack.c.l.b16 %v1206
        %v1314 = vunpack.c.h.b16 %v1206
        %v1315 = vunpack.c.l.b16 %v1207
        %v1316 = vunpack.c.h.b16 %v1207
        %v1317 = vunpack.c.l.b16 %v1208
        %v1318 = vunpack.c.h.b16 %v1208
        %v1319 = vunpack.c.l.b16 %v1209
        %v1320 = vunpack.c.h.b16 %v1209
        %v1321 = vunpack.c.l.b16 %v1210
        %v1322 = vunpack.c.h.b16 %v1210
        %v1323 = vunpack.c.l.b16 %v1211
        %v1324 = vunpack.c.h.b16 %v1211
        %v1325 = vunpack.c.l.b16 %v1212
        %v1326 = vunpack.c.h.b16 %v1212
        %v1327 = vunpack.c.l.b16 %v1213
        %v1328 = vunpack.c.h.b16 %v1213
        %v1329 = vunpack.c.l.b16 %v1214
        %v1330 = vunpack.c.h.b16 %v1214
        %v1331 = vunpack.c.l.b16 %v1215
        %v1332 = vunpack.c.h.b16 %v1215
        %v1333 = vunpack.c.l.b16 %v1216
        %v1334 = vunpack.c.h.b16 %v1216
        %v1335 = vunpack.c.l.b16 %v1217
        %v1336 = vunpack.c.h.b16 %v1217
        %v1337 = vunpack.c.l.b16 %v1218
        %v1338 = vunpack.c.h.b16 %v1218
        %v1339 = vunpack.c.l.b16 %v1219
        %v1340 = vunpack.c.h.b16 %v1219
        %v1341 = vunpack.c.l.b16 %v1220
        %v1342 = vunpack.c.h.b16 %v1220
        %v1343 = vunpack.c.l.b16 %v1221
        %v1344 = vunpack.c.h.b16 %v1221
        %v1345 = vunpack.c.l.b16 %v1222
        %v1346 = vunpack.c.h.b16 %v1222
        %v1347 = vunpack.c.l.b16 %v1223
        %v1348 = vunpack.c.h.b16 %v1223
        %v1349 = vunpack.c.l.b16 %v1224
        %v1350 = vunpack.c.h.b16 %v1224
        %v1351 = vunpack.c.l.b16 %v1225
        %v1352 = vunpack.c.h.b16 %v1225
        %v1353 = vunpack.c.l.b16 %v1226
        %v1354 = vunpack.c.h.b16 %v1226
        %v1355 = vunpack.c.l.b16 %v1227
        %v1356 = vunpack.c.h.b16 %v1227
        %v1357 = vunpack.c.l.b16 %v1228
        %v1358 = vunpack.c.h.b16 %v1228
        %v1359 = vunpack.c.l.b16 %v1229
        %v1360 = vunpack.c.h.b16 %v1229
        %v1361 = vunpack.c.l.b16 %v1230
        %v1362 = vunpack.c.h.b16 %v1230
        %v1363 = vunpack.c.l.b16 %v1231
        %v1364 = vunpack.c.h.b16 %v1231
        %v1365 = vpack.c.b16 %v1295, %v1293
        %v1366 = vpack.c.b16 %v1296, %v1294
        %v1367 = vpack.c.b16 %v1299, %v1297
        %v1368 = vpack.c.b16 %v1300, %v1298
        %v1369 = vpack.c.b16 %v1303, %v1301
        %v1370 = vpack.c.b16 %v1304, %v1302
        %v1371 = vpack.c.b16 %v1307, %v1305
        %v1372 = vpack.c.b16 %v1308, %v1306
        %v1373 = vpack.c.b16 %v1311, %v1309
        %v1374 = vpack.c.b16 %v1312, %v1310
        %v1375 = vpack.c.b16 %v1315, %v1313
        %v1376 = vpack.c.b16 %v1316, %v1314
        %v1377 = vpack.c.b16 %v1319, %v1317
        %v1378 = vpack.c.b16 %v1320, %v1318
        %v1379 = vpack.c.b16 %v1323, %v1321
        %v1380 = vpack.c.b16 %v1324, %v1322
        %v1381 = vpack.c.b16 %v1327, %v1325
        %v1382 = vpack.c.b16 %v1328, %v1326
        %v1383 = vpack.c.b16 %v1331, %v1329
        %v1384 = vpack.c.b16 %v1332, %v1330
        %v1385 = vpack.c.b16 %v1335, %v1333
        %v1386 = vpack.c.b16 %v1336, %v1334
        %v1387 = vpack.c.b16 %v1339, %v1337
        %v1388 = vpack.c.b16 %v1340, %v1338
        %v1389 = vpack.c.b16 %v1343, %v1341
        %v1390 = vpack.c.b16 %v1344, %v1342
        %v1391 = vpack.c.b16 %v1347, %v1345
        %v1392 = vpack.c.b16 %v1348, %v1346
        %v1393 = vpack.c.b16 %v1351, %v1349
        %v1394 = vpack.c.b16 %v1352, %v1350
        %v1395 = vpack.c.b16 %v1355, %v1353
        %v1396 = vpack.c.b16 %v1356, %v1354
        %v1397 = vpack.c.b16 %v1359, %v1357
        %v1398 = vpack.c.b16 %v1360, %v1358
        %v1399 = vpack.c.b16 %v1363, %v1361
        %v1400 = vpack.c.b16 %v1364, %v1362
        %v1443 = vunpack.c.l.b16 %v1233
        %v1444 = vunpack.c.l.b16 %v1234
        %v1445 = vunpack.c.l.b16 %v1235
        %v1446 = vunpack.c.l.b16 %v1236
        %v1447 = vunpack.c.l.b16 %v1237
        %v1448 = vunpack.c.l.b16 %v1238
        %v1449 = vunpack.c.l.b16 %v1239
        %v1450 = vunpack.c.l.b16 %v1240
        %v1451 = vunpack.c.l.b16 %v1241
        %v1452 = vunpack.c.l.b16 %v1242
        %v1453 = vunpack.c.l.b16 %v1243
        %v1454 = vunpack.c.l.b16 %v1244
        %v1455 = vunpack.c.l.b16 %v1245
        %v1456 = vunpack.c.l.b16 %v1246
        %v1457 = vunpack.c.l.b16 %v1247
        %v1458 = vunpack.c.l.b16 %v1248
        %v1459 = vunpack.c.l.b16 %v1249
        %v1460 = vunpack.c.l.b16 %v1250
        %v1461 = vunpack.c.l.b16 %v1251
        %v1462 = vunpack.c.l.b16 %v1252
        %v1463 = vunpack.c.l.b16 %v1253
        %v1464 = vunpack.c.l.b16 %v1254
        %v1465 = vunpack.c.l.b16 %v1255
        %v1466 = vunpack.c.l.b16 %v1256
        %v1467 = vpack.c.b16 %v1444, %v1443
        %v1468 = vpack.c.b16 %v1446, %v1445
        %v1469 = vpack.c.b16 %v1448, %v1447
        %v1470 = vpack.c.b16 %v1450, %v1449
        %v1471 = vpack.c.b16 %v1452, %v1451
        %v1472 = vpack.c.b16 %v1454, %v1453
        %v1473 = vpack.c.b16 %v1456, %v1455
        %v1474 = vpack.c.b16 %v1458, %v1457
        %v1475 = vpack.c.b16 %v1460, %v1459
        %v1476 = vpack.c.b16 %v1462, %v1461
        %v1477 = vpack.c.b16 %v1464, %v1463
        %v1478 = vpack.c.b16 %v1466, %v1465
        %v1492 = vsel %vm871, %v1366, 0
        %v1495 = vsel %vm871, %v1368, 0
        %v1498 = vsel %vm871, %v1370, 0
        %v1501 = vsel %vm871, %v1372, 0
        %v1504 = vsel %vm871, %v1374, 0
        %v1507 = vsel %vm871, %v1376, 0
        %v1510 = vsel %vm871, %v1378, 0
        %v1513 = vsel %vm871, %v1380, 0
        %v1516 = vsel %vm871, %v1382, 0
        %v1519 = vsel %vm871, %v1384, 0
        %v1522 = vsel %vm871, %v1386, 0
        %v1525 = vsel %vm871, %v1388, 0
        %v1528 = vsel %vm871, %v1390, 0
        %v1531 = vsel %vm871, %v1392, 0
        %v1534 = vsel %vm871, %v1394, 0
        %v1537 = vsel %vm871, %v1396, 0
        %v1540 = vsel %vm871, %v1398, 0
        %v1543 = vsel %vm871, %v1400, 0
        %1545 = vmatpush.bf16.msra.mxu0 %v1474
        %1546 = vmatpush.bf16.msra.mxu0 %v1473
        %1547 = vmatpush.bf16.msra.mxu0 %v1472
        %1548 = vmatpush.bf16.msra.mxu0 %v1471
        %1549 = vmatpush.bf16.msra.mxu0 %v1470
        %1550 = vmatpush.bf16.msra.mxu0 %v1469
        %1551 = vmatpush.bf16.msra.mxu0 %v1468
        %1552 = vmatpush.bf16.msra.mxu0 %v1467
        %1553 = vmatmul.bf16.gmra.mxu0 %v1365
        %v1554 = vpop.f32.mrf.mxu0
        %v1555 = vadd.f32 0.0, %v1554
        %v1556 = vpop.f32.mrf.mxu0
        %v1557 = vadd.f32 0.0, %v1556
        %1558 = vmatmul.bf16.gmra.mxu0 %v1367
        %v1559 = vpop.f32.mrf.mxu0
        %v1560 = vadd.f32 0.0, %v1559
        %v1561 = vpop.f32.mrf.mxu0
        %v1562 = vadd.f32 0.0, %v1561
        %1563 = vmatmul.bf16.gmra.mxu0 %v1369
        %v1564 = vpop.f32.mrf.mxu0
        %v1565 = vadd.f32 0.0, %v1564
        %v1566 = vpop.f32.mrf.mxu0
        %v1567 = vadd.f32 0.0, %v1566
        %1568 = vmatmul.bf16.gmra.mxu0 %v1371
        %v1569 = vpop.f32.mrf.mxu0
        %v1570 = vadd.f32 0.0, %v1569
        %v1571 = vpop.f32.mrf.mxu0
        %v1572 = vadd.f32 0.0, %v1571
        %1573 = vmatmul.bf16.gmra.mxu0 %v1373
        %v1574 = vpop.f32.mrf.mxu0
        %v1575 = vadd.f32 0.0, %v1574
        %v1576 = vpop.f32.mrf.mxu0
        %v1577 = vadd.f32 0.0, %v1576
        %1578 = vmatmul.bf16.gmra.mxu0 %v1375
        %v1579 = vpop.f32.mrf.mxu0
        %v1580 = vadd.f32 0.0, %v1579
        %v1581 = vpop.f32.mrf.mxu0
        %v1582 = vadd.f32 0.0, %v1581
        %1583 = vmatmul.bf16.gmra.mxu0 %v1377
        %v1584 = vpop.f32.mrf.mxu0
        %v1585 = vadd.f32 0.0, %v1584
        %v1586 = vpop.f32.mrf.mxu0
        %v1587 = vadd.f32 0.0, %v1586
        %1588 = vmatmul.bf16.gmra.mxu0 %v1379
        %v1589 = vpop.f32.mrf.mxu0
        %v1590 = vadd.f32 0.0, %v1589
        %v1591 = vpop.f32.mrf.mxu0
        %v1592 = vadd.f32 0.0, %v1591
        %1593 = vmatmul.bf16.gmra.mxu0 %v1381
        %v1594 = vpop.f32.mrf.mxu0
        %v1595 = vadd.f32 0.0, %v1594
        %v1596 = vpop.f32.mrf.mxu0
        %v1597 = vadd.f32 0.0, %v1596
        %1598 = vmatmul.bf16.gmra.mxu0 %v1383
        %v1599 = vpop.f32.mrf.mxu0
        %v1600 = vadd.f32 0.0, %v1599
        %v1601 = vpop.f32.mrf.mxu0
        %v1602 = vadd.f32 0.0, %v1601
        %1603 = vmatmul.bf16.gmra.mxu0 %v1385
        %v1604 = vpop.f32.mrf.mxu0
        %v1605 = vadd.f32 0.0, %v1604
        %v1606 = vpop.f32.mrf.mxu0
        %v1607 = vadd.f32 0.0, %v1606
        %1608 = vmatmul.bf16.gmra.mxu0 %v1387
        %v1609 = vpop.f32.mrf.mxu0
        %v1610 = vadd.f32 0.0, %v1609
        %v1611 = vpop.f32.mrf.mxu0
        %v1612 = vadd.f32 0.0, %v1611
        %1613 = vmatmul.bf16.gmra.mxu0 %v1389
        %v1614 = vpop.f32.mrf.mxu0
        %v1615 = vadd.f32 0.0, %v1614
        %v1616 = vpop.f32.mrf.mxu0
        %v1617 = vadd.f32 0.0, %v1616
        %1618 = vmatmul.bf16.gmra.mxu0 %v1391
        %v1619 = vpop.f32.mrf.mxu0
        %v1620 = vadd.f32 0.0, %v1619
        %v1621 = vpop.f32.mrf.mxu0
        %v1622 = vadd.f32 0.0, %v1621
        %1623 = vmatmul.bf16.gmra.mxu0 %v1393
        %v1624 = vpop.f32.mrf.mxu0
        %v1625 = vadd.f32 0.0, %v1624
        %v1626 = vpop.f32.mrf.mxu0
        %v1627 = vadd.f32 0.0, %v1626
        %1628 = vmatmul.bf16.gmra.mxu0 %v1395
        %v1629 = vpop.f32.mrf.mxu0
        %v1630 = vadd.f32 0.0, %v1629
        %v1631 = vpop.f32.mrf.mxu0
        %v1632 = vadd.f32 0.0, %v1631
        %1633 = vmatmul.bf16.gmra.mxu0 %v1397
        %v1634 = vpop.f32.mrf.mxu0
        %v1635 = vadd.f32 0.0, %v1634
        %v1636 = vpop.f32.mrf.mxu0
        %v1637 = vadd.f32 0.0, %v1636
        %1638 = vmatmul.bf16.gmra.mxu0 %v1399
        %v1639 = vpop.f32.mrf.mxu0
        %v1640 = vadd.f32 0.0, %v1639
        %v1641 = vpop.f32.mrf.mxu0
        %v1642 = vadd.f32 0.0, %v1641
        %1643 = vdwg.mxu0
        %1644 = vmatpush.bf16.msra.mxu0 0
        %1645 = vmatpush.bf16.msra.mxu0 0
        %1646 = vmatpush.bf16.msra.mxu0 0
        %1647 = vmatpush.bf16.msra.mxu0 0
        %1648 = vmatpush.bf16.msra.mxu0 %v1478
        %1649 = vmatpush.bf16.msra.mxu0 %v1477
        %1650 = vmatpush.bf16.msra.mxu0 %v1476
        %1651 = vmatpush.bf16.msra.mxu0 %v1475
        %1652 = vmatmul.bf16.gmra.mxu0 %v1492
        %v1653 = vpop.f32.mrf.mxu0
        %v1654 = vadd.f32 %v1555, %v1653
        %v1655 = vpop.f32.mrf.mxu0
        %v1656 = vadd.f32 %v1557, %v1655
        %1657 = vmatmul.bf16.gmra.mxu0 %v1495
        %v1658 = vpop.f32.mrf.mxu0
        %v1659 = vadd.f32 %v1560, %v1658
        %v1660 = vpop.f32.mrf.mxu0
        %v1661 = vadd.f32 %v1562, %v1660
        %1662 = vmatmul.bf16.gmra.mxu0 %v1498
        %v1663 = vpop.f32.mrf.mxu0
        %v1664 = vadd.f32 %v1565, %v1663
        %v1665 = vpop.f32.mrf.mxu0
        %v1666 = vadd.f32 %v1567, %v1665
        %1667 = vmatmul.bf16.gmra.mxu0 %v1501
        %v1668 = vpop.f32.mrf.mxu0
        %v1669 = vadd.f32 %v1570, %v1668
        %v1670 = vpop.f32.mrf.mxu0
        %v1671 = vadd.f32 %v1572, %v1670
        %1672 = vmatmul.bf16.gmra.mxu0 %v1504
        %v1673 = vpop.f32.mrf.mxu0
        %v1674 = vadd.f32 %v1575, %v1673
        %v1675 = vpop.f32.mrf.mxu0
        %v1676 = vadd.f32 %v1577, %v1675
        %1677 = vmatmul.bf16.gmra.mxu0 %v1507
        %v1678 = vpop.f32.mrf.mxu0
        %v1679 = vadd.f32 %v1580, %v1678
        %v1680 = vpop.f32.mrf.mxu0
        %v1681 = vadd.f32 %v1582, %v1680
        %1682 = vmatmul.bf16.gmra.mxu0 %v1510
        %v1683 = vpop.f32.mrf.mxu0
        %v1684 = vadd.f32 %v1585, %v1683
        %v1685 = vpop.f32.mrf.mxu0
        %v1686 = vadd.f32 %v1587, %v1685
        %1687 = vmatmul.bf16.gmra.mxu0 %v1513
        %v1688 = vpop.f32.mrf.mxu0
        %v1689 = vadd.f32 %v1590, %v1688
        %v1690 = vpop.f32.mrf.mxu0
        %v1691 = vadd.f32 %v1592, %v1690
        %1692 = vmatmul.bf16.gmra.mxu0 %v1516
        %v1693 = vpop.f32.mrf.mxu0
        %v1694 = vadd.f32 %v1595, %v1693
        %v1695 = vpop.f32.mrf.mxu0
        %v1696 = vadd.f32 %v1597, %v1695
        %1697 = vmatmul.bf16.gmra.mxu0 %v1519
        %v1698 = vpop.f32.mrf.mxu0
        %v1699 = vadd.f32 %v1600, %v1698
        %v1700 = vpop.f32.mrf.mxu0
        %v1701 = vadd.f32 %v1602, %v1700
        %1702 = vmatmul.bf16.gmra.mxu0 %v1522
        %v1703 = vpop.f32.mrf.mxu0
        %v1704 = vadd.f32 %v1605, %v1703
        %v1705 = vpop.f32.mrf.mxu0
        %v1706 = vadd.f32 %v1607, %v1705
        %1707 = vmatmul.bf16.gmra.mxu0 %v1525
        %v1708 = vpop.f32.mrf.mxu0
        %v1709 = vadd.f32 %v1610, %v1708
        %v1710 = vpop.f32.mrf.mxu0
        %v1711 = vadd.f32 %v1612, %v1710
        %1712 = vmatmul.bf16.gmra.mxu0 %v1528
        %v1713 = vpop.f32.mrf.mxu0
        %v1714 = vadd.f32 %v1615, %v1713
        %v1715 = vpop.f32.mrf.mxu0
        %v1716 = vadd.f32 %v1617, %v1715
        %1717 = vmatmul.bf16.gmra.mxu0 %v1531
        %v1718 = vpop.f32.mrf.mxu0
        %v1719 = vadd.f32 %v1620, %v1718
        %v1720 = vpop.f32.mrf.mxu0
        %v1721 = vadd.f32 %v1622, %v1720
        %1722 = vmatmul.bf16.gmra.mxu0 %v1534
        %v1723 = vpop.f32.mrf.mxu0
        %v1724 = vadd.f32 %v1625, %v1723
        %v1725 = vpop.f32.mrf.mxu0
        %v1726 = vadd.f32 %v1627, %v1725
        %1727 = vmatmul.bf16.gmra.mxu0 %v1537
        %v1728 = vpop.f32.mrf.mxu0
        %v1729 = vadd.f32 %v1630, %v1728
        %v1730 = vpop.f32.mrf.mxu0
        %v1731 = vadd.f32 %v1632, %v1730
        %1732 = vmatmul.bf16.gmra.mxu0 %v1540
        %v1733 = vpop.f32.mrf.mxu0
        %v1734 = vadd.f32 %v1635, %v1733
        %v1735 = vpop.f32.mrf.mxu0
        %v1736 = vadd.f32 %v1637, %v1735
        %1737 = vmatmul.bf16.gmra.mxu0 %v1543
        %v1738 = vpop.f32.mrf.mxu0
        %v1739 = vadd.f32 %v1640, %v1738
        %v1740 = vpop.f32.mrf.mxu0
        %v1741 = vadd.f32 %v1642, %v1740
        %1742 = vdwg.mxu0
        %v1779 = vunpack.c.l.b16 %v1135
        %v1780 = vunpack.c.h.b16 %v1135
        %v1781 = vunpack.c.l.b16 %v1136
        %v1782 = vunpack.c.h.b16 %v1136
        %v1783 = vunpack.c.l.b16 %v1137
        %v1784 = vunpack.c.h.b16 %v1137
        %v1785 = vunpack.c.l.b16 %v1138
        %v1786 = vunpack.c.h.b16 %v1138
        %v1787 = vunpack.c.l.b16 %v1139
        %v1788 = vunpack.c.h.b16 %v1139
        %v1789 = vunpack.c.l.b16 %v1140
        %v1790 = vunpack.c.h.b16 %v1140
        %v1791 = vunpack.c.l.b16 %v1141
        %v1792 = vunpack.c.h.b16 %v1141
        %v1793 = vunpack.c.l.b16 %v1142
        %v1794 = vunpack.c.h.b16 %v1142
        %v1795 = vunpack.c.l.b16 %v1143
        %v1796 = vunpack.c.h.b16 %v1143
        %v1797 = vunpack.c.l.b16 %v1144
        %v1798 = vunpack.c.h.b16 %v1144
        %v1799 = vunpack.c.l.b16 %v1145
        %v1800 = vunpack.c.h.b16 %v1145
        %v1801 = vunpack.c.l.b16 %v1146
        %v1802 = vunpack.c.h.b16 %v1146
        %v1803 = vunpack.c.l.b16 %v1147
        %v1804 = vunpack.c.h.b16 %v1147
        %v1805 = vunpack.c.l.b16 %v1148
        %v1806 = vunpack.c.h.b16 %v1148
        %v1807 = vunpack.c.l.b16 %v1149
        %v1808 = vunpack.c.h.b16 %v1149
        %v1809 = vunpack.c.l.b16 %v1150
        %v1810 = vunpack.c.h.b16 %v1150
        %v1811 = vunpack.c.l.b16 %v1151
        %v1812 = vunpack.c.h.b16 %v1151
        %v1813 = vunpack.c.l.b16 %v1152
        %v1814 = vunpack.c.h.b16 %v1152
        %v1815 = vunpack.c.l.b16 %v1153
        %v1816 = vunpack.c.h.b16 %v1153
        %v1817 = vunpack.c.l.b16 %v1154
        %v1818 = vunpack.c.h.b16 %v1154
        %v1819 = vunpack.c.l.b16 %v1155
        %v1820 = vunpack.c.h.b16 %v1155
        %v1821 = vunpack.c.l.b16 %v1156
        %v1822 = vunpack.c.h.b16 %v1156
        %v1823 = vunpack.c.l.b16 %v1157
        %v1824 = vunpack.c.h.b16 %v1157
        %v1825 = vunpack.c.l.b16 %v1158
        %v1826 = vunpack.c.h.b16 %v1158
        %v1827 = vunpack.c.l.b16 %v1159
        %v1828 = vunpack.c.h.b16 %v1159
        %v1829 = vunpack.c.l.b16 %v1160
        %v1830 = vunpack.c.h.b16 %v1160
        %v1831 = vunpack.c.l.b16 %v1161
        %v1832 = vunpack.c.h.b16 %v1161
        %v1833 = vunpack.c.l.b16 %v1162
        %v1834 = vunpack.c.h.b16 %v1162
        %v1835 = vunpack.c.l.b16 %v1163
        %v1836 = vunpack.c.h.b16 %v1163
        %v1837 = vunpack.c.l.b16 %v1164
        %v1838 = vunpack.c.h.b16 %v1164
        %v1839 = vunpack.c.l.b16 %v1165
        %v1840 = vunpack.c.h.b16 %v1165
        %v1841 = vunpack.c.l.b16 %v1166
        %v1842 = vunpack.c.h.b16 %v1166
        %v1843 = vunpack.c.l.b16 %v1167
        %v1844 = vunpack.c.h.b16 %v1167
        %v1845 = vunpack.c.l.b16 %v1168
        %v1846 = vunpack.c.h.b16 %v1168
        %v1847 = vunpack.c.l.b16 %v1169
        %v1848 = vunpack.c.h.b16 %v1169
        %v1849 = vunpack.c.l.b16 %v1170
        %v1850 = vunpack.c.h.b16 %v1170
        %v1851 = vpack.c.b16 %v1781, %v1779
        %v1852 = vpack.c.b16 %v1782, %v1780
        %v1853 = vpack.c.b16 %v1785, %v1783
        %v1854 = vpack.c.b16 %v1786, %v1784
        %v1855 = vpack.c.b16 %v1789, %v1787
        %v1856 = vpack.c.b16 %v1790, %v1788
        %v1857 = vpack.c.b16 %v1793, %v1791
        %v1858 = vpack.c.b16 %v1794, %v1792
        %v1859 = vpack.c.b16 %v1797, %v1795
        %v1860 = vpack.c.b16 %v1798, %v1796
        %v1861 = vpack.c.b16 %v1801, %v1799
        %v1862 = vpack.c.b16 %v1802, %v1800
        %v1863 = vpack.c.b16 %v1805, %v1803
        %v1864 = vpack.c.b16 %v1806, %v1804
        %v1865 = vpack.c.b16 %v1809, %v1807
        %v1866 = vpack.c.b16 %v1810, %v1808
        %v1867 = vpack.c.b16 %v1813, %v1811
        %v1868 = vpack.c.b16 %v1814, %v1812
        %v1869 = vpack.c.b16 %v1817, %v1815
        %v1870 = vpack.c.b16 %v1818, %v1816
        %v1871 = vpack.c.b16 %v1821, %v1819
        %v1872 = vpack.c.b16 %v1822, %v1820
        %v1873 = vpack.c.b16 %v1825, %v1823
        %v1874 = vpack.c.b16 %v1826, %v1824
        %v1875 = vpack.c.b16 %v1829, %v1827
        %v1876 = vpack.c.b16 %v1830, %v1828
        %v1877 = vpack.c.b16 %v1833, %v1831
        %v1878 = vpack.c.b16 %v1834, %v1832
        %v1879 = vpack.c.b16 %v1837, %v1835
        %v1880 = vpack.c.b16 %v1838, %v1836
        %v1881 = vpack.c.b16 %v1841, %v1839
        %v1882 = vpack.c.b16 %v1842, %v1840
        %v1883 = vpack.c.b16 %v1845, %v1843
        %v1884 = vpack.c.b16 %v1846, %v1844
        %v1885 = vpack.c.b16 %v1849, %v1847
        %v1886 = vpack.c.b16 %v1850, %v1848
        %v1929 = vunpack.c.l.b16 %v1171
        %v1930 = vunpack.c.l.b16 %v1172
        %v1931 = vunpack.c.l.b16 %v1173
        %v1932 = vunpack.c.l.b16 %v1174
        %v1933 = vunpack.c.l.b16 %v1175
        %v1934 = vunpack.c.l.b16 %v1176
        %v1935 = vunpack.c.l.b16 %v1177
        %v1936 = vunpack.c.l.b16 %v1178
        %v1937 = vunpack.c.l.b16 %v1179
        %v1938 = vunpack.c.l.b16 %v1180
        %v1939 = vunpack.c.l.b16 %v1181
        %v1940 = vunpack.c.l.b16 %v1182
        %v1941 = vunpack.c.l.b16 %v1183
        %v1942 = vunpack.c.l.b16 %v1184
        %v1943 = vunpack.c.l.b16 %v1185
        %v1944 = vunpack.c.l.b16 %v1186
        %v1945 = vunpack.c.l.b16 %v1187
        %v1946 = vunpack.c.l.b16 %v1188
        %v1947 = vunpack.c.l.b16 %v1189
        %v1948 = vunpack.c.l.b16 %v1190
        %v1949 = vunpack.c.l.b16 %v1191
        %v1950 = vunpack.c.l.b16 %v1192
        %v1951 = vunpack.c.l.b16 %v1193
        %v1952 = vunpack.c.l.b16 %v1194
        %v1953 = vpack.c.b16 %v1930, %v1929
        %v1954 = vpack.c.b16 %v1932, %v1931
        %v1955 = vpack.c.b16 %v1934, %v1933
        %v1956 = vpack.c.b16 %v1936, %v1935
        %v1957 = vpack.c.b16 %v1938, %v1937
        %v1958 = vpack.c.b16 %v1940, %v1939
        %v1959 = vpack.c.b16 %v1942, %v1941
        %v1960 = vpack.c.b16 %v1944, %v1943
        %v1961 = vpack.c.b16 %v1946, %v1945
        %v1962 = vpack.c.b16 %v1948, %v1947
        %v1963 = vpack.c.b16 %v1950, %v1949
        %v1964 = vpack.c.b16 %v1952, %v1951
        %v1978 = vsel %vm871, %v1852, 0
        %v1981 = vsel %vm871, %v1854, 0
        %v1984 = vsel %vm871, %v1856, 0
        %v1987 = vsel %vm871, %v1858, 0
        %v1990 = vsel %vm871, %v1860, 0
        %v1993 = vsel %vm871, %v1862, 0
        %v1996 = vsel %vm871, %v1864, 0
        %v1999 = vsel %vm871, %v1866, 0
        %v2002 = vsel %vm871, %v1868, 0
        %v2005 = vsel %vm871, %v1870, 0
        %v2008 = vsel %vm871, %v1872, 0
        %v2011 = vsel %vm871, %v1874, 0
        %v2014 = vsel %vm871, %v1876, 0
        %v2017 = vsel %vm871, %v1878, 0
        %v2020 = vsel %vm871, %v1880, 0
        %v2023 = vsel %vm871, %v1882, 0
        %v2026 = vsel %vm871, %v1884, 0
        %v2029 = vsel %vm871, %v1886, 0
        %2031 = vmatpush.bf16.msra.mxu0 %v1960
        %2032 = vmatpush.bf16.msra.mxu0 %v1959
        %2033 = vmatpush.bf16.msra.mxu0 %v1958
        %2034 = vmatpush.bf16.msra.mxu0 %v1957
        %2035 = vmatpush.bf16.msra.mxu0 %v1956
        %2036 = vmatpush.bf16.msra.mxu0 %v1955
        %2037 = vmatpush.bf16.msra.mxu0 %v1954
        %2038 = vmatpush.bf16.msra.mxu0 %v1953
        %2039 = vmatmul.bf16.gmra.mxu0 %v1851
        %v2040 = vpop.f32.mrf.mxu0
        %v2041 = vadd.f32 %v1654, %v2040
        %v2042 = vpop.f32.mrf.mxu0
        %v2043 = vadd.f32 %v1656, %v2042
        %2044 = vmatmul.bf16.gmra.mxu0 %v1853
        %v2045 = vpop.f32.mrf.mxu0
        %v2046 = vadd.f32 %v1659, %v2045
        %v2047 = vpop.f32.mrf.mxu0
        %v2048 = vadd.f32 %v1661, %v2047
        %2049 = vmatmul.bf16.gmra.mxu0 %v1855
        %v2050 = vpop.f32.mrf.mxu0
        %v2051 = vadd.f32 %v1664, %v2050
        %v2052 = vpop.f32.mrf.mxu0
        %v2053 = vadd.f32 %v1666, %v2052
        %2054 = vmatmul.bf16.gmra.mxu0 %v1857
        %v2055 = vpop.f32.mrf.mxu0
        %v2056 = vadd.f32 %v1669, %v2055
        %v2057 = vpop.f32.mrf.mxu0
        %v2058 = vadd.f32 %v1671, %v2057
        %2059 = vmatmul.bf16.gmra.mxu0 %v1859
        %v2060 = vpop.f32.mrf.mxu0
        %v2061 = vadd.f32 %v1674, %v2060
        %v2062 = vpop.f32.mrf.mxu0
        %v2063 = vadd.f32 %v1676, %v2062
        %2064 = vmatmul.bf16.gmra.mxu0 %v1861
        %v2065 = vpop.f32.mrf.mxu0
        %v2066 = vadd.f32 %v1679, %v2065
        %v2067 = vpop.f32.mrf.mxu0
        %v2068 = vadd.f32 %v1681, %v2067
        %2069 = vmatmul.bf16.gmra.mxu0 %v1863
        %v2070 = vpop.f32.mrf.mxu0
        %v2071 = vadd.f32 %v1684, %v2070
        %v2072 = vpop.f32.mrf.mxu0
        %v2073 = vadd.f32 %v1686, %v2072
        %2074 = vmatmul.bf16.gmra.mxu0 %v1865
        %v2075 = vpop.f32.mrf.mxu0
        %v2076 = vadd.f32 %v1689, %v2075
        %v2077 = vpop.f32.mrf.mxu0
        %v2078 = vadd.f32 %v1691, %v2077
        %2079 = vmatmul.bf16.gmra.mxu0 %v1867
        %v2080 = vpop.f32.mrf.mxu0
        %v2081 = vadd.f32 %v1694, %v2080
        %v2082 = vpop.f32.mrf.mxu0
        %v2083 = vadd.f32 %v1696, %v2082
        %2084 = vmatmul.bf16.gmra.mxu0 %v1869
        %v2085 = vpop.f32.mrf.mxu0
        %v2086 = vadd.f32 %v1699, %v2085
        %v2087 = vpop.f32.mrf.mxu0
        %v2088 = vadd.f32 %v1701, %v2087
        %2089 = vmatmul.bf16.gmra.mxu0 %v1871
        %v2090 = vpop.f32.mrf.mxu0
        %v2091 = vadd.f32 %v1704, %v2090
        %v2092 = vpop.f32.mrf.mxu0
        %v2093 = vadd.f32 %v1706, %v2092
        %2094 = vmatmul.bf16.gmra.mxu0 %v1873
        %v2095 = vpop.f32.mrf.mxu0
        %v2096 = vadd.f32 %v1709, %v2095
        %v2097 = vpop.f32.mrf.mxu0
        %v2098 = vadd.f32 %v1711, %v2097
        %2099 = vmatmul.bf16.gmra.mxu0 %v1875
        %v2100 = vpop.f32.mrf.mxu0
        %v2101 = vadd.f32 %v1714, %v2100
        %v2102 = vpop.f32.mrf.mxu0
        %v2103 = vadd.f32 %v1716, %v2102
        %2104 = vmatmul.bf16.gmra.mxu0 %v1877
        %v2105 = vpop.f32.mrf.mxu0
        %v2106 = vadd.f32 %v1719, %v2105
        %v2107 = vpop.f32.mrf.mxu0
        %v2108 = vadd.f32 %v1721, %v2107
        %2109 = vmatmul.bf16.gmra.mxu0 %v1879
        %v2110 = vpop.f32.mrf.mxu0
        %v2111 = vadd.f32 %v1724, %v2110
        %v2112 = vpop.f32.mrf.mxu0
        %v2113 = vadd.f32 %v1726, %v2112
        %2114 = vmatmul.bf16.gmra.mxu0 %v1881
        %v2115 = vpop.f32.mrf.mxu0
        %v2116 = vadd.f32 %v1729, %v2115
        %v2117 = vpop.f32.mrf.mxu0
        %v2118 = vadd.f32 %v1731, %v2117
        %2119 = vmatmul.bf16.gmra.mxu0 %v1883
        %v2120 = vpop.f32.mrf.mxu0
        %v2121 = vadd.f32 %v1734, %v2120
        %v2122 = vpop.f32.mrf.mxu0
        %v2123 = vadd.f32 %v1736, %v2122
        %2124 = vmatmul.bf16.gmra.mxu0 %v1885
        %v2125 = vpop.f32.mrf.mxu0
        %v2126 = vadd.f32 %v1739, %v2125
        %v2127 = vpop.f32.mrf.mxu0
        %v2128 = vadd.f32 %v1741, %v2127
        %2129 = vdwg.mxu0
        %2130 = vmatpush.bf16.msra.mxu0 0
        %2131 = vmatpush.bf16.msra.mxu0 0
        %2132 = vmatpush.bf16.msra.mxu0 0
        %2133 = vmatpush.bf16.msra.mxu0 0
        %2134 = vmatpush.bf16.msra.mxu0 %v1964
        %2135 = vmatpush.bf16.msra.mxu0 %v1963
        %2136 = vmatpush.bf16.msra.mxu0 %v1962
        %2137 = vmatpush.bf16.msra.mxu0 %v1961
        %2138 = vmatmul.bf16.gmra.mxu0 %v1978
        %v2139 = vpop.f32.mrf.mxu0
        %v2140 = vadd.f32 %v2041, %v2139
        %v2141 = vpop.f32.mrf.mxu0
        %v2142 = vadd.f32 %v2043, %v2141
        %2143 = vmatmul.bf16.gmra.mxu0 %v1981
        %v2144 = vpop.f32.mrf.mxu0
        %v2145 = vadd.f32 %v2046, %v2144
        %v2146 = vpop.f32.mrf.mxu0
        %v2147 = vadd.f32 %v2048, %v2146
        %2148 = vmatmul.bf16.gmra.mxu0 %v1984
        %v2149 = vpop.f32.mrf.mxu0
        %v2150 = vadd.f32 %v2051, %v2149
        %v2151 = vpop.f32.mrf.mxu0
        %v2152 = vadd.f32 %v2053, %v2151
        %2153 = vmatmul.bf16.gmra.mxu0 %v1987
        %v2154 = vpop.f32.mrf.mxu0
        %v2155 = vadd.f32 %v2056, %v2154
        %v2156 = vpop.f32.mrf.mxu0
        %v2157 = vadd.f32 %v2058, %v2156
        %2158 = vmatmul.bf16.gmra.mxu0 %v1990
        %v2159 = vpop.f32.mrf.mxu0
        %v2160 = vadd.f32 %v2061, %v2159
        %v2161 = vpop.f32.mrf.mxu0
        %v2162 = vadd.f32 %v2063, %v2161
        %2163 = vmatmul.bf16.gmra.mxu0 %v1993
        %v2164 = vpop.f32.mrf.mxu0
        %v2165 = vadd.f32 %v2066, %v2164
        %v2166 = vpop.f32.mrf.mxu0
        %v2167 = vadd.f32 %v2068, %v2166
        %2168 = vmatmul.bf16.gmra.mxu0 %v1996
        %v2169 = vpop.f32.mrf.mxu0
        %v2170 = vadd.f32 %v2071, %v2169
        %v2171 = vpop.f32.mrf.mxu0
        %v2172 = vadd.f32 %v2073, %v2171
        %2173 = vmatmul.bf16.gmra.mxu0 %v1999
        %v2174 = vpop.f32.mrf.mxu0
        %v2175 = vadd.f32 %v2076, %v2174
        %v2176 = vpop.f32.mrf.mxu0
        %v2177 = vadd.f32 %v2078, %v2176
        %2178 = vmatmul.bf16.gmra.mxu0 %v2002
        %v2179 = vpop.f32.mrf.mxu0
        %v2180 = vadd.f32 %v2081, %v2179
        %v2181 = vpop.f32.mrf.mxu0
        %v2182 = vadd.f32 %v2083, %v2181
        %2183 = vmatmul.bf16.gmra.mxu0 %v2005
        %v2184 = vpop.f32.mrf.mxu0
        %v2185 = vadd.f32 %v2086, %v2184
        %v2186 = vpop.f32.mrf.mxu0
        %v2187 = vadd.f32 %v2088, %v2186
        %2188 = vmatmul.bf16.gmra.mxu0 %v2008
        %v2189 = vpop.f32.mrf.mxu0
        %v2190 = vadd.f32 %v2091, %v2189
        %v2191 = vpop.f32.mrf.mxu0
        %v2192 = vadd.f32 %v2093, %v2191
        %2193 = vmatmul.bf16.gmra.mxu0 %v2011
        %v2194 = vpop.f32.mrf.mxu0
        %v2195 = vadd.f32 %v2096, %v2194
        %v2196 = vpop.f32.mrf.mxu0
        %v2197 = vadd.f32 %v2098, %v2196
        %2198 = vmatmul.bf16.gmra.mxu0 %v2014
        %v2199 = vpop.f32.mrf.mxu0
        %v2200 = vadd.f32 %v2101, %v2199
        %v2201 = vpop.f32.mrf.mxu0
        %v2202 = vadd.f32 %v2103, %v2201
        %2203 = vmatmul.bf16.gmra.mxu0 %v2017
        %v2204 = vpop.f32.mrf.mxu0
        %v2205 = vadd.f32 %v2106, %v2204
        %v2206 = vpop.f32.mrf.mxu0
        %v2207 = vadd.f32 %v2108, %v2206
        %2208 = vmatmul.bf16.gmra.mxu0 %v2020
        %v2209 = vpop.f32.mrf.mxu0
        %v2210 = vadd.f32 %v2111, %v2209
        %v2211 = vpop.f32.mrf.mxu0
        %v2212 = vadd.f32 %v2113, %v2211
        %2213 = vmatmul.bf16.gmra.mxu0 %v2023
        %v2214 = vpop.f32.mrf.mxu0
        %v2215 = vadd.f32 %v2116, %v2214
        %v2216 = vpop.f32.mrf.mxu0
        %v2217 = vadd.f32 %v2118, %v2216
        %2218 = vmatmul.bf16.gmra.mxu0 %v2026
        %v2219 = vpop.f32.mrf.mxu0
        %v2220 = vadd.f32 %v2121, %v2219
        %v2221 = vpop.f32.mrf.mxu0
        %v2222 = vadd.f32 %v2123, %v2221
        %2223 = vmatmul.bf16.gmra.mxu0 %v2029
        %v2224 = vpop.f32.mrf.mxu0
        %v2225 = vadd.f32 %v2126, %v2224
        %v2226 = vpop.f32.mrf.mxu0
        %v2227 = vadd.f32 %v2128, %v2226
        %2228 = vdwg.mxu0
        %s2229 = scalar_lea.vmem [#allocation2], 32
        %v2230 = vld [vmem:[%s2229] sm:$0xff]
        %v2231 = vld [vmem:[%s2229 + $0x8] sm:$0xff]
        %v2232 = vld [vmem:[%s2229 + $0x10] sm:$0xff]
        %v2233 = vld [vmem:[%s2229 + $0x18] sm:$0xff]
        %v2234 = vld [vmem:[%s2229 + $0x20] sm:$0xff]
        %v2235 = vld [vmem:[%s2229 + $0x28] sm:$0xff]
        %v2236 = vld [vmem:[%s2229 + $0x30] sm:$0xff]
        %v2237 = vld [vmem:[%s2229 + $0x38] sm:$0xff]
        %v2238 = vld [vmem:[%s2229 + $0x40] sm:$0xff]
        %v2239 = vld [vmem:[%s2229 + $0x48] sm:$0xff]
        %v2240 = vld [vmem:[%s2229 + $0x50] sm:$0xff]
        %v2241 = vld [vmem:[%s2229 + $0x58] sm:$0xff]
        %v2242 = vld [vmem:[%s2229 + $0x60] sm:$0xff]
        %v2243 = vld [vmem:[%s2229 + $0x68] sm:$0xff]
        %v2244 = vld [vmem:[%s2229 + $0x70] sm:$0xff]
        %v2245 = vld [vmem:[%s2229 + $0x78] sm:$0xff]
        %v2246 = vld [vmem:[%s2229 + $0x80] sm:$0xff]
        %v2247 = vld [vmem:[%s2229 + $0x88] sm:$0xff]
        %v2248 = vld [vmem:[%s2229 + $0x90] sm:$0xff]
        %v2249 = vld [vmem:[%s2229 + $0x98] sm:$0xff]
        %v2250 = vld [vmem:[%s2229 + $0xa0] sm:$0xff]
        %v2251 = vld [vmem:[%s2229 + $0xa8] sm:$0xff]
        %v2252 = vld [vmem:[%s2229 + $0xb0] sm:$0xff]
        %v2253 = vld [vmem:[%s2229 + $0xb8] sm:$0xff]
        %v2254 = vld [vmem:[%s2229 + $0xc0] sm:$0xff]
        %v2255 = vld [vmem:[%s2229 + $0xc8] sm:$0xff]
        %v2256 = vld [vmem:[%s2229 + $0xd0] sm:$0xff]
        %v2257 = vld [vmem:[%s2229 + $0xd8] sm:$0xff]
        %v2258 = vld [vmem:[%s2229 + $0xe0] sm:$0xff]
        %v2259 = vld [vmem:[%s2229 + $0xe8] sm:$0xff]
        %v2260 = vld [vmem:[%s2229 + $0xf0] sm:$0xff]
        %v2261 = vld [vmem:[%s2229 + $0xf8] sm:$0xff]
        %v2262 = vld [vmem:[%s2229 + $0x100] sm:$0xff]
        %v2263 = vld [vmem:[%s2229 + $0x108] sm:$0xff]
        %v2264 = vld [vmem:[%s2229 + $0x110] sm:$0xff]
        %v2265 = vld [vmem:[%s2229 + $0x118] sm:$0xff]
        %s2266 = scalar_lea.vmem %s2, 192
        %v2267 = vld [vmem:[%s2266] sm:$0xf]
        %v2268 = vld [vmem:[%s2266 + $0x4] sm:$0xf]
        %v2269 = vld [vmem:[%s2266 + $0x8] sm:$0xf]
        %v2270 = vld [vmem:[%s2266 + $0xc] sm:$0xf]
        %v2271 = vld [vmem:[%s2266 + $0x10] sm:$0xf]
        %v2272 = vld [vmem:[%s2266 + $0x14] sm:$0xf]
        %v2273 = vld [vmem:[%s2266 + $0x18] sm:$0xf]
        %v2274 = vld [vmem:[%s2266 + $0x1c] sm:$0xf]
        %v2275 = vld [vmem:[%s2266 + $0x20] sm:$0xf]
        %v2276 = vld [vmem:[%s2266 + $0x24] sm:$0xf]
        %v2277 = vld [vmem:[%s2266 + $0x28] sm:$0xf]
        %v2278 = vld [vmem:[%s2266 + $0x2c] sm:$0xf]
        %v2279 = vld [vmem:[%s2266 + $0x30] sm:$0xf]
        %v2280 = vld [vmem:[%s2266 + $0x34] sm:$0xf]
        %v2281 = vld [vmem:[%s2266 + $0x38] sm:$0xf]
        %v2282 = vld [vmem:[%s2266 + $0x3c] sm:$0xf]
        %v2283 = vld [vmem:[%s2266 + $0x40] sm:$0xf]
        %v2284 = vld [vmem:[%s2266 + $0x44] sm:$0xf]
        %v2285 = vld [vmem:[%s2266 + $0x48] sm:$0xf]
        %v2286 = vld [vmem:[%s2266 + $0x4c] sm:$0xf]
        %v2287 = vld [vmem:[%s2266 + $0x50] sm:$0xf]
        %v2288 = vld [vmem:[%s2266 + $0x54] sm:$0xf]
        %v2289 = vld [vmem:[%s2266 + $0x58] sm:$0xf]
        %v2290 = vld [vmem:[%s2266 + $0x5c] sm:$0xf]
        %v2327 = vunpack.c.l.b16 %v2230
        %v2328 = vunpack.c.h.b16 %v2230
        %v2329 = vunpack.c.l.b16 %v2231
        %v2330 = vunpack.c.h.b16 %v2231
        %v2331 = vunpack.c.l.b16 %v2232
        %v2332 = vunpack.c.h.b16 %v2232
        %v2333 = vunpack.c.l.b16 %v2233
        %v2334 = vunpack.c.h.b16 %v2233
        %v2335 = vunpack.c.l.b16 %v2234
        %v2336 = vunpack.c.h.b16 %v2234
        %v2337 = vunpack.c.l.b16 %v2235
        %v2338 = vunpack.c.h.b16 %v2235
        %v2339 = vunpack.c.l.b16 %v2236
        %v2340 = vunpack.c.h.b16 %v2236
        %v2341 = vunpack.c.l.b16 %v2237
        %v2342 = vunpack.c.h.b16 %v2237
        %v2343 = vunpack.c.l.b16 %v2238
        %v2344 = vunpack.c.h.b16 %v2238
        %v2345 = vunpack.c.l.b16 %v2239
        %v2346 = vunpack.c.h.b16 %v2239
        %v2347 = vunpack.c.l.b16 %v2240
        %v2348 = vunpack.c.h.b16 %v2240
        %v2349 = vunpack.c.l.b16 %v2241
        %v2350 = vunpack.c.h.b16 %v2241
        %v2351 = vunpack.c.l.b16 %v2242
        %v2352 = vunpack.c.h.b16 %v2242
        %v2353 = vunpack.c.l.b16 %v2243
        %v2354 = vunpack.c.h.b16 %v2243
        %v2355 = vunpack.c.l.b16 %v2244
        %v2356 = vunpack.c.h.b16 %v2244
        %v2357 = vunpack.c.l.b16 %v2245
        %v2358 = vunpack.c.h.b16 %v2245
        %v2359 = vunpack.c.l.b16 %v2246
        %v2360 = vunpack.c.h.b16 %v2246
        %v2361 = vunpack.c.l.b16 %v2247
        %v2362 = vunpack.c.h.b16 %v2247
        %v2363 = vunpack.c.l.b16 %v2248
        %v2364 = vunpack.c.h.b16 %v2248
        %v2365 = vunpack.c.l.b16 %v2249
        %v2366 = vunpack.c.h.b16 %v2249
        %v2367 = vunpack.c.l.b16 %v2250
        %v2368 = vunpack.c.h.b16 %v2250
        %v2369 = vunpack.c.l.b16 %v2251
        %v2370 = vunpack.c.h.b16 %v2251
        %v2371 = vunpack.c.l.b16 %v2252
        %v2372 = vunpack.c.h.b16 %v2252
        %v2373 = vunpack.c.l.b16 %v2253
        %v2374 = vunpack.c.h.b16 %v2253
        %v2375 = vunpack.c.l.b16 %v2254
        %v2376 = vunpack.c.h.b16 %v2254
        %v2377 = vunpack.c.l.b16 %v2255
        %v2378 = vunpack.c.h.b16 %v2255
        %v2379 = vunpack.c.l.b16 %v2256
        %v2380 = vunpack.c.h.b16 %v2256
        %v2381 = vunpack.c.l.b16 %v2257
        %v2382 = vunpack.c.h.b16 %v2257
        %v2383 = vunpack.c.l.b16 %v2258
        %v2384 = vunpack.c.h.b16 %v2258
        %v2385 = vunpack.c.l.b16 %v2259
        %v2386 = vunpack.c.h.b16 %v2259
        %v2387 = vunpack.c.l.b16 %v2260
        %v2388 = vunpack.c.h.b16 %v2260
        %v2389 = vunpack.c.l.b16 %v2261
        %v2390 = vunpack.c.h.b16 %v2261
        %v2391 = vunpack.c.l.b16 %v2262
        %v2392 = vunpack.c.h.b16 %v2262
        %v2393 = vunpack.c.l.b16 %v2263
        %v2394 = vunpack.c.h.b16 %v2263
        %v2395 = vunpack.c.l.b16 %v2264
        %v2396 = vunpack.c.h.b16 %v2264
        %v2397 = vunpack.c.l.b16 %v2265
        %v2398 = vunpack.c.h.b16 %v2265
        %v2399 = vpack.c.b16 %v2329, %v2327
        %v2400 = vpack.c.b16 %v2330, %v2328
        %v2401 = vpack.c.b16 %v2333, %v2331
        %v2402 = vpack.c.b16 %v2334, %v2332
        %v2403 = vpack.c.b16 %v2337, %v2335
        %v2404 = vpack.c.b16 %v2338, %v2336
        %v2405 = vpack.c.b16 %v2341, %v2339
        %v2406 = vpack.c.b16 %v2342, %v2340
        %v2407 = vpack.c.b16 %v2345, %v2343
        %v2408 = vpack.c.b16 %v2346, %v2344
        %v2409 = vpack.c.b16 %v2349, %v2347
        %v2410 = vpack.c.b16 %v2350, %v2348
        %v2411 = vpack.c.b16 %v2353, %v2351
        %v2412 = vpack.c.b16 %v2354, %v2352
        %v2413 = vpack.c.b16 %v2357, %v2355
        %v2414 = vpack.c.b16 %v2358, %v2356
        %v2415 = vpack.c.b16 %v2361, %v2359
        %v2416 = vpack.c.b16 %v2362, %v2360
        %v2417 = vpack.c.b16 %v2365, %v2363
        %v2418 = vpack.c.b16 %v2366, %v2364
        %v2419 = vpack.c.b16 %v2369, %v2367
        %v2420 = vpack.c.b16 %v2370, %v2368
        %v2421 = vpack.c.b16 %v2373, %v2371
        %v2422 = vpack.c.b16 %v2374, %v2372
        %v2423 = vpack.c.b16 %v2377, %v2375
        %v2424 = vpack.c.b16 %v2378, %v2376
        %v2425 = vpack.c.b16 %v2381, %v2379
        %v2426 = vpack.c.b16 %v2382, %v2380
        %v2427 = vpack.c.b16 %v2385, %v2383
        %v2428 = vpack.c.b16 %v2386, %v2384
        %v2429 = vpack.c.b16 %v2389, %v2387
        %v2430 = vpack.c.b16 %v2390, %v2388
        %v2431 = vpack.c.b16 %v2393, %v2391
        %v2432 = vpack.c.b16 %v2394, %v2392
        %v2433 = vpack.c.b16 %v2397, %v2395
        %v2434 = vpack.c.b16 %v2398, %v2396
        %v2477 = vunpack.c.l.b16 %v2267
        %v2478 = vunpack.c.l.b16 %v2268
        %v2479 = vunpack.c.l.b16 %v2269
        %v2480 = vunpack.c.l.b16 %v2270
        %v2481 = vunpack.c.l.b16 %v2271
        %v2482 = vunpack.c.l.b16 %v2272
        %v2483 = vunpack.c.l.b16 %v2273
        %v2484 = vunpack.c.l.b16 %v2274
        %v2485 = vunpack.c.l.b16 %v2275
        %v2486 = vunpack.c.l.b16 %v2276
        %v2487 = vunpack.c.l.b16 %v2277
        %v2488 = vunpack.c.l.b16 %v2278
        %v2489 = vunpack.c.l.b16 %v2279
        %v2490 = vunpack.c.l.b16 %v2280
        %v2491 = vunpack.c.l.b16 %v2281
        %v2492 = vunpack.c.l.b16 %v2282
        %v2493 = vunpack.c.l.b16 %v2283
        %v2494 = vunpack.c.l.b16 %v2284
        %v2495 = vunpack.c.l.b16 %v2285
        %v2496 = vunpack.c.l.b16 %v2286
        %v2497 = vunpack.c.l.b16 %v2287
        %v2498 = vunpack.c.l.b16 %v2288
        %v2499 = vunpack.c.l.b16 %v2289
        %v2500 = vunpack.c.l.b16 %v2290
        %v2501 = vpack.c.b16 %v2478, %v2477
        %v2502 = vpack.c.b16 %v2480, %v2479
        %v2503 = vpack.c.b16 %v2482, %v2481
        %v2504 = vpack.c.b16 %v2484, %v2483
        %v2505 = vpack.c.b16 %v2486, %v2485
        %v2506 = vpack.c.b16 %v2488, %v2487
        %v2507 = vpack.c.b16 %v2490, %v2489
        %v2508 = vpack.c.b16 %v2492, %v2491
        %v2509 = vpack.c.b16 %v2494, %v2493
        %v2510 = vpack.c.b16 %v2496, %v2495
        %v2511 = vpack.c.b16 %v2498, %v2497
        %v2512 = vpack.c.b16 %v2500, %v2499
        %v2526 = vsel %vm871, %v2400, 0
        %v2529 = vsel %vm871, %v2402, 0
        %v2532 = vsel %vm871, %v2404, 0
        %v2535 = vsel %vm871, %v2406, 0
        %v2538 = vsel %vm871, %v2408, 0
        %v2541 = vsel %vm871, %v2410, 0
        %v2544 = vsel %vm871, %v2412, 0
        %v2547 = vsel %vm871, %v2414, 0
        %v2550 = vsel %vm871, %v2416, 0
        %v2553 = vsel %vm871, %v2418, 0
        %v2556 = vsel %vm871, %v2420, 0
        %v2559 = vsel %vm871, %v2422, 0
        %v2562 = vsel %vm871, %v2424, 0
        %v2565 = vsel %vm871, %v2426, 0
        %v2568 = vsel %vm871, %v2428, 0
        %v2571 = vsel %vm871, %v2430, 0
        %v2574 = vsel %vm871, %v2432, 0
        %v2577 = vsel %vm871, %v2434, 0
        %2579 = vmatpush.bf16.msra.mxu0 %v2508
        %2580 = vmatpush.bf16.msra.mxu0 %v2507
        %2581 = vmatpush.bf16.msra.mxu0 %v2506
        %2582 = vmatpush.bf16.msra.mxu0 %v2505
        %2583 = vmatpush.bf16.msra.mxu0 %v2504
        %2584 = vmatpush.bf16.msra.mxu0 %v2503
        %2585 = vmatpush.bf16.msra.mxu0 %v2502
        %2586 = vmatpush.bf16.msra.mxu0 %v2501
        %2587 = vmatmul.bf16.gmra.mxu0 %v2399
        %v2588 = vpop.f32.mrf.mxu0
        %v2589 = vadd.f32 0.0, %v2588
        %v2590 = vpop.f32.mrf.mxu0
        %v2591 = vadd.f32 0.0, %v2590
        %2592 = vmatmul.bf16.gmra.mxu0 %v2401
        %v2593 = vpop.f32.mrf.mxu0
        %v2594 = vadd.f32 0.0, %v2593
        %v2595 = vpop.f32.mrf.mxu0
        %v2596 = vadd.f32 0.0, %v2595
        %2597 = vmatmul.bf16.gmra.mxu0 %v2403
        %v2598 = vpop.f32.mrf.mxu0
        %v2599 = vadd.f32 0.0, %v2598
        %v2600 = vpop.f32.mrf.mxu0
        %v2601 = vadd.f32 0.0, %v2600
        %2602 = vmatmul.bf16.gmra.mxu0 %v2405
        %v2603 = vpop.f32.mrf.mxu0
        %v2604 = vadd.f32 0.0, %v2603
        %v2605 = vpop.f32.mrf.mxu0
        %v2606 = vadd.f32 0.0, %v2605
        %2607 = vmatmul.bf16.gmra.mxu0 %v2407
        %v2608 = vpop.f32.mrf.mxu0
        %v2609 = vadd.f32 0.0, %v2608
        %v2610 = vpop.f32.mrf.mxu0
        %v2611 = vadd.f32 0.0, %v2610
        %2612 = vmatmul.bf16.gmra.mxu0 %v2409
        %v2613 = vpop.f32.mrf.mxu0
        %v2614 = vadd.f32 0.0, %v2613
        %v2615 = vpop.f32.mrf.mxu0
        %v2616 = vadd.f32 0.0, %v2615
        %2617 = vmatmul.bf16.gmra.mxu0 %v2411
        %v2618 = vpop.f32.mrf.mxu0
        %v2619 = vadd.f32 0.0, %v2618
        %v2620 = vpop.f32.mrf.mxu0
        %v2621 = vadd.f32 0.0, %v2620
        %2622 = vmatmul.bf16.gmra.mxu0 %v2413
        %v2623 = vpop.f32.mrf.mxu0
        %v2624 = vadd.f32 0.0, %v2623
        %v2625 = vpop.f32.mrf.mxu0
        %v2626 = vadd.f32 0.0, %v2625
        %2627 = vmatmul.bf16.gmra.mxu0 %v2415
        %v2628 = vpop.f32.mrf.mxu0
        %v2629 = vadd.f32 0.0, %v2628
        %v2630 = vpop.f32.mrf.mxu0
        %v2631 = vadd.f32 0.0, %v2630
        %2632 = vmatmul.bf16.gmra.mxu0 %v2417
        %v2633 = vpop.f32.mrf.mxu0
        %v2634 = vadd.f32 0.0, %v2633
        %v2635 = vpop.f32.mrf.mxu0
        %v2636 = vadd.f32 0.0, %v2635
        %2637 = vmatmul.bf16.gmra.mxu0 %v2419
        %v2638 = vpop.f32.mrf.mxu0
        %v2639 = vadd.f32 0.0, %v2638
        %v2640 = vpop.f32.mrf.mxu0
        %v2641 = vadd.f32 0.0, %v2640
        %2642 = vmatmul.bf16.gmra.mxu0 %v2421
        %v2643 = vpop.f32.mrf.mxu0
        %v2644 = vadd.f32 0.0, %v2643
        %v2645 = vpop.f32.mrf.mxu0
        %v2646 = vadd.f32 0.0, %v2645
        %2647 = vmatmul.bf16.gmra.mxu0 %v2423
        %v2648 = vpop.f32.mrf.mxu0
        %v2649 = vadd.f32 0.0, %v2648
        %v2650 = vpop.f32.mrf.mxu0
        %v2651 = vadd.f32 0.0, %v2650
        %2652 = vmatmul.bf16.gmra.mxu0 %v2425
        %v2653 = vpop.f32.mrf.mxu0
        %v2654 = vadd.f32 0.0, %v2653
        %v2655 = vpop.f32.mrf.mxu0
        %v2656 = vadd.f32 0.0, %v2655
        %2657 = vmatmul.bf16.gmra.mxu0 %v2427
        %v2658 = vpop.f32.mrf.mxu0
        %v2659 = vadd.f32 0.0, %v2658
        %v2660 = vpop.f32.mrf.mxu0
        %v2661 = vadd.f32 0.0, %v2660
        %2662 = vmatmul.bf16.gmra.mxu0 %v2429
        %v2663 = vpop.f32.mrf.mxu0
        %v2664 = vadd.f32 0.0, %v2663
        %v2665 = vpop.f32.mrf.mxu0
        %v2666 = vadd.f32 0.0, %v2665
        %2667 = vmatmul.bf16.gmra.mxu0 %v2431
        %v2668 = vpop.f32.mrf.mxu0
        %v2669 = vadd.f32 0.0, %v2668
        %v2670 = vpop.f32.mrf.mxu0
        %v2671 = vadd.f32 0.0, %v2670
        %2672 = vmatmul.bf16.gmra.mxu0 %v2433
        %v2673 = vpop.f32.mrf.mxu0
        %v2674 = vadd.f32 0.0, %v2673
        %v2675 = vpop.f32.mrf.mxu0
        %v2676 = vadd.f32 0.0, %v2675
        %2677 = vdwg.mxu0
        %2678 = vmatpush.bf16.msra.mxu0 0
        %2679 = vmatpush.bf16.msra.mxu0 0
        %2680 = vmatpush.bf16.msra.mxu0 0
        %2681 = vmatpush.bf16.msra.mxu0 0
        %2682 = vmatpush.bf16.msra.mxu0 %v2512
        %2683 = vmatpush.bf16.msra.mxu0 %v2511
        %2684 = vmatpush.bf16.msra.mxu0 %v2510
        %2685 = vmatpush.bf16.msra.mxu0 %v2509
        %2686 = vmatmul.bf16.gmra.mxu0 %v2526
        %v2687 = vpop.f32.mrf.mxu0
        %v2688 = vadd.f32 %v2589, %v2687
        %v2689 = vpop.f32.mrf.mxu0
        %v2690 = vadd.f32 %v2591, %v2689
        %2691 = vmatmul.bf16.gmra.mxu0 %v2529
        %v2692 = vpop.f32.mrf.mxu0
        %v2693 = vadd.f32 %v2594, %v2692
        %v2694 = vpop.f32.mrf.mxu0
        %v2695 = vadd.f32 %v2596, %v2694
        %2696 = vmatmul.bf16.gmra.mxu0 %v2532
        %v2697 = vpop.f32.mrf.mxu0
        %v2698 = vadd.f32 %v2599, %v2697
        %v2699 = vpop.f32.mrf.mxu0
        %v2700 = vadd.f32 %v2601, %v2699
        %2701 = vmatmul.bf16.gmra.mxu0 %v2535
        %v2702 = vpop.f32.mrf.mxu0
        %v2703 = vadd.f32 %v2604, %v2702
        %v2704 = vpop.f32.mrf.mxu0
        %v2705 = vadd.f32 %v2606, %v2704
        %2706 = vmatmul.bf16.gmra.mxu0 %v2538
        %v2707 = vpop.f32.mrf.mxu0
        %v2708 = vadd.f32 %v2609, %v2707
        %v2709 = vpop.f32.mrf.mxu0
        %v2710 = vadd.f32 %v2611, %v2709
        %2711 = vmatmul.bf16.gmra.mxu0 %v2541
        %v2712 = vpop.f32.mrf.mxu0
        %v2713 = vadd.f32 %v2614, %v2712
        %v2714 = vpop.f32.mrf.mxu0
        %v2715 = vadd.f32 %v2616, %v2714
        %2716 = vmatmul.bf16.gmra.mxu0 %v2544
        %v2717 = vpop.f32.mrf.mxu0
        %v2718 = vadd.f32 %v2619, %v2717
        %v2719 = vpop.f32.mrf.mxu0
        %v2720 = vadd.f32 %v2621, %v2719
        %2721 = vmatmul.bf16.gmra.mxu0 %v2547
        %v2722 = vpop.f32.mrf.mxu0
        %v2723 = vadd.f32 %v2624, %v2722
        %v2724 = vpop.f32.mrf.mxu0
        %v2725 = vadd.f32 %v2626, %v2724
        %2726 = vmatmul.bf16.gmra.mxu0 %v2550
        %v2727 = vpop.f32.mrf.mxu0
        %v2728 = vadd.f32 %v2629, %v2727
        %v2729 = vpop.f32.mrf.mxu0
        %v2730 = vadd.f32 %v2631, %v2729
        %2731 = vmatmul.bf16.gmra.mxu0 %v2553
        %v2732 = vpop.f32.mrf.mxu0
        %v2733 = vadd.f32 %v2634, %v2732
        %v2734 = vpop.f32.mrf.mxu0
        %v2735 = vadd.f32 %v2636, %v2734
        %2736 = vmatmul.bf16.gmra.mxu0 %v2556
        %v2737 = vpop.f32.mrf.mxu0
        %v2738 = vadd.f32 %v2639, %v2737
        %v2739 = vpop.f32.mrf.mxu0
        %v2740 = vadd.f32 %v2641, %v2739
        %2741 = vmatmul.bf16.gmra.mxu0 %v2559
        %v2742 = vpop.f32.mrf.mxu0
        %v2743 = vadd.f32 %v2644, %v2742
        %v2744 = vpop.f32.mrf.mxu0
        %v2745 = vadd.f32 %v2646, %v2744
        %2746 = vmatmul.bf16.gmra.mxu0 %v2562
        %v2747 = vpop.f32.mrf.mxu0
        %v2748 = vadd.f32 %v2649, %v2747
        %v2749 = vpop.f32.mrf.mxu0
        %v2750 = vadd.f32 %v2651, %v2749
        %2751 = vmatmul.bf16.gmra.mxu0 %v2565
        %v2752 = vpop.f32.mrf.mxu0
        %v2753 = vadd.f32 %v2654, %v2752
        %v2754 = vpop.f32.mrf.mxu0
        %v2755 = vadd.f32 %v2656, %v2754
        %2756 = vmatmul.bf16.gmra.mxu0 %v2568
        %v2757 = vpop.f32.mrf.mxu0
        %v2758 = vadd.f32 %v2659, %v2757
        %v2759 = vpop.f32.mrf.mxu0
        %v2760 = vadd.f32 %v2661, %v2759
        %2761 = vmatmul.bf16.gmra.mxu0 %v2571
        %v2762 = vpop.f32.mrf.mxu0
        %v2763 = vadd.f32 %v2664, %v2762
        %v2764 = vpop.f32.mrf.mxu0
        %v2765 = vadd.f32 %v2666, %v2764
        %2766 = vmatmul.bf16.gmra.mxu0 %v2574
        %v2767 = vpop.f32.mrf.mxu0
        %v2768 = vadd.f32 %v2669, %v2767
        %v2769 = vpop.f32.mrf.mxu0
        %v2770 = vadd.f32 %v2671, %v2769
        %2771 = vmatmul.bf16.gmra.mxu0 %v2577
        %v2772 = vpop.f32.mrf.mxu0
        %v2773 = vadd.f32 %v2674, %v2772
        %v2774 = vpop.f32.mrf.mxu0
        %v2775 = vadd.f32 %v2676, %v2774
        %2776 = vdwg.mxu0
        %v2777 = vadd.f32 %v2140, %v2688
        %v2778 = vadd.f32 %v2142, %v2690
        %v2779 = vadd.f32 %v2145, %v2693
        %v2780 = vadd.f32 %v2147, %v2695
        %v2781 = vadd.f32 %v2150, %v2698
        %v2782 = vadd.f32 %v2152, %v2700
        %v2783 = vadd.f32 %v2155, %v2703
        %v2784 = vadd.f32 %v2157, %v2705
        %v2785 = vadd.f32 %v2160, %v2708
        %v2786 = vadd.f32 %v2162, %v2710
        %v2787 = vadd.f32 %v2165, %v2713
        %v2788 = vadd.f32 %v2167, %v2715
        %v2789 = vadd.f32 %v2170, %v2718
        %v2790 = vadd.f32 %v2172, %v2720
        %v2791 = vadd.f32 %v2175, %v2723
        %v2792 = vadd.f32 %v2177, %v2725
        %v2793 = vadd.f32 %v2180, %v2728
        %v2794 = vadd.f32 %v2182, %v2730
        %v2795 = vadd.f32 %v2185, %v2733
        %v2796 = vadd.f32 %v2187, %v2735
        %v2797 = vadd.f32 %v2190, %v2738
        %v2798 = vadd.f32 %v2192, %v2740
        %v2799 = vadd.f32 %v2195, %v2743
        %v2800 = vadd.f32 %v2197, %v2745
        %v2801 = vadd.f32 %v2200, %v2748
        %v2802 = vadd.f32 %v2202, %v2750
        %v2803 = vadd.f32 %v2205, %v2753
        %v2804 = vadd.f32 %v2207, %v2755
        %v2805 = vadd.f32 %v2210, %v2758
        %v2806 = vadd.f32 %v2212, %v2760
        %v2807 = vadd.f32 %v2215, %v2763
        %v2808 = vadd.f32 %v2217, %v2765
        %v2809 = vadd.f32 %v2220, %v2768
        %v2810 = vadd.f32 %v2222, %v2770
        %v2811 = vadd.f32 %v2225, %v2773
        %v2812 = vadd.f32 %v2227, %v2775
        %v2813 = vld [vmem:[%s3] sm:$0x1]
        %v2815 = vperm.slane %v2813, 0
        %v2817 = vadd.f32 %v2777, %v2815
        %v2818 = vadd.f32 %v2778, %v2815
        %v2819 = vadd.f32 %v2779, %v2815
        %v2820 = vadd.f32 %v2780, %v2815
        %v2821 = vadd.f32 %v2781, %v2815
        %v2822 = vadd.f32 %v2782, %v2815
        %v2823 = vadd.f32 %v2783, %v2815
        %v2824 = vadd.f32 %v2784, %v2815
        %v2825 = vadd.f32 %v2785, %v2815
        %v2826 = vadd.f32 %v2786, %v2815
        %v2827 = vadd.f32 %v2787, %v2815
        %v2828 = vadd.f32 %v2788, %v2815
        %v2829 = vadd.f32 %v2789, %v2815
        %v2830 = vadd.f32 %v2790, %v2815
        %v2831 = vadd.f32 %v2791, %v2815
        %v2832 = vadd.f32 %v2792, %v2815
        %v2833 = vadd.f32 %v2793, %v2815
        %v2834 = vadd.f32 %v2794, %v2815
        %v2835 = vadd.f32 %v2795, %v2815
        %v2836 = vadd.f32 %v2796, %v2815
        %v2837 = vadd.f32 %v2797, %v2815
        %v2838 = vadd.f32 %v2798, %v2815
        %v2839 = vadd.f32 %v2799, %v2815
        %v2840 = vadd.f32 %v2800, %v2815
        %v2841 = vadd.f32 %v2801, %v2815
        %v2842 = vadd.f32 %v2802, %v2815
        %v2843 = vadd.f32 %v2803, %v2815
        %v2844 = vadd.f32 %v2804, %v2815
        %v2845 = vadd.f32 %v2805, %v2815
        %v2846 = vadd.f32 %v2806, %v2815
        %v2847 = vadd.f32 %v2807, %v2815
        %v2848 = vadd.f32 %v2808, %v2815
        %v2849 = vadd.f32 %v2809, %v2815
        %v2850 = vadd.f32 %v2810, %v2815
        %v2851 = vadd.f32 %v2811, %v2815
        %v2852 = vadd.f32 %v2812, %v2815
        %v2853 = vmax.f32 %v2817, 0.0
        %v2854 = vmax.f32 %v2818, 0.0
        %v2855 = vmax.f32 %v2819, 0.0
        %v2856 = vmax.f32 %v2820, 0.0
        %v2857 = vmax.f32 %v2821, 0.0
        %v2858 = vmax.f32 %v2822, 0.0
        %v2859 = vmax.f32 %v2823, 0.0
        %v2860 = vmax.f32 %v2824, 0.0
        %v2861 = vmax.f32 %v2825, 0.0
        %v2862 = vmax.f32 %v2826, 0.0
        %v2863 = vmax.f32 %v2827, 0.0
        %v2864 = vmax.f32 %v2828, 0.0
        %v2865 = vmax.f32 %v2829, 0.0
        %v2866 = vmax.f32 %v2830, 0.0
        %v2867 = vmax.f32 %v2831, 0.0
        %v2868 = vmax.f32 %v2832, 0.0
        %v2869 = vmax.f32 %v2833, 0.0
        %v2870 = vmax.f32 %v2834, 0.0
        %v2871 = vmax.f32 %v2835, 0.0
        %v2872 = vmax.f32 %v2836, 0.0
        %v2873 = vmax.f32 %v2837, 0.0
        %v2874 = vmax.f32 %v2838, 0.0
        %v2875 = vmax.f32 %v2839, 0.0
        %v2876 = vmax.f32 %v2840, 0.0
        %v2877 = vmax.f32 %v2841, 0.0
        %v2878 = vmax.f32 %v2842, 0.0
        %v2879 = vmax.f32 %v2843, 0.0
        %v2880 = vmax.f32 %v2844, 0.0
        %v2881 = vmax.f32 %v2845, 0.0
        %v2882 = vmax.f32 %v2846, 0.0
        %v2883 = vmax.f32 %v2847, 0.0
        %v2884 = vmax.f32 %v2848, 0.0
        %v2885 = vmax.f32 %v2849, 0.0
        %v2886 = vmax.f32 %v2850, 0.0
        %v2887 = vmax.f32 %v2851, 0.0
        %v2888 = vmax.f32 %v2852, 0.0
        %v2889 = vpack.c.bf16 %v2853, %v2853
        %v2890 = vpack.c.bf16 %v2854, %v2854
        %v2891 = vpack.c.bf16 %v2855, %v2855
        %v2892 = vpack.c.bf16 %v2856, %v2856
        %v2893 = vpack.c.bf16 %v2857, %v2857
        %v2894 = vpack.c.bf16 %v2858, %v2858
        %v2895 = vpack.c.bf16 %v2859, %v2859
        %v2896 = vpack.c.bf16 %v2860, %v2860
        %v2897 = vpack.c.bf16 %v2861, %v2861
        %v2898 = vpack.c.bf16 %v2862, %v2862
        %v2899 = vpack.c.bf16 %v2863, %v2863
        %v2900 = vpack.c.bf16 %v2864, %v2864
        %v2901 = vpack.c.bf16 %v2865, %v2865
        %v2902 = vpack.c.bf16 %v2866, %v2866
        %v2903 = vpack.c.bf16 %v2867, %v2867
        %v2904 = vpack.c.bf16 %v2868, %v2868
        %v2905 = vpack.c.bf16 %v2869, %v2869
        %v2906 = vpack.c.bf16 %v2870, %v2870
        %v2907 = vpack.c.bf16 %v2871, %v2871
        %v2908 = vpack.c.bf16 %v2872, %v2872
        %v2909 = vpack.c.bf16 %v2873, %v2873
        %v2910 = vpack.c.bf16 %v2874, %v2874
        %v2911 = vpack.c.bf16 %v2875, %v2875
        %v2912 = vpack.c.bf16 %v2876, %v2876
        %v2913 = vpack.c.bf16 %v2877, %v2877
        %v2914 = vpack.c.bf16 %v2878, %v2878
        %v2915 = vpack.c.bf16 %v2879, %v2879
        %v2916 = vpack.c.bf16 %v2880, %v2880
        %v2917 = vpack.c.bf16 %v2881, %v2881
        %v2918 = vpack.c.bf16 %v2882, %v2882
        %v2919 = vpack.c.bf16 %v2883, %v2883
        %v2920 = vpack.c.bf16 %v2884, %v2884
        %v2921 = vpack.c.bf16 %v2885, %v2885
        %v2922 = vpack.c.bf16 %v2886, %v2886
        %v2923 = vpack.c.bf16 %v2887, %v2887
        %v2924 = vpack.c.bf16 %v2888, %v2888
        %v2961 = vunpack.c.l.b16 %v2889
        %v2962 = vunpack.c.l.b16 %v2890
        %v2963 = vunpack.c.l.b16 %v2891
        %v2964 = vunpack.c.l.b16 %v2892
        %v2965 = vunpack.c.l.b16 %v2893
        %v2966 = vunpack.c.l.b16 %v2894
        %v2967 = vunpack.c.l.b16 %v2895
        %v2968 = vunpack.c.l.b16 %v2896
        %v2969 = vunpack.c.l.b16 %v2897
        %v2970 = vunpack.c.l.b16 %v2898
        %v2971 = vunpack.c.l.b16 %v2899
        %v2972 = vunpack.c.l.b16 %v2900
        %v2973 = vunpack.c.l.b16 %v2901
        %v2974 = vunpack.c.l.b16 %v2902
        %v2975 = vunpack.c.l.b16 %v2903
        %v2976 = vunpack.c.l.b16 %v2904
        %v2977 = vunpack.c.l.b16 %v2905
        %v2978 = vunpack.c.l.b16 %v2906
        %v2979 = vunpack.c.l.b16 %v2907
        %v2980 = vunpack.c.l.b16 %v2908
        %v2981 = vunpack.c.l.b16 %v2909
        %v2982 = vunpack.c.l.b16 %v2910
        %v2983 = vunpack.c.l.b16 %v2911
        %v2984 = vunpack.c.l.b16 %v2912
        %v2985 = vunpack.c.l.b16 %v2913
        %v2986 = vunpack.c.l.b16 %v2914
        %v2987 = vunpack.c.l.b16 %v2915
        %v2988 = vunpack.c.l.b16 %v2916
        %v2989 = vunpack.c.l.b16 %v2917
        %v2990 = vunpack.c.l.b16 %v2918
        %v2991 = vunpack.c.l.b16 %v2919
        %v2992 = vunpack.c.l.b16 %v2920
        %v2993 = vunpack.c.l.b16 %v2921
        %v2994 = vunpack.c.l.b16 %v2922
        %v2995 = vunpack.c.l.b16 %v2923
        %v2996 = vunpack.c.l.b16 %v2924
        %v2997 = vpack.c.b16 %v2962, %v2961
        %v2998 = vpack.c.b16 %v2964, %v2963
        %v2999 = vpack.c.b16 %v2966, %v2965
        %v3000 = vpack.c.b16 %v2968, %v2967
        %v3001 = vpack.c.b16 %v2970, %v2969
        %v3002 = vpack.c.b16 %v2972, %v2971
        %v3003 = vpack.c.b16 %v2974, %v2973
        %v3004 = vpack.c.b16 %v2976, %v2975
        %v3005 = vpack.c.b16 %v2978, %v2977
        %v3006 = vpack.c.b16 %v2980, %v2979
        %v3007 = vpack.c.b16 %v2982, %v2981
        %v3008 = vpack.c.b16 %v2984, %v2983
        %v3009 = vpack.c.b16 %v2986, %v2985
        %v3010 = vpack.c.b16 %v2988, %v2987
        %v3011 = vpack.c.b16 %v2990, %v2989
        %v3012 = vpack.c.b16 %v2992, %v2991
        %v3013 = vpack.c.b16 %v2994, %v2993
        %v3014 = vpack.c.b16 %v2996, %v2995
        %v3016 = vshrl.u32 %v2997, 16
        %v3018 = vrot.slane %v3016, 7
        %v3019 = vshll.u32 %v2997, 16
        %v3021 = vor.u32 %v3018, %v3019
        %v3023 = vshrl.u32 %v2998, 16
        %v3025 = vrot.slane %v3023, 7
        %v3026 = vshll.u32 %v2998, 16
        %v3028 = vor.u32 %v3025, %v3026
        %v3030 = vshrl.u32 %v2999, 16
        %v3032 = vrot.slane %v3030, 7
        %v3033 = vshll.u32 %v2999, 16
        %v3035 = vor.u32 %v3032, %v3033
        %v3037 = vshrl.u32 %v3000, 16
        %v3039 = vrot.slane %v3037, 7
        %v3040 = vshll.u32 %v3000, 16
        %v3042 = vor.u32 %v3039, %v3040
        %v3044 = vshrl.u32 %v3001, 16
        %v3046 = vrot.slane %v3044, 7
        %v3047 = vshll.u32 %v3001, 16
        %v3049 = vor.u32 %v3046, %v3047
        %v3051 = vshrl.u32 %v3002, 16
        %v3053 = vrot.slane %v3051, 7
        %v3054 = vshll.u32 %v3002, 16
        %v3056 = vor.u32 %v3053, %v3054
        %v3058 = vshrl.u32 %v3003, 16
        %v3060 = vrot.slane %v3058, 7
        %v3061 = vshll.u32 %v3003, 16
        %v3063 = vor.u32 %v3060, %v3061
        %v3065 = vshrl.u32 %v3004, 16
        %v3067 = vrot.slane %v3065, 7
        %v3068 = vshll.u32 %v3004, 16
        %v3070 = vor.u32 %v3067, %v3068
        %v3072 = vshrl.u32 %v3005, 16
        %v3074 = vrot.slane %v3072, 7
        %v3075 = vshll.u32 %v3005, 16
        %v3077 = vor.u32 %v3074, %v3075
        %v3079 = vshrl.u32 %v3006, 16
        %v3081 = vrot.slane %v3079, 7
        %v3082 = vshll.u32 %v3006, 16
        %v3084 = vor.u32 %v3081, %v3082
        %v3086 = vshrl.u32 %v3007, 16
        %v3088 = vrot.slane %v3086, 7
        %v3089 = vshll.u32 %v3007, 16
        %v3091 = vor.u32 %v3088, %v3089
        %v3093 = vshrl.u32 %v3008, 16
        %v3095 = vrot.slane %v3093, 7
        %v3096 = vshll.u32 %v3008, 16
        %v3098 = vor.u32 %v3095, %v3096
        %v3100 = vshrl.u32 %v3009, 16
        %v3102 = vrot.slane %v3100, 7
        %v3103 = vshll.u32 %v3009, 16
        %v3105 = vor.u32 %v3102, %v3103
        %v3107 = vshrl.u32 %v3010, 16
        %v3109 = vrot.slane %v3107, 7
        %v3110 = vshll.u32 %v3010, 16
        %v3112 = vor.u32 %v3109, %v3110
        %v3114 = vshrl.u32 %v3011, 16
        %v3116 = vrot.slane %v3114, 7
        %v3117 = vshll.u32 %v3011, 16
        %v3119 = vor.u32 %v3116, %v3117
        %v3121 = vshrl.u32 %v3012, 16
        %v3123 = vrot.slane %v3121, 7
        %v3124 = vshll.u32 %v3012, 16
        %v3126 = vor.u32 %v3123, %v3124
        %v3128 = vshrl.u32 %v3013, 16
        %v3130 = vrot.slane %v3128, 7
        %v3131 = vshll.u32 %v3013, 16
        %v3133 = vor.u32 %v3130, %v3131
        %v3135 = vshrl.u32 %v3014, 16
        %v3137 = vrot.slane %v3135, 7
        %v3138 = vshll.u32 %v3014, 16
        %v3140 = vor.u32 %v3137, %v3138
        %vm3159 = vcmask 1040384
        %vm3160 = vsmask.f32 256
        %vm3161 = vmand %vm3159, %vm3160
        %v3162 = vsel %vm3161, 0, %v3021
        %v3163 = vsel %vm3161, 0, %v3028
        %v3164 = vsel %vm3161, 0, %v3035
        %v3165 = vsel %vm3161, 0, %v3042
        %v3166 = vsel %vm3161, 0, %v3049
        %v3167 = vsel %vm3161, 0, %v3056
        %v3168 = vsel %vm3161, 0, %v3063
        %v3169 = vsel %vm3161, 0, %v3070
        %v3170 = vsel %vm3161, 0, %v3077
        %v3171 = vsel %vm3161, 0, %v3084
        %v3172 = vsel %vm3161, 0, %v3091
        %v3173 = vsel %vm3161, 0, %v3098
        %v3174 = vsel %vm3161, 0, %v3105
        %v3175 = vsel %vm3161, 0, %v3112
        %v3176 = vsel %vm3161, 0, %v3119
        %v3177 = vsel %vm3161, 0, %v3126
        %v3178 = vsel %vm3161, 0, %v3133
        %v3179 = vsel %vm3161, 0, %v3140
        %v3180 = vrot.slane %v3019, 1
        %v3181 = vor.u32 %v3016, %v3180
        %v3182 = vrot.slane %v3026, 1
        %v3183 = vor.u32 %v3023, %v3182
        %v3184 = vrot.slane %v3033, 1
        %v3185 = vor.u32 %v3030, %v3184
        %v3186 = vrot.slane %v3040, 1
        %v3187 = vor.u32 %v3037, %v3186
        %v3188 = vrot.slane %v3047, 1
        %v3189 = vor.u32 %v3044, %v3188
        %v3190 = vrot.slane %v3054, 1
        %v3191 = vor.u32 %v3051, %v3190
        %v3192 = vrot.slane %v3061, 1
        %v3193 = vor.u32 %v3058, %v3192
        %v3194 = vrot.slane %v3068, 1
        %v3195 = vor.u32 %v3065, %v3194
        %v3196 = vrot.slane %v3075, 1
        %v3197 = vor.u32 %v3072, %v3196
        %v3198 = vrot.slane %v3082, 1
        %v3199 = vor.u32 %v3079, %v3198
        %v3200 = vrot.slane %v3089, 1
        %v3201 = vor.u32 %v3086, %v3200
        %v3202 = vrot.slane %v3096, 1
        %v3203 = vor.u32 %v3093, %v3202
        %v3204 = vrot.slane %v3103, 1
        %v3205 = vor.u32 %v3100, %v3204
        %v3206 = vrot.slane %v3110, 1
        %v3207 = vor.u32 %v3107, %v3206
        %v3208 = vrot.slane %v3117, 1
        %v3209 = vor.u32 %v3114, %v3208
        %v3210 = vrot.slane %v3124, 1
        %v3211 = vor.u32 %v3121, %v3210
        %v3212 = vrot.slane %v3131, 1
        %v3213 = vor.u32 %v3128, %v3212
        %v3214 = vrot.slane %v3138, 1
        %v3215 = vor.u32 %v3135, %v3214
        %vm3234 = vcmask 1047552
        %vm3235 = vmand %vm3234, %vm529
        %v3236 = vsel %vm3235, %v3181, 0
        %v3237 = vsel %vm3235, %v3183, 0
        %v3238 = vsel %vm3235, %v3185, 0
        %v3239 = vsel %vm3235, %v3187, 0
        %v3240 = vsel %vm3235, %v3189, 0
        %v3241 = vsel %vm3235, %v3191, 0
        %v3242 = vsel %vm3235, %v3193, 0
        %v3243 = vsel %vm3235, %v3195, 0
        %v3244 = vsel %vm3235, %v3197, 0
        %v3245 = vsel %vm3235, %v3199, 0
        %v3246 = vsel %vm3235, %v3201, 0
        %v3247 = vsel %vm3235, %v3203, 0
        %v3248 = vsel %vm3235, %v3205, 0
        %v3249 = vsel %vm3235, %v3207, 0
        %v3250 = vsel %vm3235, %v3209, 0
        %v3251 = vsel %vm3235, %v3211, 0
        %v3252 = vsel %vm3235, %v3213, 0
        %v3253 = vsel %vm3235, %v3215, 0
        %3254 = vrot.lane.b32.xlu0 %v2997, 64
        %v3255 = vpop.permute.xlu0 %3254
        %3256 = vrot.lane.b32.xlu0 %v2998, 64
        %v3257 = vpop.permute.xlu0 %3256
        %3258 = vrot.lane.b32.xlu0 %v2999, 64
        %v3259 = vpop.permute.xlu0 %3258
        %3260 = vrot.lane.b32.xlu0 %v3000, 64
        %v3261 = vpop.permute.xlu0 %3260
        %3262 = vrot.lane.b32.xlu0 %v3001, 64
        %v3263 = vpop.permute.xlu0 %3262
        %3264 = vrot.lane.b32.xlu0 %v3002, 64
        %v3265 = vpop.permute.xlu0 %3264
        %3266 = vrot.lane.b32.xlu0 %v3003, 64
        %v3267 = vpop.permute.xlu0 %3266
        %3268 = vrot.lane.b32.xlu0 %v3004, 64
        %v3269 = vpop.permute.xlu0 %3268
        %3270 = vrot.lane.b32.xlu0 %v3005, 64
        %v3271 = vpop.permute.xlu0 %3270
        %3272 = vrot.lane.b32.xlu0 %v3006, 64
        %v3273 = vpop.permute.xlu0 %3272
        %3274 = vrot.lane.b32.xlu0 %v3007, 64
        %v3275 = vpop.permute.xlu0 %3274
        %3276 = vrot.lane.b32.xlu0 %v3008, 64
        %v3277 = vpop.permute.xlu0 %3276
        %3278 = vrot.lane.b32.xlu0 %v3009, 64
        %v3279 = vpop.permute.xlu0 %3278
        %3280 = vrot.lane.b32.xlu0 %v3010, 64
        %v3281 = vpop.permute.xlu0 %3280
        %3282 = vrot.lane.b32.xlu0 %v3011, 64
        %v3283 = vpop.permute.xlu0 %3282
        %3284 = vrot.lane.b32.xlu0 %v3012, 64
        %v3285 = vpop.permute.xlu0 %3284
        %3286 = vrot.lane.b32.xlu0 %v3013, 64
        %v3287 = vpop.permute.xlu0 %3286
        %3288 = vrot.lane.b32.xlu0 %v3014, 64
        %v3289 = vpop.permute.xlu0 %3288
        %v3292 = vsel %vm871, %v3162, %v3255
        %v3295 = vsel %vm871, %v3163, %v3257
        %v3298 = vsel %vm871, %v3164, %v3259
        %v3301 = vsel %vm871, %v3165, %v3261
        %v3304 = vsel %vm871, %v3166, %v3263
        %v3307 = vsel %vm871, %v3167, %v3265
        %v3310 = vsel %vm871, %v3168, %v3267
        %v3313 = vsel %vm871, %v3169, %v3269
        %v3316 = vsel %vm871, %v3170, %v3271
        %v3319 = vsel %vm871, %v3171, %v3273
        %v3322 = vsel %vm871, %v3172, %v3275
        %v3325 = vsel %vm871, %v3173, %v3277
        %v3328 = vsel %vm871, %v3174, %v3279
        %v3331 = vsel %vm871, %v3175, %v3281
        %v3334 = vsel %vm871, %v3176, %v3283
        %v3337 = vsel %vm871, %v3177, %v3285
        %v3340 = vsel %vm871, %v3178, %v3287
        %v3343 = vsel %vm871, %v3179, %v3289
        %v3380 = vunpack.c.l.b16 %v3292
        %v3381 = vunpack.c.l.b16 %v3236
        %v3382 = vunpack.c.h.b16 %v3292
        %v3383 = vunpack.c.h.b16 %v3236
        %v3384 = vunpack.c.l.b16 %v3295
        %v3385 = vunpack.c.l.b16 %v3237
        %v3386 = vunpack.c.h.b16 %v3295
        %v3387 = vunpack.c.h.b16 %v3237
        %v3388 = vunpack.c.l.b16 %v3298
        %v3389 = vunpack.c.l.b16 %v3238
        %v3390 = vunpack.c.h.b16 %v3298
        %v3391 = vunpack.c.h.b16 %v3238
        %v3392 = vunpack.c.l.b16 %v3301
        %v3393 = vunpack.c.l.b16 %v3239
        %v3394 = vunpack.c.h.b16 %v3301
        %v3395 = vunpack.c.h.b16 %v3239
        %v3396 = vunpack.c.l.b16 %v3304
        %v3397 = vunpack.c.l.b16 %v3240
        %v3398 = vunpack.c.h.b16 %v3304
        %v3399 = vunpack.c.h.b16 %v3240
        %v3400 = vunpack.c.l.b16 %v3307
        %v3401 = vunpack.c.l.b16 %v3241
        %v3402 = vunpack.c.h.b16 %v3307
        %v3403 = vunpack.c.h.b16 %v3241
        %v3404 = vunpack.c.l.b16 %v3310
        %v3405 = vunpack.c.l.b16 %v3242
        %v3406 = vunpack.c.h.b16 %v3310
        %v3407 = vunpack.c.h.b16 %v3242
        %v3408 = vunpack.c.l.b16 %v3313
        %v3409 = vunpack.c.l.b16 %v3243
        %v3410 = vunpack.c.h.b16 %v3313
        %v3411 = vunpack.c.h.b16 %v3243
        %v3412 = vunpack.c.l.b16 %v3316
        %v3413 = vunpack.c.l.b16 %v3244
        %v3414 = vunpack.c.h.b16 %v3316
        %v3415 = vunpack.c.h.b16 %v3244
        %v3416 = vunpack.c.l.b16 %v3319
        %v3417 = vunpack.c.l.b16 %v3245
        %v3418 = vunpack.c.h.b16 %v3319
        %v3419 = vunpack.c.h.b16 %v3245
        %v3420 = vunpack.c.l.b16 %v3322
        %v3421 = vunpack.c.l.b16 %v3246
        %v3422 = vunpack.c.h.b16 %v3322
        %v3423 = vunpack.c.h.b16 %v3246
        %v3424 = vunpack.c.l.b16 %v3325
        %v3425 = vunpack.c.l.b16 %v3247
        %v3426 = vunpack.c.h.b16 %v3325
        %v3427 = vunpack.c.h.b16 %v3247
        %v3428 = vunpack.c.l.b16 %v3328
        %v3429 = vunpack.c.l.b16 %v3248
        %v3430 = vunpack.c.h.b16 %v3328
        %v3431 = vunpack.c.h.b16 %v3248
        %v3432 = vunpack.c.l.b16 %v3331
        %v3433 = vunpack.c.l.b16 %v3249
        %v3434 = vunpack.c.h.b16 %v3331
        %v3435 = vunpack.c.h.b16 %v3249
        %v3436 = vunpack.c.l.b16 %v3334
        %v3437 = vunpack.c.l.b16 %v3250
        %v3438 = vunpack.c.h.b16 %v3334
        %v3439 = vunpack.c.h.b16 %v3250
        %v3440 = vunpack.c.l.b16 %v3337
        %v3441 = vunpack.c.l.b16 %v3251
        %v3442 = vunpack.c.h.b16 %v3337
        %v3443 = vunpack.c.h.b16 %v3251
        %v3444 = vunpack.c.l.b16 %v3340
        %v3445 = vunpack.c.l.b16 %v3252
        %v3446 = vunpack.c.h.b16 %v3340
        %v3447 = vunpack.c.h.b16 %v3252
        %v3448 = vunpack.c.l.b16 %v3343
        %v3449 = vunpack.c.l.b16 %v3253
        %v3450 = vunpack.c.h.b16 %v3343
        %v3451 = vunpack.c.h.b16 %v3253
        %v3452 = vpack.c.b16 %v3381, %v3380
        %v3453 = vpack.c.b16 %v3383, %v3382
        %v3454 = vpack.c.b16 %v3385, %v3384
        %v3455 = vpack.c.b16 %v3387, %v3386
        %v3456 = vpack.c.b16 %v3389, %v3388
        %v3457 = vpack.c.b16 %v3391, %v3390
        %v3458 = vpack.c.b16 %v3393, %v3392
        %v3459 = vpack.c.b16 %v3395, %v3394
        %v3460 = vpack.c.b16 %v3397, %v3396
        %v3461 = vpack.c.b16 %v3399, %v3398
        %v3462 = vpack.c.b16 %v3401, %v3400
        %v3463 = vpack.c.b16 %v3403, %v3402
        %v3464 = vpack.c.b16 %v3405, %v3404
        %v3465 = vpack.c.b16 %v3407, %v3406
        %v3466 = vpack.c.b16 %v3409, %v3408
        %v3467 = vpack.c.b16 %v3411, %v3410
        %v3468 = vpack.c.b16 %v3413, %v3412
        %v3469 = vpack.c.b16 %v3415, %v3414
        %v3470 = vpack.c.b16 %v3417, %v3416
        %v3471 = vpack.c.b16 %v3419, %v3418
        %v3472 = vpack.c.b16 %v3421, %v3420
        %v3473 = vpack.c.b16 %v3423, %v3422
        %v3474 = vpack.c.b16 %v3425, %v3424
        %v3475 = vpack.c.b16 %v3427, %v3426
        %v3476 = vpack.c.b16 %v3429, %v3428
        %v3477 = vpack.c.b16 %v3431, %v3430
        %v3478 = vpack.c.b16 %v3433, %v3432
        %v3479 = vpack.c.b16 %v3435, %v3434
        %v3480 = vpack.c.b16 %v3437, %v3436
        %v3481 = vpack.c.b16 %v3439, %v3438
        %v3482 = vpack.c.b16 %v3441, %v3440
        %v3483 = vpack.c.b16 %v3443, %v3442
        %v3484 = vpack.c.b16 %v3445, %v3444
        %v3485 = vpack.c.b16 %v3447, %v3446
        %v3486 = vpack.c.b16 %v3449, %v3448
        %v3487 = vpack.c.b16 %v3451, %v3450
        %3524 = vst.msk [vmem:[#allocation3] sm:$0xff] %vm1094, %v3452
        %3525 = vst.msk [vmem:[#allocation3 + $0x8] sm:$0xff] %vm1094, %v3453
        %3526 = vst.msk [vmem:[#allocation3 + $0x10] sm:$0xff] %vm1094, %v3454
        %3527 = vst.msk [vmem:[#allocation3 + $0x18] sm:$0xff] %vm1094, %v3455
        %3528 = vst.msk [vmem:[#allocation3 + $0x20] sm:$0xff] %vm1094, %v3456
        %3529 = vst.msk [vmem:[#allocation3 + $0x28] sm:$0xff] %vm1094, %v3457
        %3530 = vst.msk [vmem:[#allocation3 + $0x30] sm:$0xff] %vm1094, %v3458
        %3531 = vst.msk [vmem:[#allocation3 + $0x38] sm:$0xff] %vm1094, %v3459
        %3532 = vst.msk [vmem:[#allocation3 + $0x40] sm:$0xff] %vm1094, %v3460
        %3533 = vst.msk [vmem:[#allocation3 + $0x48] sm:$0xff] %vm1094, %v3461
        %3534 = vst.msk [vmem:[#allocation3 + $0x50] sm:$0xff] %vm1094, %v3462
        %3535 = vst.msk [vmem:[#allocation3 + $0x58] sm:$0xff] %vm1094, %v3463
        %3536 = vst.msk [vmem:[#allocation3 + $0x60] sm:$0xff] %vm1094, %v3464
        %3537 = vst.msk [vmem:[#allocation3 + $0x68] sm:$0xff] %vm1094, %v3465
        %3538 = vst.msk [vmem:[#allocation3 + $0x70] sm:$0xff] %vm1094, %v3466
        %3539 = vst.msk [vmem:[#allocation3 + $0x78] sm:$0xff] %vm1094, %v3467
        %3540 = vst.msk [vmem:[#allocation3 + $0x80] sm:$0xff] %vm1094, %v3468
        %3541 = vst.msk [vmem:[#allocation3 + $0x88] sm:$0xff] %vm1094, %v3469
        %3542 = vst.msk [vmem:[#allocation3 + $0x90] sm:$0xff] %vm1094, %v3470
        %3543 = vst.msk [vmem:[#allocation3 + $0x98] sm:$0xff] %vm1094, %v3471
        %3544 = vst.msk [vmem:[#allocation3 + $0xa0] sm:$0xff] %vm1094, %v3472
        %3545 = vst.msk [vmem:[#allocation3 + $0xa8] sm:$0xff] %vm1094, %v3473
        %3546 = vst.msk [vmem:[#allocation3 + $0xb0] sm:$0xff] %vm1094, %v3474
        %3547 = vst.msk [vmem:[#allocation3 + $0xb8] sm:$0xff] %vm1094, %v3475
        %3548 = vst.msk [vmem:[#allocation3 + $0xc0] sm:$0xff] %vm1094, %v3476
        %3549 = vst.msk [vmem:[#allocation3 + $0xc8] sm:$0xff] %vm1094, %v3477
        %3550 = vst.msk [vmem:[#allocation3 + $0xd0] sm:$0xff] %vm1094, %v3478
        %3551 = vst.msk [vmem:[#allocation3 + $0xd8] sm:$0xff] %vm1094, %v3479
        %3552 = vst.msk [vmem:[#allocation3 + $0xe0] sm:$0xff] %vm1094, %v3480
        %3553 = vst.msk [vmem:[#allocation3 + $0xe8] sm:$0xff] %vm1094, %v3481
        %3554 = vst.msk [vmem:[#allocation3 + $0xf0] sm:$0xff] %vm1094, %v3482
        %3555 = vst.msk [vmem:[#allocation3 + $0xf8] sm:$0xff] %vm1094, %v3483
        %3556 = vst.msk [vmem:[#allocation3 + $0x100] sm:$0xff] %vm1094, %v3484
        %3557 = vst.msk [vmem:[#allocation3 + $0x108] sm:$0xff] %vm1094, %v3485
        %3558 = vst.msk [vmem:[#allocation3 + $0x110] sm:$0xff] %vm1094, %v3486
        %3559 = vst.msk [vmem:[#allocation3 + $0x118] sm:$0xff] %vm1094, %v3487
        %p3560 = scmp.eq.s32.totalorder %s305, 0
        // Predicated region
        $region45: #{basic_block_forward.1} parent=43 // pred_check
          %p3561 = pneg %p3560
        $region46: #{basic_block_forward.1} parent=43 // pred_check_branch
          %3563 = sbr.rel (%p3561) target = $region48
        $region47: #{basic_block_forward.1} parent=43 // pred_region
          %3564 = vst.msk [vmem:[#allocation3] sm:$0xff] %vm1094, 0
          %3565 = vst.msk [vmem:[#allocation3 + $0x8] sm:$0xff] %vm1094, 0
        $region48: #{basic_block_forward.1} parent=43 // pred_fallthru
          _
        %s3566 = sadd.s32 %s305, 16
        %p3567 = scmp.eq.s32.totalorder %s3566, 16
        // Predicated region
        $region49: #{basic_block_forward.1} parent=43 // pred_check
          %p3568 = pneg %p3567
        $region50: #{basic_block_forward.1} parent=43 // pred_check_branch
          %3570 = sbr.rel (%p3568) target = $region52
        $region51: #{basic_block_forward.1} parent=43 // pred_region
          %s3571 = scalar_lea.vmem [#allocation3], 272
          %3572 = vst.msk [vmem:[%s3571] sm:$0xff] %vm1094, 0
          %3573 = vst.msk [vmem:[%s3571 + $0x8] sm:$0xff] %vm1094, 0
        $region52: #{basic_block_forward.1} parent=43 // pred_fallthru
          _
        %v3574 = vld [vmem:[#allocation3] sm:$0xff]
        %v3575 = vld [vmem:[#allocation3 + $0x8] sm:$0xff]
        %v3576 = vld [vmem:[#allocation3 + $0x10] sm:$0xff]
        %v3577 = vld [vmem:[#allocation3 + $0x18] sm:$0xff]
        %v3578 = vld [vmem:[#allocation3 + $0x20] sm:$0xff]
        %v3579 = vld [vmem:[#allocation3 + $0x28] sm:$0xff]
        %v3580 = vld [vmem:[#allocation3 + $0x30] sm:$0xff]
        %v3581 = vld [vmem:[#allocation3 + $0x38] sm:$0xff]
        %v3582 = vld [vmem:[#allocation3 + $0x40] sm:$0xff]
        %v3583 = vld [vmem:[#allocation3 + $0x48] sm:$0xff]
        %v3584 = vld [vmem:[#allocation3 + $0x50] sm:$0xff]
        %v3585 = vld [vmem:[#allocation3 + $0x58] sm:$0xff]
        %v3586 = vld [vmem:[#allocation3 + $0x60] sm:$0xff]
        %v3587 = vld [vmem:[#allocation3 + $0x68] sm:$0xff]
        %v3588 = vld [vmem:[#allocation3 + $0x70] sm:$0xff]
        %v3589 = vld [vmem:[#allocation3 + $0x78] sm:$0xff]
        %v3590 = vld [vmem:[#allocation3 + $0x80] sm:$0xff]
        %v3591 = vld [vmem:[#allocation3 + $0x88] sm:$0xff]
        %v3592 = vld [vmem:[#allocation3 + $0x90] sm:$0xff]
        %v3593 = vld [vmem:[#allocation3 + $0x98] sm:$0xff]
        %v3594 = vld [vmem:[#allocation3 + $0xa0] sm:$0xff]
        %v3595 = vld [vmem:[#allocation3 + $0xa8] sm:$0xff]
        %v3596 = vld [vmem:[#allocation3 + $0xb0] sm:$0xff]
        %v3597 = vld [vmem:[#allocation3 + $0xb8] sm:$0xff]
        %v3598 = vld [vmem:[#allocation3 + $0xc0] sm:$0xff]
        %v3599 = vld [vmem:[#allocation3 + $0xc8] sm:$0xff]
        %v3600 = vld [vmem:[#allocation3 + $0xd0] sm:$0xff]
        %v3601 = vld [vmem:[#allocation3 + $0xd8] sm:$0xff]
        %v3602 = vld [vmem:[#allocation3 + $0xe0] sm:$0xff]
        %v3603 = vld [vmem:[#allocation3 + $0xe8] sm:$0xff]
        %v3604 = vld [vmem:[#allocation3 + $0xf0] sm:$0xff]
        %v3605 = vld [vmem:[#allocation3 + $0xf8] sm:$0xff]
        %v3606 = vld [vmem:[%s4] sm:$0xf]
        %v3607 = vld [vmem:[%s4 + $0x4] sm:$0xf]
        %v3608 = vld [vmem:[%s4 + $0x8] sm:$0xf]
        %v3609 = vld [vmem:[%s4 + $0xc] sm:$0xf]
        %v3610 = vld [vmem:[%s4 + $0x10] sm:$0xf]
        %v3611 = vld [vmem:[%s4 + $0x14] sm:$0xf]
        %v3612 = vld [vmem:[%s4 + $0x18] sm:$0xf]
        %v3613 = vld [vmem:[%s4 + $0x1c] sm:$0xf]
        %v3614 = vld [vmem:[%s4 + $0x20] sm:$0xf]
        %v3615 = vld [vmem:[%s4 + $0x24] sm:$0xf]
        %v3616 = vld [vmem:[%s4 + $0x28] sm:$0xf]
        %v3617 = vld [vmem:[%s4 + $0x2c] sm:$0xf]
        %v3618 = vld [vmem:[%s4 + $0x30] sm:$0xf]
        %v3619 = vld [vmem:[%s4 + $0x34] sm:$0xf]
        %v3620 = vld [vmem:[%s4 + $0x38] sm:$0xf]
        %v3621 = vld [vmem:[%s4 + $0x3c] sm:$0xf]
        %v3622 = vld [vmem:[%s4 + $0x40] sm:$0xf]
        %v3623 = vld [vmem:[%s4 + $0x44] sm:$0xf]
        %v3624 = vld [vmem:[%s4 + $0x48] sm:$0xf]
        %v3625 = vld [vmem:[%s4 + $0x4c] sm:$0xf]
        %v3626 = vld [vmem:[%s4 + $0x50] sm:$0xf]
        %v3627 = vld [vmem:[%s4 + $0x54] sm:$0xf]
        %v3628 = vld [vmem:[%s4 + $0x58] sm:$0xf]
        %v3629 = vld [vmem:[%s4 + $0x5c] sm:$0xf]
        %s3630 = scalar_lea.vmem [#allocation3], 16
        %v3631 = vld [vmem:[%s3630] sm:$0xff]
        %v3632 = vld [vmem:[%s3630 + $0x8] sm:$0xff]
        %v3633 = vld [vmem:[%s3630 + $0x10] sm:$0xff]
        %v3634 = vld [vmem:[%s3630 + $0x18] sm:$0xff]
        %v3635 = vld [vmem:[%s3630 + $0x20] sm:$0xff]
        %v3636 = vld [vmem:[%s3630 + $0x28] sm:$0xff]
        %v3637 = vld [vmem:[%s3630 + $0x30] sm:$0xff]
        %v3638 = vld [vmem:[%s3630 + $0x38] sm:$0xff]
        %v3639 = vld [vmem:[%s3630 + $0x40] sm:$0xff]
        %v3640 = vld [vmem:[%s3630 + $0x48] sm:$0xff]
        %v3641 = vld [vmem:[%s3630 + $0x50] sm:$0xff]
        %v3642 = vld [vmem:[%s3630 + $0x58] sm:$0xff]
        %v3643 = vld [vmem:[%s3630 + $0x60] sm:$0xff]
        %v3644 = vld [vmem:[%s3630 + $0x68] sm:$0xff]
        %v3645 = vld [vmem:[%s3630 + $0x70] sm:$0xff]
        %v3646 = vld [vmem:[%s3630 + $0x78] sm:$0xff]
        %v3647 = vld [vmem:[%s3630 + $0x80] sm:$0xff]
        %v3648 = vld [vmem:[%s3630 + $0x88] sm:$0xff]
        %v3649 = vld [vmem:[%s3630 + $0x90] sm:$0xff]
        %v3650 = vld [vmem:[%s3630 + $0x98] sm:$0xff]
        %v3651 = vld [vmem:[%s3630 + $0xa0] sm:$0xff]
        %v3652 = vld [vmem:[%s3630 + $0xa8] sm:$0xff]
        %v3653 = vld [vmem:[%s3630 + $0xb0] sm:$0xff]
        %v3654 = vld [vmem:[%s3630 + $0xb8] sm:$0xff]
        %v3655 = vld [vmem:[%s3630 + $0xc0] sm:$0xff]
        %v3656 = vld [vmem:[%s3630 + $0xc8] sm:$0xff]
        %v3657 = vld [vmem:[%s3630 + $0xd0] sm:$0xff]
        %v3658 = vld [vmem:[%s3630 + $0xd8] sm:$0xff]
        %v3659 = vld [vmem:[%s3630 + $0xe0] sm:$0xff]
        %v3660 = vld [vmem:[%s3630 + $0xe8] sm:$0xff]
        %v3661 = vld [vmem:[%s3630 + $0xf0] sm:$0xff]
        %v3662 = vld [vmem:[%s3630 + $0xf8] sm:$0xff]
        %s3663 = scalar_lea.vmem %s4, 96
        %v3664 = vld [vmem:[%s3663] sm:$0xf]
        %v3665 = vld [vmem:[%s3663 + $0x4] sm:$0xf]
        %v3666 = vld [vmem:[%s3663 + $0x8] sm:$0xf]
        %v3667 = vld [vmem:[%s3663 + $0xc] sm:$0xf]
        %v3668 = vld [vmem:[%s3663 + $0x10] sm:$0xf]
        %v3669 = vld [vmem:[%s3663 + $0x14] sm:$0xf]
        %v3670 = vld [vmem:[%s3663 + $0x18] sm:$0xf]
        %v3671 = vld [vmem:[%s3663 + $0x1c] sm:$0xf]
        %v3672 = vld [vmem:[%s3663 + $0x20] sm:$0xf]
        %v3673 = vld [vmem:[%s3663 + $0x24] sm:$0xf]
        %v3674 = vld [vmem:[%s3663 + $0x28] sm:$0xf]
        %v3675 = vld [vmem:[%s3663 + $0x2c] sm:$0xf]
        %v3676 = vld [vmem:[%s3663 + $0x30] sm:$0xf]
        %v3677 = vld [vmem:[%s3663 + $0x34] sm:$0xf]
        %v3678 = vld [vmem:[%s3663 + $0x38] sm:$0xf]
        %v3679 = vld [vmem:[%s3663 + $0x3c] sm:$0xf]
        %v3680 = vld [vmem:[%s3663 + $0x40] sm:$0xf]
        %v3681 = vld [vmem:[%s3663 + $0x44] sm:$0xf]
        %v3682 = vld [vmem:[%s3663 + $0x48] sm:$0xf]
        %v3683 = vld [vmem:[%s3663 + $0x4c] sm:$0xf]
        %v3684 = vld [vmem:[%s3663 + $0x50] sm:$0xf]
        %v3685 = vld [vmem:[%s3663 + $0x54] sm:$0xf]
        %v3686 = vld [vmem:[%s3663 + $0x58] sm:$0xf]
        %v3687 = vld [vmem:[%s3663 + $0x5c] sm:$0xf]
        %v3720 = vunpack.c.l.b16 %v3631
        %v3721 = vunpack.c.h.b16 %v3631
        %v3722 = vunpack.c.l.b16 %v3632
        %v3723 = vunpack.c.h.b16 %v3632
        %v3724 = vunpack.c.l.b16 %v3633
        %v3725 = vunpack.c.h.b16 %v3633
        %v3726 = vunpack.c.l.b16 %v3634
        %v3727 = vunpack.c.h.b16 %v3634
        %v3728 = vunpack.c.l.b16 %v3635
        %v3729 = vunpack.c.h.b16 %v3635
        %v3730 = vunpack.c.l.b16 %v3636
        %v3731 = vunpack.c.h.b16 %v3636
        %v3732 = vunpack.c.l.b16 %v3637
        %v3733 = vunpack.c.h.b16 %v3637
        %v3734 = vunpack.c.l.b16 %v3638
        %v3735 = vunpack.c.h.b16 %v3638
        %v3736 = vunpack.c.l.b16 %v3639
        %v3737 = vunpack.c.h.b16 %v3639
        %v3738 = vunpack.c.l.b16 %v3640
        %v3739 = vunpack.c.h.b16 %v3640
        %v3740 = vunpack.c.l.b16 %v3641
        %v3741 = vunpack.c.h.b16 %v3641
        %v3742 = vunpack.c.l.b16 %v3642
        %v3743 = vunpack.c.h.b16 %v3642
        %v3744 = vunpack.c.l.b16 %v3643
        %v3745 = vunpack.c.h.b16 %v3643
        %v3746 = vunpack.c.l.b16 %v3644
        %v3747 = vunpack.c.h.b16 %v3644
        %v3748 = vunpack.c.l.b16 %v3645
        %v3749 = vunpack.c.h.b16 %v3645
        %v3750 = vunpack.c.l.b16 %v3646
        %v3751 = vunpack.c.h.b16 %v3646
        %v3752 = vunpack.c.l.b16 %v3647
        %v3753 = vunpack.c.h.b16 %v3647
        %v3754 = vunpack.c.l.b16 %v3648
        %v3755 = vunpack.c.h.b16 %v3648
        %v3756 = vunpack.c.l.b16 %v3649
        %v3757 = vunpack.c.h.b16 %v3649
        %v3758 = vunpack.c.l.b16 %v3650
        %v3759 = vunpack.c.h.b16 %v3650
        %v3760 = vunpack.c.l.b16 %v3651
        %v3761 = vunpack.c.h.b16 %v3651
        %v3762 = vunpack.c.l.b16 %v3652
        %v3763 = vunpack.c.h.b16 %v3652
        %v3764 = vunpack.c.l.b16 %v3653
        %v3765 = vunpack.c.h.b16 %v3653
        %v3766 = vunpack.c.l.b16 %v3654
        %v3767 = vunpack.c.h.b16 %v3654
        %v3768 = vunpack.c.l.b16 %v3655
        %v3769 = vunpack.c.h.b16 %v3655
        %v3770 = vunpack.c.l.b16 %v3656
        %v3771 = vunpack.c.h.b16 %v3656
        %v3772 = vunpack.c.l.b16 %v3657
        %v3773 = vunpack.c.h.b16 %v3657
        %v3774 = vunpack.c.l.b16 %v3658
        %v3775 = vunpack.c.h.b16 %v3658
        %v3776 = vunpack.c.l.b16 %v3659
        %v3777 = vunpack.c.h.b16 %v3659
        %v3778 = vunpack.c.l.b16 %v3660
        %v3779 = vunpack.c.h.b16 %v3660
        %v3780 = vunpack.c.l.b16 %v3661
        %v3781 = vunpack.c.h.b16 %v3661
        %v3782 = vunpack.c.l.b16 %v3662
        %v3783 = vunpack.c.h.b16 %v3662
        %v3784 = vpack.c.b16 %v3722, %v3720
        %v3785 = vpack.c.b16 %v3723, %v3721
        %v3786 = vpack.c.b16 %v3726, %v3724
        %v3787 = vpack.c.b16 %v3727, %v3725
        %v3788 = vpack.c.b16 %v3730, %v3728
        %v3789 = vpack.c.b16 %v3731, %v3729
        %v3790 = vpack.c.b16 %v3734, %v3732
        %v3791 = vpack.c.b16 %v3735, %v3733
        %v3792 = vpack.c.b16 %v3738, %v3736
        %v3793 = vpack.c.b16 %v3739, %v3737
        %v3794 = vpack.c.b16 %v3742, %v3740
        %v3795 = vpack.c.b16 %v3743, %v3741
        %v3796 = vpack.c.b16 %v3746, %v3744
        %v3797 = vpack.c.b16 %v3747, %v3745
        %v3798 = vpack.c.b16 %v3750, %v3748
        %v3799 = vpack.c.b16 %v3751, %v3749
        %v3800 = vpack.c.b16 %v3754, %v3752
        %v3801 = vpack.c.b16 %v3755, %v3753
        %v3802 = vpack.c.b16 %v3758, %v3756
        %v3803 = vpack.c.b16 %v3759, %v3757
        %v3804 = vpack.c.b16 %v3762, %v3760
        %v3805 = vpack.c.b16 %v3763, %v3761
        %v3806 = vpack.c.b16 %v3766, %v3764
        %v3807 = vpack.c.b16 %v3767, %v3765
        %v3808 = vpack.c.b16 %v3770, %v3768
        %v3809 = vpack.c.b16 %v3771, %v3769
        %v3810 = vpack.c.b16 %v3774, %v3772
        %v3811 = vpack.c.b16 %v3775, %v3773
        %v3812 = vpack.c.b16 %v3778, %v3776
        %v3813 = vpack.c.b16 %v3779, %v3777
        %v3814 = vpack.c.b16 %v3782, %v3780
        %v3815 = vpack.c.b16 %v3783, %v3781
        %v3856 = vunpack.c.l.b16 %v3664
        %v3857 = vunpack.c.l.b16 %v3665
        %v3858 = vunpack.c.l.b16 %v3666
        %v3859 = vunpack.c.l.b16 %v3667
        %v3860 = vunpack.c.l.b16 %v3668
        %v3861 = vunpack.c.l.b16 %v3669
        %v3862 = vunpack.c.l.b16 %v3670
        %v3863 = vunpack.c.l.b16 %v3671
        %v3864 = vunpack.c.l.b16 %v3672
        %v3865 = vunpack.c.l.b16 %v3673
        %v3866 = vunpack.c.l.b16 %v3674
        %v3867 = vunpack.c.l.b16 %v3675
        %v3868 = vunpack.c.l.b16 %v3676
        %v3869 = vunpack.c.l.b16 %v3677
        %v3870 = vunpack.c.l.b16 %v3678
        %v3871 = vunpack.c.l.b16 %v3679
        %v3872 = vunpack.c.l.b16 %v3680
        %v3873 = vunpack.c.l.b16 %v3681
        %v3874 = vunpack.c.l.b16 %v3682
        %v3875 = vunpack.c.l.b16 %v3683
        %v3876 = vunpack.c.l.b16 %v3684
        %v3877 = vunpack.c.l.b16 %v3685
        %v3878 = vunpack.c.l.b16 %v3686
        %v3879 = vunpack.c.l.b16 %v3687
        %v3880 = vpack.c.b16 %v3857, %v3856
        %v3881 = vpack.c.b16 %v3859, %v3858
        %v3882 = vpack.c.b16 %v3861, %v3860
        %v3883 = vpack.c.b16 %v3863, %v3862
        %v3884 = vpack.c.b16 %v3865, %v3864
        %v3885 = vpack.c.b16 %v3867, %v3866
        %v3886 = vpack.c.b16 %v3869, %v3868
        %v3887 = vpack.c.b16 %v3871, %v3870
        %v3888 = vpack.c.b16 %v3873, %v3872
        %v3889 = vpack.c.b16 %v3875, %v3874
        %v3890 = vpack.c.b16 %v3877, %v3876
        %v3891 = vpack.c.b16 %v3879, %v3878
        %v3905 = vsel %vm871, %v3785, 0
        %v3908 = vsel %vm871, %v3787, 0
        %v3911 = vsel %vm871, %v3789, 0
        %v3914 = vsel %vm871, %v3791, 0
        %v3917 = vsel %vm871, %v3793, 0
        %v3920 = vsel %vm871, %v3795, 0
        %v3923 = vsel %vm871, %v3797, 0
        %v3926 = vsel %vm871, %v3799, 0
        %v3929 = vsel %vm871, %v3801, 0
        %v3932 = vsel %vm871, %v3803, 0
        %v3935 = vsel %vm871, %v3805, 0
        %v3938 = vsel %vm871, %v3807, 0
        %v3941 = vsel %vm871, %v3809, 0
        %v3944 = vsel %vm871, %v3811, 0
        %v3947 = vsel %vm871, %v3813, 0
        %v3950 = vsel %vm871, %v3815, 0
        %3952 = vmatpush.bf16.msra.mxu0 %v3887
        %3953 = vmatpush.bf16.msra.mxu0 %v3886
        %3954 = vmatpush.bf16.msra.mxu0 %v3885
        %3955 = vmatpush.bf16.msra.mxu0 %v3884
        %3956 = vmatpush.bf16.msra.mxu0 %v3883
        %3957 = vmatpush.bf16.msra.mxu0 %v3882
        %3958 = vmatpush.bf16.msra.mxu0 %v3881
        %3959 = vmatpush.bf16.msra.mxu0 %v3880
        %3960 = vmatmul.bf16.gmra.mxu0 %v3784
        %v3961 = vpop.f32.mrf.mxu0
        %v3962 = vadd.f32 0.0, %v3961
        %v3963 = vpop.f32.mrf.mxu0
        %v3964 = vadd.f32 0.0, %v3963
        %3965 = vmatmul.bf16.gmra.mxu0 %v3786
        %v3966 = vpop.f32.mrf.mxu0
        %v3967 = vadd.f32 0.0, %v3966
        %v3968 = vpop.f32.mrf.mxu0
        %v3969 = vadd.f32 0.0, %v3968
        %3970 = vmatmul.bf16.gmra.mxu0 %v3788
        %v3971 = vpop.f32.mrf.mxu0
        %v3972 = vadd.f32 0.0, %v3971
        %v3973 = vpop.f32.mrf.mxu0
        %v3974 = vadd.f32 0.0, %v3973
        %3975 = vmatmul.bf16.gmra.mxu0 %v3790
        %v3976 = vpop.f32.mrf.mxu0
        %v3977 = vadd.f32 0.0, %v3976
        %v3978 = vpop.f32.mrf.mxu0
        %v3979 = vadd.f32 0.0, %v3978
        %3980 = vmatmul.bf16.gmra.mxu0 %v3792
        %v3981 = vpop.f32.mrf.mxu0
        %v3982 = vadd.f32 0.0, %v3981
        %v3983 = vpop.f32.mrf.mxu0
        %v3984 = vadd.f32 0.0, %v3983
        %3985 = vmatmul.bf16.gmra.mxu0 %v3794
        %v3986 = vpop.f32.mrf.mxu0
        %v3987 = vadd.f32 0.0, %v3986
        %v3988 = vpop.f32.mrf.mxu0
        %v3989 = vadd.f32 0.0, %v3988
        %3990 = vmatmul.bf16.gmra.mxu0 %v3796
        %v3991 = vpop.f32.mrf.mxu0
        %v3992 = vadd.f32 0.0, %v3991
        %v3993 = vpop.f32.mrf.mxu0
        %v3994 = vadd.f32 0.0, %v3993
        %3995 = vmatmul.bf16.gmra.mxu0 %v3798
        %v3996 = vpop.f32.mrf.mxu0
        %v3997 = vadd.f32 0.0, %v3996
        %v3998 = vpop.f32.mrf.mxu0
        %v3999 = vadd.f32 0.0, %v3998
        %4000 = vmatmul.bf16.gmra.mxu0 %v3800
        %v4001 = vpop.f32.mrf.mxu0
        %v4002 = vadd.f32 0.0, %v4001
        %v4003 = vpop.f32.mrf.mxu0
        %v4004 = vadd.f32 0.0, %v4003
        %4005 = vmatmul.bf16.gmra.mxu0 %v3802
        %v4006 = vpop.f32.mrf.mxu0
        %v4007 = vadd.f32 0.0, %v4006
        %v4008 = vpop.f32.mrf.mxu0
        %v4009 = vadd.f32 0.0, %v4008
        %4010 = vmatmul.bf16.gmra.mxu0 %v3804
        %v4011 = vpop.f32.mrf.mxu0
        %v4012 = vadd.f32 0.0, %v4011
        %v4013 = vpop.f32.mrf.mxu0
        %v4014 = vadd.f32 0.0, %v4013
        %4015 = vmatmul.bf16.gmra.mxu0 %v3806
        %v4016 = vpop.f32.mrf.mxu0
        %v4017 = vadd.f32 0.0, %v4016
        %v4018 = vpop.f32.mrf.mxu0
        %v4019 = vadd.f32 0.0, %v4018
        %4020 = vmatmul.bf16.gmra.mxu0 %v3808
        %v4021 = vpop.f32.mrf.mxu0
        %v4022 = vadd.f32 0.0, %v4021
        %v4023 = vpop.f32.mrf.mxu0
        %v4024 = vadd.f32 0.0, %v4023
        %4025 = vmatmul.bf16.gmra.mxu0 %v3810
        %v4026 = vpop.f32.mrf.mxu0
        %v4027 = vadd.f32 0.0, %v4026
        %v4028 = vpop.f32.mrf.mxu0
        %v4029 = vadd.f32 0.0, %v4028
        %4030 = vmatmul.bf16.gmra.mxu0 %v3812
        %v4031 = vpop.f32.mrf.mxu0
        %v4032 = vadd.f32 0.0, %v4031
        %v4033 = vpop.f32.mrf.mxu0
        %v4034 = vadd.f32 0.0, %v4033
        %4035 = vmatmul.bf16.gmra.mxu0 %v3814
        %v4036 = vpop.f32.mrf.mxu0
        %v4037 = vadd.f32 0.0, %v4036
        %v4038 = vpop.f32.mrf.mxu0
        %v4039 = vadd.f32 0.0, %v4038
        %4040 = vdwg.mxu0
        %4041 = vmatpush.bf16.msra.mxu0 0
        %4042 = vmatpush.bf16.msra.mxu0 0
        %4043 = vmatpush.bf16.msra.mxu0 0
        %4044 = vmatpush.bf16.msra.mxu0 0
        %4045 = vmatpush.bf16.msra.mxu0 %v3891
        %4046 = vmatpush.bf16.msra.mxu0 %v3890
        %4047 = vmatpush.bf16.msra.mxu0 %v3889
        %4048 = vmatpush.bf16.msra.mxu0 %v3888
        %4049 = vmatmul.bf16.gmra.mxu0 %v3905
        %v4050 = vpop.f32.mrf.mxu0
        %v4051 = vadd.f32 %v3962, %v4050
        %v4052 = vpop.f32.mrf.mxu0
        %v4053 = vadd.f32 %v3964, %v4052
        %4054 = vmatmul.bf16.gmra.mxu0 %v3908
        %v4055 = vpop.f32.mrf.mxu0
        %v4056 = vadd.f32 %v3967, %v4055
        %v4057 = vpop.f32.mrf.mxu0
        %v4058 = vadd.f32 %v3969, %v4057
        %4059 = vmatmul.bf16.gmra.mxu0 %v3911
        %v4060 = vpop.f32.mrf.mxu0
        %v4061 = vadd.f32 %v3972, %v4060
        %v4062 = vpop.f32.mrf.mxu0
        %v4063 = vadd.f32 %v3974, %v4062
        %4064 = vmatmul.bf16.gmra.mxu0 %v3914
        %v4065 = vpop.f32.mrf.mxu0
        %v4066 = vadd.f32 %v3977, %v4065
        %v4067 = vpop.f32.mrf.mxu0
        %v4068 = vadd.f32 %v3979, %v4067
        %4069 = vmatmul.bf16.gmra.mxu0 %v3917
        %v4070 = vpop.f32.mrf.mxu0
        %v4071 = vadd.f32 %v3982, %v4070
        %v4072 = vpop.f32.mrf.mxu0
        %v4073 = vadd.f32 %v3984, %v4072
        %4074 = vmatmul.bf16.gmra.mxu0 %v3920
        %v4075 = vpop.f32.mrf.mxu0
        %v4076 = vadd.f32 %v3987, %v4075
        %v4077 = vpop.f32.mrf.mxu0
        %v4078 = vadd.f32 %v3989, %v4077
        %4079 = vmatmul.bf16.gmra.mxu0 %v3923
        %v4080 = vpop.f32.mrf.mxu0
        %v4081 = vadd.f32 %v3992, %v4080
        %v4082 = vpop.f32.mrf.mxu0
        %v4083 = vadd.f32 %v3994, %v4082
        %4084 = vmatmul.bf16.gmra.mxu0 %v3926
        %v4085 = vpop.f32.mrf.mxu0
        %v4086 = vadd.f32 %v3997, %v4085
        %v4087 = vpop.f32.mrf.mxu0
        %v4088 = vadd.f32 %v3999, %v4087
        %4089 = vmatmul.bf16.gmra.mxu0 %v3929
        %v4090 = vpop.f32.mrf.mxu0
        %v4091 = vadd.f32 %v4002, %v4090
        %v4092 = vpop.f32.mrf.mxu0
        %v4093 = vadd.f32 %v4004, %v4092
        %4094 = vmatmul.bf16.gmra.mxu0 %v3932
        %v4095 = vpop.f32.mrf.mxu0
        %v4096 = vadd.f32 %v4007, %v4095
        %v4097 = vpop.f32.mrf.mxu0
        %v4098 = vadd.f32 %v4009, %v4097
        %4099 = vmatmul.bf16.gmra.mxu0 %v3935
        %v4100 = vpop.f32.mrf.mxu0
        %v4101 = vadd.f32 %v4012, %v4100
        %v4102 = vpop.f32.mrf.mxu0
        %v4103 = vadd.f32 %v4014, %v4102
        %4104 = vmatmul.bf16.gmra.mxu0 %v3938
        %v4105 = vpop.f32.mrf.mxu0
        %v4106 = vadd.f32 %v4017, %v4105
        %v4107 = vpop.f32.mrf.mxu0
        %v4108 = vadd.f32 %v4019, %v4107
        %4109 = vmatmul.bf16.gmra.mxu0 %v3941
        %v4110 = vpop.f32.mrf.mxu0
        %v4111 = vadd.f32 %v4022, %v4110
        %v4112 = vpop.f32.mrf.mxu0
        %v4113 = vadd.f32 %v4024, %v4112
        %4114 = vmatmul.bf16.gmra.mxu0 %v3944
        %v4115 = vpop.f32.mrf.mxu0
        %v4116 = vadd.f32 %v4027, %v4115
        %v4117 = vpop.f32.mrf.mxu0
        %v4118 = vadd.f32 %v4029, %v4117
        %4119 = vmatmul.bf16.gmra.mxu0 %v3947
        %v4120 = vpop.f32.mrf.mxu0
        %v4121 = vadd.f32 %v4032, %v4120
        %v4122 = vpop.f32.mrf.mxu0
        %v4123 = vadd.f32 %v4034, %v4122
        %4124 = vmatmul.bf16.gmra.mxu0 %v3950
        %v4125 = vpop.f32.mrf.mxu0
        %v4126 = vadd.f32 %v4037, %v4125
        %v4127 = vpop.f32.mrf.mxu0
        %v4128 = vadd.f32 %v4039, %v4127
        %4129 = vdwg.mxu0
        %v4162 = vunpack.c.l.b16 %v3574
        %v4163 = vunpack.c.h.b16 %v3574
        %v4164 = vunpack.c.l.b16 %v3575
        %v4165 = vunpack.c.h.b16 %v3575
        %v4166 = vunpack.c.l.b16 %v3576
        %v4167 = vunpack.c.h.b16 %v3576
        %v4168 = vunpack.c.l.b16 %v3577
        %v4169 = vunpack.c.h.b16 %v3577
        %v4170 = vunpack.c.l.b16 %v3578
        %v4171 = vunpack.c.h.b16 %v3578
        %v4172 = vunpack.c.l.b16 %v3579
        %v4173 = vunpack.c.h.b16 %v3579
        %v4174 = vunpack.c.l.b16 %v3580
        %v4175 = vunpack.c.h.b16 %v3580
        %v4176 = vunpack.c.l.b16 %v3581
        %v4177 = vunpack.c.h.b16 %v3581
        %v4178 = vunpack.c.l.b16 %v3582
        %v4179 = vunpack.c.h.b16 %v3582
        %v4180 = vunpack.c.l.b16 %v3583
        %v4181 = vunpack.c.h.b16 %v3583
        %v4182 = vunpack.c.l.b16 %v3584
        %v4183 = vunpack.c.h.b16 %v3584
        %v4184 = vunpack.c.l.b16 %v3585
        %v4185 = vunpack.c.h.b16 %v3585
        %v4186 = vunpack.c.l.b16 %v3586
        %v4187 = vunpack.c.h.b16 %v3586
        %v4188 = vunpack.c.l.b16 %v3587
        %v4189 = vunpack.c.h.b16 %v3587
        %v4190 = vunpack.c.l.b16 %v3588
        %v4191 = vunpack.c.h.b16 %v3588
        %v4192 = vunpack.c.l.b16 %v3589
        %v4193 = vunpack.c.h.b16 %v3589
        %v4194 = vunpack.c.l.b16 %v3590
        %v4195 = vunpack.c.h.b16 %v3590
        %v4196 = vunpack.c.l.b16 %v3591
        %v4197 = vunpack.c.h.b16 %v3591
        %v4198 = vunpack.c.l.b16 %v3592
        %v4199 = vunpack.c.h.b16 %v3592
        %v4200 = vunpack.c.l.b16 %v3593
        %v4201 = vunpack.c.h.b16 %v3593
        %v4202 = vunpack.c.l.b16 %v3594
        %v4203 = vunpack.c.h.b16 %v3594
        %v4204 = vunpack.c.l.b16 %v3595
        %v4205 = vunpack.c.h.b16 %v3595
        %v4206 = vunpack.c.l.b16 %v3596
        %v4207 = vunpack.c.h.b16 %v3596
        %v4208 = vunpack.c.l.b16 %v3597
        %v4209 = vunpack.c.h.b16 %v3597
        %v4210 = vunpack.c.l.b16 %v3598
        %v4211 = vunpack.c.h.b16 %v3598
        %v4212 = vunpack.c.l.b16 %v3599
        %v4213 = vunpack.c.h.b16 %v3599
        %v4214 = vunpack.c.l.b16 %v3600
        %v4215 = vunpack.c.h.b16 %v3600
        %v4216 = vunpack.c.l.b16 %v3601
        %v4217 = vunpack.c.h.b16 %v3601
        %v4218 = vunpack.c.l.b16 %v3602
        %v4219 = vunpack.c.h.b16 %v3602
        %v4220 = vunpack.c.l.b16 %v3603
        %v4221 = vunpack.c.h.b16 %v3603
        %v4222 = vunpack.c.l.b16 %v3604
        %v4223 = vunpack.c.h.b16 %v3604
        %v4224 = vunpack.c.l.b16 %v3605
        %v4225 = vunpack.c.h.b16 %v3605
        %v4226 = vpack.c.b16 %v4164, %v4162
        %v4227 = vpack.c.b16 %v4165, %v4163
        %v4228 = vpack.c.b16 %v4168, %v4166
        %v4229 = vpack.c.b16 %v4169, %v4167
        %v4230 = vpack.c.b16 %v4172, %v4170
        %v4231 = vpack.c.b16 %v4173, %v4171
        %v4232 = vpack.c.b16 %v4176, %v4174
        %v4233 = vpack.c.b16 %v4177, %v4175
        %v4234 = vpack.c.b16 %v4180, %v4178
        %v4235 = vpack.c.b16 %v4181, %v4179
        %v4236 = vpack.c.b16 %v4184, %v4182
        %v4237 = vpack.c.b16 %v4185, %v4183
        %v4238 = vpack.c.b16 %v4188, %v4186
        %v4239 = vpack.c.b16 %v4189, %v4187
        %v4240 = vpack.c.b16 %v4192, %v4190
        %v4241 = vpack.c.b16 %v4193, %v4191
        %v4242 = vpack.c.b16 %v4196, %v4194
        %v4243 = vpack.c.b16 %v4197, %v4195
        %v4244 = vpack.c.b16 %v4200, %v4198
        %v4245 = vpack.c.b16 %v4201, %v4199
        %v4246 = vpack.c.b16 %v4204, %v4202
        %v4247 = vpack.c.b16 %v4205, %v4203
        %v4248 = vpack.c.b16 %v4208, %v4206
        %v4249 = vpack.c.b16 %v4209, %v4207
        %v4250 = vpack.c.b16 %v4212, %v4210
        %v4251 = vpack.c.b16 %v4213, %v4211
        %v4252 = vpack.c.b16 %v4216, %v4214
        %v4253 = vpack.c.b16 %v4217, %v4215
        %v4254 = vpack.c.b16 %v4220, %v4218
        %v4255 = vpack.c.b16 %v4221, %v4219
        %v4256 = vpack.c.b16 %v4224, %v4222
        %v4257 = vpack.c.b16 %v4225, %v4223
        %v4298 = vunpack.c.l.b16 %v3606
        %v4299 = vunpack.c.l.b16 %v3607
        %v4300 = vunpack.c.l.b16 %v3608
        %v4301 = vunpack.c.l.b16 %v3609
        %v4302 = vunpack.c.l.b16 %v3610
        %v4303 = vunpack.c.l.b16 %v3611
        %v4304 = vunpack.c.l.b16 %v3612
        %v4305 = vunpack.c.l.b16 %v3613
        %v4306 = vunpack.c.l.b16 %v3614
        %v4307 = vunpack.c.l.b16 %v3615
        %v4308 = vunpack.c.l.b16 %v3616
        %v4309 = vunpack.c.l.b16 %v3617
        %v4310 = vunpack.c.l.b16 %v3618
        %v4311 = vunpack.c.l.b16 %v3619
        %v4312 = vunpack.c.l.b16 %v3620
        %v4313 = vunpack.c.l.b16 %v3621
        %v4314 = vunpack.c.l.b16 %v3622
        %v4315 = vunpack.c.l.b16 %v3623
        %v4316 = vunpack.c.l.b16 %v3624
        %v4317 = vunpack.c.l.b16 %v3625
        %v4318 = vunpack.c.l.b16 %v3626
        %v4319 = vunpack.c.l.b16 %v3627
        %v4320 = vunpack.c.l.b16 %v3628
        %v4321 = vunpack.c.l.b16 %v3629
        %v4322 = vpack.c.b16 %v4299, %v4298
        %v4323 = vpack.c.b16 %v4301, %v4300
        %v4324 = vpack.c.b16 %v4303, %v4302
        %v4325 = vpack.c.b16 %v4305, %v4304
        %v4326 = vpack.c.b16 %v4307, %v4306
        %v4327 = vpack.c.b16 %v4309, %v4308
        %v4328 = vpack.c.b16 %v4311, %v4310
        %v4329 = vpack.c.b16 %v4313, %v4312
        %v4330 = vpack.c.b16 %v4315, %v4314
        %v4331 = vpack.c.b16 %v4317, %v4316
        %v4332 = vpack.c.b16 %v4319, %v4318
        %v4333 = vpack.c.b16 %v4321, %v4320
        %v4347 = vsel %vm871, %v4227, 0
        %v4350 = vsel %vm871, %v4229, 0
        %v4353 = vsel %vm871, %v4231, 0
        %v4356 = vsel %vm871, %v4233, 0
        %v4359 = vsel %vm871, %v4235, 0
        %v4362 = vsel %vm871, %v4237, 0
        %v4365 = vsel %vm871, %v4239, 0
        %v4368 = vsel %vm871, %v4241, 0
        %v4371 = vsel %vm871, %v4243, 0
        %v4374 = vsel %vm871, %v4245, 0
        %v4377 = vsel %vm871, %v4247, 0
        %v4380 = vsel %vm871, %v4249, 0
        %v4383 = vsel %vm871, %v4251, 0
        %v4386 = vsel %vm871, %v4253, 0
        %v4389 = vsel %vm871, %v4255, 0
        %v4392 = vsel %vm871, %v4257, 0
        %4394 = vmatpush.bf16.msra.mxu0 %v4329
        %4395 = vmatpush.bf16.msra.mxu0 %v4328
        %4396 = vmatpush.bf16.msra.mxu0 %v4327
        %4397 = vmatpush.bf16.msra.mxu0 %v4326
        %4398 = vmatpush.bf16.msra.mxu0 %v4325
        %4399 = vmatpush.bf16.msra.mxu0 %v4324
        %4400 = vmatpush.bf16.msra.mxu0 %v4323
        %4401 = vmatpush.bf16.msra.mxu0 %v4322
        %4402 = vmatmul.bf16.gmra.mxu0 %v4226
        %v4403 = vpop.f32.mrf.mxu0
        %v4404 = vadd.f32 %v4051, %v4403
        %v4405 = vpop.f32.mrf.mxu0
        %v4406 = vadd.f32 %v4053, %v4405
        %4407 = vmatmul.bf16.gmra.mxu0 %v4228
        %v4408 = vpop.f32.mrf.mxu0
        %v4409 = vadd.f32 %v4056, %v4408
        %v4410 = vpop.f32.mrf.mxu0
        %v4411 = vadd.f32 %v4058, %v4410
        %4412 = vmatmul.bf16.gmra.mxu0 %v4230
        %v4413 = vpop.f32.mrf.mxu0
        %v4414 = vadd.f32 %v4061, %v4413
        %v4415 = vpop.f32.mrf.mxu0
        %v4416 = vadd.f32 %v4063, %v4415
        %4417 = vmatmul.bf16.gmra.mxu0 %v4232
        %v4418 = vpop.f32.mrf.mxu0
        %v4419 = vadd.f32 %v4066, %v4418
        %v4420 = vpop.f32.mrf.mxu0
        %v4421 = vadd.f32 %v4068, %v4420
        %4422 = vmatmul.bf16.gmra.mxu0 %v4234
        %v4423 = vpop.f32.mrf.mxu0
        %v4424 = vadd.f32 %v4071, %v4423
        %v4425 = vpop.f32.mrf.mxu0
        %v4426 = vadd.f32 %v4073, %v4425
        %4427 = vmatmul.bf16.gmra.mxu0 %v4236
        %v4428 = vpop.f32.mrf.mxu0
        %v4429 = vadd.f32 %v4076, %v4428
        %v4430 = vpop.f32.mrf.mxu0
        %v4431 = vadd.f32 %v4078, %v4430
        %4432 = vmatmul.bf16.gmra.mxu0 %v4238
        %v4433 = vpop.f32.mrf.mxu0
        %v4434 = vadd.f32 %v4081, %v4433
        %v4435 = vpop.f32.mrf.mxu0
        %v4436 = vadd.f32 %v4083, %v4435
        %4437 = vmatmul.bf16.gmra.mxu0 %v4240
        %v4438 = vpop.f32.mrf.mxu0
        %v4439 = vadd.f32 %v4086, %v4438
        %v4440 = vpop.f32.mrf.mxu0
        %v4441 = vadd.f32 %v4088, %v4440
        %4442 = vmatmul.bf16.gmra.mxu0 %v4242
        %v4443 = vpop.f32.mrf.mxu0
        %v4444 = vadd.f32 %v4091, %v4443
        %v4445 = vpop.f32.mrf.mxu0
        %v4446 = vadd.f32 %v4093, %v4445
        %4447 = vmatmul.bf16.gmra.mxu0 %v4244
        %v4448 = vpop.f32.mrf.mxu0
        %v4449 = vadd.f32 %v4096, %v4448
        %v4450 = vpop.f32.mrf.mxu0
        %v4451 = vadd.f32 %v4098, %v4450
        %4452 = vmatmul.bf16.gmra.mxu0 %v4246
        %v4453 = vpop.f32.mrf.mxu0
        %v4454 = vadd.f32 %v4101, %v4453
        %v4455 = vpop.f32.mrf.mxu0
        %v4456 = vadd.f32 %v4103, %v4455
        %4457 = vmatmul.bf16.gmra.mxu0 %v4248
        %v4458 = vpop.f32.mrf.mxu0
        %v4459 = vadd.f32 %v4106, %v4458
        %v4460 = vpop.f32.mrf.mxu0
        %v4461 = vadd.f32 %v4108, %v4460
        %4462 = vmatmul.bf16.gmra.mxu0 %v4250
        %v4463 = vpop.f32.mrf.mxu0
        %v4464 = vadd.f32 %v4111, %v4463
        %v4465 = vpop.f32.mrf.mxu0
        %v4466 = vadd.f32 %v4113, %v4465
        %4467 = vmatmul.bf16.gmra.mxu0 %v4252
        %v4468 = vpop.f32.mrf.mxu0
        %v4469 = vadd.f32 %v4116, %v4468
        %v4470 = vpop.f32.mrf.mxu0
        %v4471 = vadd.f32 %v4118, %v4470
        %4472 = vmatmul.bf16.gmra.mxu0 %v4254
        %v4473 = vpop.f32.mrf.mxu0
        %v4474 = vadd.f32 %v4121, %v4473
        %v4475 = vpop.f32.mrf.mxu0
        %v4476 = vadd.f32 %v4123, %v4475
        %4477 = vmatmul.bf16.gmra.mxu0 %v4256
        %v4478 = vpop.f32.mrf.mxu0
        %v4479 = vadd.f32 %v4126, %v4478
        %v4480 = vpop.f32.mrf.mxu0
        %v4481 = vadd.f32 %v4128, %v4480
        %4482 = vdwg.mxu0
        %4483 = vmatpush.bf16.msra.mxu0 0
        %4484 = vmatpush.bf16.msra.mxu0 0
        %4485 = vmatpush.bf16.msra.mxu0 0
        %4486 = vmatpush.bf16.msra.mxu0 0
        %4487 = vmatpush.bf16.msra.mxu0 %v4333
        %4488 = vmatpush.bf16.msra.mxu0 %v4332
        %4489 = vmatpush.bf16.msra.mxu0 %v4331
        %4490 = vmatpush.bf16.msra.mxu0 %v4330
        %4491 = vmatmul.bf16.gmra.mxu0 %v4347
        %v4492 = vpop.f32.mrf.mxu0
        %v4493 = vadd.f32 %v4404, %v4492
        %v4494 = vpop.f32.mrf.mxu0
        %v4495 = vadd.f32 %v4406, %v4494
        %4496 = vmatmul.bf16.gmra.mxu0 %v4350
        %v4497 = vpop.f32.mrf.mxu0
        %v4498 = vadd.f32 %v4409, %v4497
        %v4499 = vpop.f32.mrf.mxu0
        %v4500 = vadd.f32 %v4411, %v4499
        %4501 = vmatmul.bf16.gmra.mxu0 %v4353
        %v4502 = vpop.f32.mrf.mxu0
        %v4503 = vadd.f32 %v4414, %v4502
        %v4504 = vpop.f32.mrf.mxu0
        %v4505 = vadd.f32 %v4416, %v4504
        %4506 = vmatmul.bf16.gmra.mxu0 %v4356
        %v4507 = vpop.f32.mrf.mxu0
        %v4508 = vadd.f32 %v4419, %v4507
        %v4509 = vpop.f32.mrf.mxu0
        %v4510 = vadd.f32 %v4421, %v4509
        %4511 = vmatmul.bf16.gmra.mxu0 %v4359
        %v4512 = vpop.f32.mrf.mxu0
        %v4513 = vadd.f32 %v4424, %v4512
        %v4514 = vpop.f32.mrf.mxu0
        %v4515 = vadd.f32 %v4426, %v4514
        %4516 = vmatmul.bf16.gmra.mxu0 %v4362
        %v4517 = vpop.f32.mrf.mxu0
        %v4518 = vadd.f32 %v4429, %v4517
        %v4519 = vpop.f32.mrf.mxu0
        %v4520 = vadd.f32 %v4431, %v4519
        %4521 = vmatmul.bf16.gmra.mxu0 %v4365
        %v4522 = vpop.f32.mrf.mxu0
        %v4523 = vadd.f32 %v4434, %v4522
        %v4524 = vpop.f32.mrf.mxu0
        %v4525 = vadd.f32 %v4436, %v4524
        %4526 = vmatmul.bf16.gmra.mxu0 %v4368
        %v4527 = vpop.f32.mrf.mxu0
        %v4528 = vadd.f32 %v4439, %v4527
        %v4529 = vpop.f32.mrf.mxu0
        %v4530 = vadd.f32 %v4441, %v4529
        %4531 = vmatmul.bf16.gmra.mxu0 %v4371
        %v4532 = vpop.f32.mrf.mxu0
        %v4533 = vadd.f32 %v4444, %v4532
        %v4534 = vpop.f32.mrf.mxu0
        %v4535 = vadd.f32 %v4446, %v4534
        %4536 = vmatmul.bf16.gmra.mxu0 %v4374
        %v4537 = vpop.f32.mrf.mxu0
        %v4538 = vadd.f32 %v4449, %v4537
        %v4539 = vpop.f32.mrf.mxu0
        %v4540 = vadd.f32 %v4451, %v4539
        %4541 = vmatmul.bf16.gmra.mxu0 %v4377
        %v4542 = vpop.f32.mrf.mxu0
        %v4543 = vadd.f32 %v4454, %v4542
        %v4544 = vpop.f32.mrf.mxu0
        %v4545 = vadd.f32 %v4456, %v4544
        %4546 = vmatmul.bf16.gmra.mxu0 %v4380
        %v4547 = vpop.f32.mrf.mxu0
        %v4548 = vadd.f32 %v4459, %v4547
        %v4549 = vpop.f32.mrf.mxu0
        %v4550 = vadd.f32 %v4461, %v4549
        %4551 = vmatmul.bf16.gmra.mxu0 %v4383
        %v4552 = vpop.f32.mrf.mxu0
        %v4553 = vadd.f32 %v4464, %v4552
        %v4554 = vpop.f32.mrf.mxu0
        %v4555 = vadd.f32 %v4466, %v4554
        %4556 = vmatmul.bf16.gmra.mxu0 %v4386
        %v4557 = vpop.f32.mrf.mxu0
        %v4558 = vadd.f32 %v4469, %v4557
        %v4559 = vpop.f32.mrf.mxu0
        %v4560 = vadd.f32 %v4471, %v4559
        %4561 = vmatmul.bf16.gmra.mxu0 %v4389
        %v4562 = vpop.f32.mrf.mxu0
        %v4563 = vadd.f32 %v4474, %v4562
        %v4564 = vpop.f32.mrf.mxu0
        %v4565 = vadd.f32 %v4476, %v4564
        %4566 = vmatmul.bf16.gmra.mxu0 %v4392
        %v4567 = vpop.f32.mrf.mxu0
        %v4568 = vadd.f32 %v4479, %v4567
        %v4569 = vpop.f32.mrf.mxu0
        %v4570 = vadd.f32 %v4481, %v4569
        %4571 = vdwg.mxu0
        %s4572 = scalar_lea.vmem [#allocation3], 32
        %v4573 = vld [vmem:[%s4572] sm:$0xff]
        %v4574 = vld [vmem:[%s4572 + $0x8] sm:$0xff]
        %v4575 = vld [vmem:[%s4572 + $0x10] sm:$0xff]
        %v4576 = vld [vmem:[%s4572 + $0x18] sm:$0xff]
        %v4577 = vld [vmem:[%s4572 + $0x20] sm:$0xff]
        %v4578 = vld [vmem:[%s4572 + $0x28] sm:$0xff]
        %v4579 = vld [vmem:[%s4572 + $0x30] sm:$0xff]
        %v4580 = vld [vmem:[%s4572 + $0x38] sm:$0xff]
        %v4581 = vld [vmem:[%s4572 + $0x40] sm:$0xff]
        %v4582 = vld [vmem:[%s4572 + $0x48] sm:$0xff]
        %v4583 = vld [vmem:[%s4572 + $0x50] sm:$0xff]
        %v4584 = vld [vmem:[%s4572 + $0x58] sm:$0xff]
        %v4585 = vld [vmem:[%s4572 + $0x60] sm:$0xff]
        %v4586 = vld [vmem:[%s4572 + $0x68] sm:$0xff]
        %v4587 = vld [vmem:[%s4572 + $0x70] sm:$0xff]
        %v4588 = vld [vmem:[%s4572 + $0x78] sm:$0xff]
        %v4589 = vld [vmem:[%s4572 + $0x80] sm:$0xff]
        %v4590 = vld [vmem:[%s4572 + $0x88] sm:$0xff]
        %v4591 = vld [vmem:[%s4572 + $0x90] sm:$0xff]
        %v4592 = vld [vmem:[%s4572 + $0x98] sm:$0xff]
        %v4593 = vld [vmem:[%s4572 + $0xa0] sm:$0xff]
        %v4594 = vld [vmem:[%s4572 + $0xa8] sm:$0xff]
        %v4595 = vld [vmem:[%s4572 + $0xb0] sm:$0xff]
        %v4596 = vld [vmem:[%s4572 + $0xb8] sm:$0xff]
        %v4597 = vld [vmem:[%s4572 + $0xc0] sm:$0xff]
        %v4598 = vld [vmem:[%s4572 + $0xc8] sm:$0xff]
        %v4599 = vld [vmem:[%s4572 + $0xd0] sm:$0xff]
        %v4600 = vld [vmem:[%s4572 + $0xd8] sm:$0xff]
        %v4601 = vld [vmem:[%s4572 + $0xe0] sm:$0xff]
        %v4602 = vld [vmem:[%s4572 + $0xe8] sm:$0xff]
        %v4603 = vld [vmem:[%s4572 + $0xf0] sm:$0xff]
        %v4604 = vld [vmem:[%s4572 + $0xf8] sm:$0xff]
        %s4605 = scalar_lea.vmem %s4, 192
        %v4606 = vld [vmem:[%s4605] sm:$0xf]
        %v4607 = vld [vmem:[%s4605 + $0x4] sm:$0xf]
        %v4608 = vld [vmem:[%s4605 + $0x8] sm:$0xf]
        %v4609 = vld [vmem:[%s4605 + $0xc] sm:$0xf]
        %v4610 = vld [vmem:[%s4605 + $0x10] sm:$0xf]
        %v4611 = vld [vmem:[%s4605 + $0x14] sm:$0xf]
        %v4612 = vld [vmem:[%s4605 + $0x18] sm:$0xf]
        %v4613 = vld [vmem:[%s4605 + $0x1c] sm:$0xf]
        %v4614 = vld [vmem:[%s4605 + $0x20] sm:$0xf]
        %v4615 = vld [vmem:[%s4605 + $0x24] sm:$0xf]
        %v4616 = vld [vmem:[%s4605 + $0x28] sm:$0xf]
        %v4617 = vld [vmem:[%s4605 + $0x2c] sm:$0xf]
        %v4618 = vld [vmem:[%s4605 + $0x30] sm:$0xf]
        %v4619 = vld [vmem:[%s4605 + $0x34] sm:$0xf]
        %v4620 = vld [vmem:[%s4605 + $0x38] sm:$0xf]
        %v4621 = vld [vmem:[%s4605 + $0x3c] sm:$0xf]
        %v4622 = vld [vmem:[%s4605 + $0x40] sm:$0xf]
        %v4623 = vld [vmem:[%s4605 + $0x44] sm:$0xf]
        %v4624 = vld [vmem:[%s4605 + $0x48] sm:$0xf]
        %v4625 = vld [vmem:[%s4605 + $0x4c] sm:$0xf]
        %v4626 = vld [vmem:[%s4605 + $0x50] sm:$0xf]
        %v4627 = vld [vmem:[%s4605 + $0x54] sm:$0xf]
        %v4628 = vld [vmem:[%s4605 + $0x58] sm:$0xf]
        %v4629 = vld [vmem:[%s4605 + $0x5c] sm:$0xf]
        %v4662 = vunpack.c.l.b16 %v4573
        %v4663 = vunpack.c.h.b16 %v4573
        %v4664 = vunpack.c.l.b16 %v4574
        %v4665 = vunpack.c.h.b16 %v4574
        %v4666 = vunpack.c.l.b16 %v4575
        %v4667 = vunpack.c.h.b16 %v4575
        %v4668 = vunpack.c.l.b16 %v4576
        %v4669 = vunpack.c.h.b16 %v4576
        %v4670 = vunpack.c.l.b16 %v4577
        %v4671 = vunpack.c.h.b16 %v4577
        %v4672 = vunpack.c.l.b16 %v4578
        %v4673 = vunpack.c.h.b16 %v4578
        %v4674 = vunpack.c.l.b16 %v4579
        %v4675 = vunpack.c.h.b16 %v4579
        %v4676 = vunpack.c.l.b16 %v4580
        %v4677 = vunpack.c.h.b16 %v4580
        %v4678 = vunpack.c.l.b16 %v4581
        %v4679 = vunpack.c.h.b16 %v4581
        %v4680 = vunpack.c.l.b16 %v4582
        %v4681 = vunpack.c.h.b16 %v4582
        %v4682 = vunpack.c.l.b16 %v4583
        %v4683 = vunpack.c.h.b16 %v4583
        %v4684 = vunpack.c.l.b16 %v4584
        %v4685 = vunpack.c.h.b16 %v4584
        %v4686 = vunpack.c.l.b16 %v4585
        %v4687 = vunpack.c.h.b16 %v4585
        %v4688 = vunpack.c.l.b16 %v4586
        %v4689 = vunpack.c.h.b16 %v4586
        %v4690 = vunpack.c.l.b16 %v4587
        %v4691 = vunpack.c.h.b16 %v4587
        %v4692 = vunpack.c.l.b16 %v4588
        %v4693 = vunpack.c.h.b16 %v4588
        %v4694 = vunpack.c.l.b16 %v4589
        %v4695 = vunpack.c.h.b16 %v4589
        %v4696 = vunpack.c.l.b16 %v4590
        %v4697 = vunpack.c.h.b16 %v4590
        %v4698 = vunpack.c.l.b16 %v4591
        %v4699 = vunpack.c.h.b16 %v4591
        %v4700 = vunpack.c.l.b16 %v4592
        %v4701 = vunpack.c.h.b16 %v4592
        %v4702 = vunpack.c.l.b16 %v4593
        %v4703 = vunpack.c.h.b16 %v4593
        %v4704 = vunpack.c.l.b16 %v4594
        %v4705 = vunpack.c.h.b16 %v4594
        %v4706 = vunpack.c.l.b16 %v4595
        %v4707 = vunpack.c.h.b16 %v4595
        %v4708 = vunpack.c.l.b16 %v4596
        %v4709 = vunpack.c.h.b16 %v4596
        %v4710 = vunpack.c.l.b16 %v4597
        %v4711 = vunpack.c.h.b16 %v4597
        %v4712 = vunpack.c.l.b16 %v4598
        %v4713 = vunpack.c.h.b16 %v4598
        %v4714 = vunpack.c.l.b16 %v4599
        %v4715 = vunpack.c.h.b16 %v4599
        %v4716 = vunpack.c.l.b16 %v4600
        %v4717 = vunpack.c.h.b16 %v4600
        %v4718 = vunpack.c.l.b16 %v4601
        %v4719 = vunpack.c.h.b16 %v4601
        %v4720 = vunpack.c.l.b16 %v4602
        %v4721 = vunpack.c.h.b16 %v4602
        %v4722 = vunpack.c.l.b16 %v4603
        %v4723 = vunpack.c.h.b16 %v4603
        %v4724 = vunpack.c.l.b16 %v4604
        %v4725 = vunpack.c.h.b16 %v4604
        %v4726 = vpack.c.b16 %v4664, %v4662
        %v4727 = vpack.c.b16 %v4665, %v4663
        %v4728 = vpack.c.b16 %v4668, %v4666
        %v4729 = vpack.c.b16 %v4669, %v4667
        %v4730 = vpack.c.b16 %v4672, %v4670
        %v4731 = vpack.c.b16 %v4673, %v4671
        %v4732 = vpack.c.b16 %v4676, %v4674
        %v4733 = vpack.c.b16 %v4677, %v4675
        %v4734 = vpack.c.b16 %v4680, %v4678
        %v4735 = vpack.c.b16 %v4681, %v4679
        %v4736 = vpack.c.b16 %v4684, %v4682
        %v4737 = vpack.c.b16 %v4685, %v4683
        %v4738 = vpack.c.b16 %v4688, %v4686
        %v4739 = vpack.c.b16 %v4689, %v4687
        %v4740 = vpack.c.b16 %v4692, %v4690
        %v4741 = vpack.c.b16 %v4693, %v4691
        %v4742 = vpack.c.b16 %v4696, %v4694
        %v4743 = vpack.c.b16 %v4697, %v4695
        %v4744 = vpack.c.b16 %v4700, %v4698
        %v4745 = vpack.c.b16 %v4701, %v4699
        %v4746 = vpack.c.b16 %v4704, %v4702
        %v4747 = vpack.c.b16 %v4705, %v4703
        %v4748 = vpack.c.b16 %v4708, %v4706
        %v4749 = vpack.c.b16 %v4709, %v4707
        %v4750 = vpack.c.b16 %v4712, %v4710
        %v4751 = vpack.c.b16 %v4713, %v4711
        %v4752 = vpack.c.b16 %v4716, %v4714
        %v4753 = vpack.c.b16 %v4717, %v4715
        %v4754 = vpack.c.b16 %v4720, %v4718
        %v4755 = vpack.c.b16 %v4721, %v4719
        %v4756 = vpack.c.b16 %v4724, %v4722
        %v4757 = vpack.c.b16 %v4725, %v4723
        %v4798 = vunpack.c.l.b16 %v4606
        %v4799 = vunpack.c.l.b16 %v4607
        %v4800 = vunpack.c.l.b16 %v4608
        %v4801 = vunpack.c.l.b16 %v4609
        %v4802 = vunpack.c.l.b16 %v4610
        %v4803 = vunpack.c.l.b16 %v4611
        %v4804 = vunpack.c.l.b16 %v4612
        %v4805 = vunpack.c.l.b16 %v4613
        %v4806 = vunpack.c.l.b16 %v4614
        %v4807 = vunpack.c.l.b16 %v4615
        %v4808 = vunpack.c.l.b16 %v4616
        %v4809 = vunpack.c.l.b16 %v4617
        %v4810 = vunpack.c.l.b16 %v4618
        %v4811 = vunpack.c.l.b16 %v4619
        %v4812 = vunpack.c.l.b16 %v4620
        %v4813 = vunpack.c.l.b16 %v4621
        %v4814 = vunpack.c.l.b16 %v4622
        %v4815 = vunpack.c.l.b16 %v4623
        %v4816 = vunpack.c.l.b16 %v4624
        %v4817 = vunpack.c.l.b16 %v4625
        %v4818 = vunpack.c.l.b16 %v4626
        %v4819 = vunpack.c.l.b16 %v4627
        %v4820 = vunpack.c.l.b16 %v4628
        %v4821 = vunpack.c.l.b16 %v4629
        %v4822 = vpack.c.b16 %v4799, %v4798
        %v4823 = vpack.c.b16 %v4801, %v4800
        %v4824 = vpack.c.b16 %v4803, %v4802
        %v4825 = vpack.c.b16 %v4805, %v4804
        %v4826 = vpack.c.b16 %v4807, %v4806
        %v4827 = vpack.c.b16 %v4809, %v4808
        %v4828 = vpack.c.b16 %v4811, %v4810
        %v4829 = vpack.c.b16 %v4813, %v4812
        %v4830 = vpack.c.b16 %v4815, %v4814
        %v4831 = vpack.c.b16 %v4817, %v4816
        %v4832 = vpack.c.b16 %v4819, %v4818
        %v4833 = vpack.c.b16 %v4821, %v4820
        %v4847 = vsel %vm871, %v4727, 0
        %v4850 = vsel %vm871, %v4729, 0
        %v4853 = vsel %vm871, %v4731, 0
        %v4856 = vsel %vm871, %v4733, 0
        %v4859 = vsel %vm871, %v4735, 0
        %v4862 = vsel %vm871, %v4737, 0
        %v4865 = vsel %vm871, %v4739, 0
        %v4868 = vsel %vm871, %v4741, 0
        %v4871 = vsel %vm871, %v4743, 0
        %v4874 = vsel %vm871, %v4745, 0
        %v4877 = vsel %vm871, %v4747, 0
        %v4880 = vsel %vm871, %v4749, 0
        %v4883 = vsel %vm871, %v4751, 0
        %v4886 = vsel %vm871, %v4753, 0
        %v4889 = vsel %vm871, %v4755, 0
        %v4892 = vsel %vm871, %v4757, 0
        %4894 = vmatpush.bf16.msra.mxu0 %v4829
        %4895 = vmatpush.bf16.msra.mxu0 %v4828
        %4896 = vmatpush.bf16.msra.mxu0 %v4827
        %4897 = vmatpush.bf16.msra.mxu0 %v4826
        %4898 = vmatpush.bf16.msra.mxu0 %v4825
        %4899 = vmatpush.bf16.msra.mxu0 %v4824
        %4900 = vmatpush.bf16.msra.mxu0 %v4823
        %4901 = vmatpush.bf16.msra.mxu0 %v4822
        %4902 = vmatmul.bf16.gmra.mxu0 %v4726
        %v4903 = vpop.f32.mrf.mxu0
        %v4904 = vadd.f32 0.0, %v4903
        %v4905 = vpop.f32.mrf.mxu0
        %v4906 = vadd.f32 0.0, %v4905
        %4907 = vmatmul.bf16.gmra.mxu0 %v4728
        %v4908 = vpop.f32.mrf.mxu0
        %v4909 = vadd.f32 0.0, %v4908
        %v4910 = vpop.f32.mrf.mxu0
        %v4911 = vadd.f32 0.0, %v4910
        %4912 = vmatmul.bf16.gmra.mxu0 %v4730
        %v4913 = vpop.f32.mrf.mxu0
        %v4914 = vadd.f32 0.0, %v4913
        %v4915 = vpop.f32.mrf.mxu0
        %v4916 = vadd.f32 0.0, %v4915
        %4917 = vmatmul.bf16.gmra.mxu0 %v4732
        %v4918 = vpop.f32.mrf.mxu0
        %v4919 = vadd.f32 0.0, %v4918
        %v4920 = vpop.f32.mrf.mxu0
        %v4921 = vadd.f32 0.0, %v4920
        %4922 = vmatmul.bf16.gmra.mxu0 %v4734
        %v4923 = vpop.f32.mrf.mxu0
        %v4924 = vadd.f32 0.0, %v4923
        %v4925 = vpop.f32.mrf.mxu0
        %v4926 = vadd.f32 0.0, %v4925
        %4927 = vmatmul.bf16.gmra.mxu0 %v4736
        %v4928 = vpop.f32.mrf.mxu0
        %v4929 = vadd.f32 0.0, %v4928
        %v4930 = vpop.f32.mrf.mxu0
        %v4931 = vadd.f32 0.0, %v4930
        %4932 = vmatmul.bf16.gmra.mxu0 %v4738
        %v4933 = vpop.f32.mrf.mxu0
        %v4934 = vadd.f32 0.0, %v4933
        %v4935 = vpop.f32.mrf.mxu0
        %v4936 = vadd.f32 0.0, %v4935
        %4937 = vmatmul.bf16.gmra.mxu0 %v4740
        %v4938 = vpop.f32.mrf.mxu0
        %v4939 = vadd.f32 0.0, %v4938
        %v4940 = vpop.f32.mrf.mxu0
        %v4941 = vadd.f32 0.0, %v4940
        %4942 = vmatmul.bf16.gmra.mxu0 %v4742
        %v4943 = vpop.f32.mrf.mxu0
        %v4944 = vadd.f32 0.0, %v4943
        %v4945 = vpop.f32.mrf.mxu0
        %v4946 = vadd.f32 0.0, %v4945
        %4947 = vmatmul.bf16.gmra.mxu0 %v4744
        %v4948 = vpop.f32.mrf.mxu0
        %v4949 = vadd.f32 0.0, %v4948
        %v4950 = vpop.f32.mrf.mxu0
        %v4951 = vadd.f32 0.0, %v4950
        %4952 = vmatmul.bf16.gmra.mxu0 %v4746
        %v4953 = vpop.f32.mrf.mxu0
        %v4954 = vadd.f32 0.0, %v4953
        %v4955 = vpop.f32.mrf.mxu0
        %v4956 = vadd.f32 0.0, %v4955
        %4957 = vmatmul.bf16.gmra.mxu0 %v4748
        %v4958 = vpop.f32.mrf.mxu0
        %v4959 = vadd.f32 0.0, %v4958
        %v4960 = vpop.f32.mrf.mxu0
        %v4961 = vadd.f32 0.0, %v4960
        %4962 = vmatmul.bf16.gmra.mxu0 %v4750
        %v4963 = vpop.f32.mrf.mxu0
        %v4964 = vadd.f32 0.0, %v4963
        %v4965 = vpop.f32.mrf.mxu0
        %v4966 = vadd.f32 0.0, %v4965
        %4967 = vmatmul.bf16.gmra.mxu0 %v4752
        %v4968 = vpop.f32.mrf.mxu0
        %v4969 = vadd.f32 0.0, %v4968
        %v4970 = vpop.f32.mrf.mxu0
        %v4971 = vadd.f32 0.0, %v4970
        %4972 = vmatmul.bf16.gmra.mxu0 %v4754
        %v4973 = vpop.f32.mrf.mxu0
        %v4974 = vadd.f32 0.0, %v4973
        %v4975 = vpop.f32.mrf.mxu0
        %v4976 = vadd.f32 0.0, %v4975
        %4977 = vmatmul.bf16.gmra.mxu0 %v4756
        %v4978 = vpop.f32.mrf.mxu0
        %v4979 = vadd.f32 0.0, %v4978
        %v4980 = vpop.f32.mrf.mxu0
        %v4981 = vadd.f32 0.0, %v4980
        %4982 = vdwg.mxu0
        %4983 = vmatpush.bf16.msra.mxu0 0
        %4984 = vmatpush.bf16.msra.mxu0 0
        %4985 = vmatpush.bf16.msra.mxu0 0
        %4986 = vmatpush.bf16.msra.mxu0 0
        %4987 = vmatpush.bf16.msra.mxu0 %v4833
        %4988 = vmatpush.bf16.msra.mxu0 %v4832
        %4989 = vmatpush.bf16.msra.mxu0 %v4831
        %4990 = vmatpush.bf16.msra.mxu0 %v4830
        %4991 = vmatmul.bf16.gmra.mxu0 %v4847
        %v4992 = vpop.f32.mrf.mxu0
        %v4993 = vadd.f32 %v4904, %v4992
        %v4994 = vpop.f32.mrf.mxu0
        %v4995 = vadd.f32 %v4906, %v4994
        %4996 = vmatmul.bf16.gmra.mxu0 %v4850
        %v4997 = vpop.f32.mrf.mxu0
        %v4998 = vadd.f32 %v4909, %v4997
        %v4999 = vpop.f32.mrf.mxu0
        %v5000 = vadd.f32 %v4911, %v4999
        %5001 = vmatmul.bf16.gmra.mxu0 %v4853
        %v5002 = vpop.f32.mrf.mxu0
        %v5003 = vadd.f32 %v4914, %v5002
        %v5004 = vpop.f32.mrf.mxu0
        %v5005 = vadd.f32 %v4916, %v5004
        %5006 = vmatmul.bf16.gmra.mxu0 %v4856
        %v5007 = vpop.f32.mrf.mxu0
        %v5008 = vadd.f32 %v4919, %v5007
        %v5009 = vpop.f32.mrf.mxu0
        %v5010 = vadd.f32 %v4921, %v5009
        %5011 = vmatmul.bf16.gmra.mxu0 %v4859
        %v5012 = vpop.f32.mrf.mxu0
        %v5013 = vadd.f32 %v4924, %v5012
        %v5014 = vpop.f32.mrf.mxu0
        %v5015 = vadd.f32 %v4926, %v5014
        %5016 = vmatmul.bf16.gmra.mxu0 %v4862
        %v5017 = vpop.f32.mrf.mxu0
        %v5018 = vadd.f32 %v4929, %v5017
        %v5019 = vpop.f32.mrf.mxu0
        %v5020 = vadd.f32 %v4931, %v5019
        %5021 = vmatmul.bf16.gmra.mxu0 %v4865
        %v5022 = vpop.f32.mrf.mxu0
        %v5023 = vadd.f32 %v4934, %v5022
        %v5024 = vpop.f32.mrf.mxu0
        %v5025 = vadd.f32 %v4936, %v5024
        %5026 = vmatmul.bf16.gmra.mxu0 %v4868
        %v5027 = vpop.f32.mrf.mxu0
        %v5028 = vadd.f32 %v4939, %v5027
        %v5029 = vpop.f32.mrf.mxu0
        %v5030 = vadd.f32 %v4941, %v5029
        %5031 = vmatmul.bf16.gmra.mxu0 %v4871
        %v5032 = vpop.f32.mrf.mxu0
        %v5033 = vadd.f32 %v4944, %v5032
        %v5034 = vpop.f32.mrf.mxu0
        %v5035 = vadd.f32 %v4946, %v5034
        %5036 = vmatmul.bf16.gmra.mxu0 %v4874
        %v5037 = vpop.f32.mrf.mxu0
        %v5038 = vadd.f32 %v4949, %v5037
        %v5039 = vpop.f32.mrf.mxu0
        %v5040 = vadd.f32 %v4951, %v5039
        %5041 = vmatmul.bf16.gmra.mxu0 %v4877
        %v5042 = vpop.f32.mrf.mxu0
        %v5043 = vadd.f32 %v4954, %v5042
        %v5044 = vpop.f32.mrf.mxu0
        %v5045 = vadd.f32 %v4956, %v5044
        %5046 = vmatmul.bf16.gmra.mxu0 %v4880
        %v5047 = vpop.f32.mrf.mxu0
        %v5048 = vadd.f32 %v4959, %v5047
        %v5049 = vpop.f32.mrf.mxu0
        %v5050 = vadd.f32 %v4961, %v5049
        %5051 = vmatmul.bf16.gmra.mxu0 %v4883
        %v5052 = vpop.f32.mrf.mxu0
        %v5053 = vadd.f32 %v4964, %v5052
        %v5054 = vpop.f32.mrf.mxu0
        %v5055 = vadd.f32 %v4966, %v5054
        %5056 = vmatmul.bf16.gmra.mxu0 %v4886
        %v5057 = vpop.f32.mrf.mxu0
        %v5058 = vadd.f32 %v4969, %v5057
        %v5059 = vpop.f32.mrf.mxu0
        %v5060 = vadd.f32 %v4971, %v5059
        %5061 = vmatmul.bf16.gmra.mxu0 %v4889
        %v5062 = vpop.f32.mrf.mxu0
        %v5063 = vadd.f32 %v4974, %v5062
        %v5064 = vpop.f32.mrf.mxu0
        %v5065 = vadd.f32 %v4976, %v5064
        %5066 = vmatmul.bf16.gmra.mxu0 %v4892
        %v5067 = vpop.f32.mrf.mxu0
        %v5068 = vadd.f32 %v4979, %v5067
        %v5069 = vpop.f32.mrf.mxu0
        %v5070 = vadd.f32 %v4981, %v5069
        %5071 = vdwg.mxu0
        %v5072 = vadd.f32 %v4493, %v4993
        %v5073 = vadd.f32 %v4495, %v4995
        %v5074 = vadd.f32 %v4498, %v4998
        %v5075 = vadd.f32 %v4500, %v5000
        %v5076 = vadd.f32 %v4503, %v5003
        %v5077 = vadd.f32 %v4505, %v5005
        %v5078 = vadd.f32 %v4508, %v5008
        %v5079 = vadd.f32 %v4510, %v5010
        %v5080 = vadd.f32 %v4513, %v5013
        %v5081 = vadd.f32 %v4515, %v5015
        %v5082 = vadd.f32 %v4518, %v5018
        %v5083 = vadd.f32 %v4520, %v5020
        %v5084 = vadd.f32 %v4523, %v5023
        %v5085 = vadd.f32 %v4525, %v5025
        %v5086 = vadd.f32 %v4528, %v5028
        %v5087 = vadd.f32 %v4530, %v5030
        %v5088 = vadd.f32 %v4533, %v5033
        %v5089 = vadd.f32 %v4535, %v5035
        %v5090 = vadd.f32 %v4538, %v5038
        %v5091 = vadd.f32 %v4540, %v5040
        %v5092 = vadd.f32 %v4543, %v5043
        %v5093 = vadd.f32 %v4545, %v5045
        %v5094 = vadd.f32 %v4548, %v5048
        %v5095 = vadd.f32 %v4550, %v5050
        %v5096 = vadd.f32 %v4553, %v5053
        %v5097 = vadd.f32 %v4555, %v5055
        %v5098 = vadd.f32 %v4558, %v5058
        %v5099 = vadd.f32 %v4560, %v5060
        %v5100 = vadd.f32 %v4563, %v5063
        %v5101 = vadd.f32 %v4565, %v5065
        %v5102 = vadd.f32 %v4568, %v5068
        %v5103 = vadd.f32 %v4570, %v5070
        %v5104 = vld [vmem:[%s5] sm:$0x1]
        %v5106 = vperm.slane %v5104, 0
        %v5108 = vadd.f32 %v5072, %v5106
        %v5109 = vadd.f32 %v5073, %v5106
        %v5110 = vadd.f32 %v5074, %v5106
        %v5111 = vadd.f32 %v5075, %v5106
        %v5112 = vadd.f32 %v5076, %v5106
        %v5113 = vadd.f32 %v5077, %v5106
        %v5114 = vadd.f32 %v5078, %v5106
        %v5115 = vadd.f32 %v5079, %v5106
        %v5116 = vadd.f32 %v5080, %v5106
        %v5117 = vadd.f32 %v5081, %v5106
        %v5118 = vadd.f32 %v5082, %v5106
        %v5119 = vadd.f32 %v5083, %v5106
        %v5120 = vadd.f32 %v5084, %v5106
        %v5121 = vadd.f32 %v5085, %v5106
        %v5122 = vadd.f32 %v5086, %v5106
        %v5123 = vadd.f32 %v5087, %v5106
        %v5124 = vadd.f32 %v5088, %v5106
        %v5125 = vadd.f32 %v5089, %v5106
        %v5126 = vadd.f32 %v5090, %v5106
        %v5127 = vadd.f32 %v5091, %v5106
        %v5128 = vadd.f32 %v5092, %v5106
        %v5129 = vadd.f32 %v5093, %v5106
        %v5130 = vadd.f32 %v5094, %v5106
        %v5131 = vadd.f32 %v5095, %v5106
        %v5132 = vadd.f32 %v5096, %v5106
        %v5133 = vadd.f32 %v5097, %v5106
        %v5134 = vadd.f32 %v5098, %v5106
        %v5135 = vadd.f32 %v5099, %v5106
        %v5136 = vadd.f32 %v5100, %v5106
        %v5137 = vadd.f32 %v5101, %v5106
        %v5138 = vadd.f32 %v5102, %v5106
        %v5139 = vadd.f32 %v5103, %v5106
        %v5140 = vld [vmem:[%s301] sm:$0xff]
        %v5141 = vld [vmem:[%s301 + $0x8] sm:$0xff]
        %v5142 = vld [vmem:[%s301 + $0x10] sm:$0xff]
        %v5143 = vld [vmem:[%s301 + $0x18] sm:$0xff]
        %v5144 = vld [vmem:[%s301 + $0x20] sm:$0xff]
        %v5145 = vld [vmem:[%s301 + $0x28] sm:$0xff]
        %v5146 = vld [vmem:[%s301 + $0x30] sm:$0xff]
        %v5147 = vld [vmem:[%s301 + $0x38] sm:$0xff]
        %v5148 = vld [vmem:[%s301 + $0x40] sm:$0xff]
        %v5149 = vld [vmem:[%s301 + $0x48] sm:$0xff]
        %v5150 = vld [vmem:[%s301 + $0x50] sm:$0xff]
        %v5151 = vld [vmem:[%s301 + $0x58] sm:$0xff]
        %v5152 = vld [vmem:[%s301 + $0x60] sm:$0xff]
        %v5153 = vld [vmem:[%s301 + $0x68] sm:$0xff]
        %v5154 = vld [vmem:[%s301 + $0x70] sm:$0xff]
        %v5155 = vld [vmem:[%s301 + $0x78] sm:$0xff]
        %v5156 = vld [vmem:[%s301 + $0x80] sm:$0xff]
        %v5157 = vld [vmem:[%s301 + $0x88] sm:$0xff]
        %v5158 = vld [vmem:[%s301 + $0x90] sm:$0xff]
        %v5159 = vld [vmem:[%s301 + $0x98] sm:$0xff]
        %v5160 = vld [vmem:[%s301 + $0xa0] sm:$0xff]
        %v5161 = vld [vmem:[%s301 + $0xa8] sm:$0xff]
        %v5162 = vld [vmem:[%s301 + $0xb0] sm:$0xff]
        %v5163 = vld [vmem:[%s301 + $0xb8] sm:$0xff]
        %v5164 = vld [vmem:[%s301 + $0xc0] sm:$0xff]
        %v5165 = vld [vmem:[%s301 + $0xc8] sm:$0xff]
        %v5166 = vld [vmem:[%s301 + $0xd0] sm:$0xff]
        %v5167 = vld [vmem:[%s301 + $0xd8] sm:$0xff]
        %v5168 = vld [vmem:[%s301 + $0xe0] sm:$0xff]
        %v5169 = vld [vmem:[%s301 + $0xe8] sm:$0xff]
        %v5170 = vld [vmem:[%s301 + $0xf0] sm:$0xff]
        %v5171 = vld [vmem:[%s301 + $0xf8] sm:$0xff]
        %v5172 = vadd.f32 %v5108, %v5140
        %v5173 = vadd.f32 %v5109, %v5141
        %v5174 = vadd.f32 %v5110, %v5142
        %v5175 = vadd.f32 %v5111, %v5143
        %v5176 = vadd.f32 %v5112, %v5144
        %v5177 = vadd.f32 %v5113, %v5145
        %v5178 = vadd.f32 %v5114, %v5146
        %v5179 = vadd.f32 %v5115, %v5147
        %v5180 = vadd.f32 %v5116, %v5148
        %v5181 = vadd.f32 %v5117, %v5149
        %v5182 = vadd.f32 %v5118, %v5150
        %v5183 = vadd.f32 %v5119, %v5151
        %v5184 = vadd.f32 %v5120, %v5152
        %v5185 = vadd.f32 %v5121, %v5153
        %v5186 = vadd.f32 %v5122, %v5154
        %v5187 = vadd.f32 %v5123, %v5155
        %v5188 = vadd.f32 %v5124, %v5156
        %v5189 = vadd.f32 %v5125, %v5157
        %v5190 = vadd.f32 %v5126, %v5158
        %v5191 = vadd.f32 %v5127, %v5159
        %v5192 = vadd.f32 %v5128, %v5160
        %v5193 = vadd.f32 %v5129, %v5161
        %v5194 = vadd.f32 %v5130, %v5162
        %v5195 = vadd.f32 %v5131, %v5163
        %v5196 = vadd.f32 %v5132, %v5164
        %v5197 = vadd.f32 %v5133, %v5165
        %v5198 = vadd.f32 %v5134, %v5166
        %v5199 = vadd.f32 %v5135, %v5167
        %v5200 = vadd.f32 %v5136, %v5168
        %v5201 = vadd.f32 %v5137, %v5169
        %v5202 = vadd.f32 %v5138, %v5170
        %v5203 = vadd.f32 %v5139, %v5171
        %v5204 = vmax.f32 %v5172, 0.0
        %v5205 = vmax.f32 %v5173, 0.0
        %v5206 = vmax.f32 %v5174, 0.0
        %v5207 = vmax.f32 %v5175, 0.0
        %v5208 = vmax.f32 %v5176, 0.0
        %v5209 = vmax.f32 %v5177, 0.0
        %v5210 = vmax.f32 %v5178, 0.0
        %v5211 = vmax.f32 %v5179, 0.0
        %v5212 = vmax.f32 %v5180, 0.0
        %v5213 = vmax.f32 %v5181, 0.0
        %v5214 = vmax.f32 %v5182, 0.0
        %v5215 = vmax.f32 %v5183, 0.0
        %v5216 = vmax.f32 %v5184, 0.0
        %v5217 = vmax.f32 %v5185, 0.0
        %v5218 = vmax.f32 %v5186, 0.0
        %v5219 = vmax.f32 %v5187, 0.0
        %v5220 = vmax.f32 %v5188, 0.0
        %v5221 = vmax.f32 %v5189, 0.0
        %v5222 = vmax.f32 %v5190, 0.0
        %v5223 = vmax.f32 %v5191, 0.0
        %v5224 = vmax.f32 %v5192, 0.0
        %v5225 = vmax.f32 %v5193, 0.0
        %v5226 = vmax.f32 %v5194, 0.0
        %v5227 = vmax.f32 %v5195, 0.0
        %v5228 = vmax.f32 %v5196, 0.0
        %v5229 = vmax.f32 %v5197, 0.0
        %v5230 = vmax.f32 %v5198, 0.0
        %v5231 = vmax.f32 %v5199, 0.0
        %v5232 = vmax.f32 %v5200, 0.0
        %v5233 = vmax.f32 %v5201, 0.0
        %v5234 = vmax.f32 %v5202, 0.0
        %v5235 = vmax.f32 %v5203, 0.0
        %5236 = vst.msk [vmem:[%s286] sm:$0xff] %vm871, %v5204
        %5237 = vst.msk [vmem:[%s286 + $0x8] sm:$0xff] %vm871, %v5205
        %5238 = vst.msk [vmem:[%s286 + $0x10] sm:$0xff] %vm871, %v5206
        %5239 = vst.msk [vmem:[%s286 + $0x18] sm:$0xff] %vm871, %v5207
        %5240 = vst.msk [vmem:[%s286 + $0x20] sm:$0xff] %vm871, %v5208
        %5241 = vst.msk [vmem:[%s286 + $0x28] sm:$0xff] %vm871, %v5209
        %5242 = vst.msk [vmem:[%s286 + $0x30] sm:$0xff] %vm871, %v5210
        %5243 = vst.msk [vmem:[%s286 + $0x38] sm:$0xff] %vm871, %v5211
        %5244 = vst.msk [vmem:[%s286 + $0x40] sm:$0xff] %vm871, %v5212
        %5245 = vst.msk [vmem:[%s286 + $0x48] sm:$0xff] %vm871, %v5213
        %5246 = vst.msk [vmem:[%s286 + $0x50] sm:$0xff] %vm871, %v5214
        %5247 = vst.msk [vmem:[%s286 + $0x58] sm:$0xff] %vm871, %v5215
        %5248 = vst.msk [vmem:[%s286 + $0x60] sm:$0xff] %vm871, %v5216
        %5249 = vst.msk [vmem:[%s286 + $0x68] sm:$0xff] %vm871, %v5217
        %5250 = vst.msk [vmem:[%s286 + $0x70] sm:$0xff] %vm871, %v5218
        %5251 = vst.msk [vmem:[%s286 + $0x78] sm:$0xff] %vm871, %v5219
        %5252 = vst.msk [vmem:[%s286 + $0x80] sm:$0xff] %vm871, %v5220
        %5253 = vst.msk [vmem:[%s286 + $0x88] sm:$0xff] %vm871, %v5221
        %5254 = vst.msk [vmem:[%s286 + $0x90] sm:$0xff] %vm871, %v5222
        %5255 = vst.msk [vmem:[%s286 + $0x98] sm:$0xff] %vm871, %v5223
        %5256 = vst.msk [vmem:[%s286 + $0xa0] sm:$0xff] %vm871, %v5224
        %5257 = vst.msk [vmem:[%s286 + $0xa8] sm:$0xff] %vm871, %v5225
        %5258 = vst.msk [vmem:[%s286 + $0xb0] sm:$0xff] %vm871, %v5226
        %5259 = vst.msk [vmem:[%s286 + $0xb8] sm:$0xff] %vm871, %v5227
        %5260 = vst.msk [vmem:[%s286 + $0xc0] sm:$0xff] %vm871, %v5228
        %5261 = vst.msk [vmem:[%s286 + $0xc8] sm:$0xff] %vm871, %v5229
        %5262 = vst.msk [vmem:[%s286 + $0xd0] sm:$0xff] %vm871, %v5230
        %5263 = vst.msk [vmem:[%s286 + $0xd8] sm:$0xff] %vm871, %v5231
        %5264 = vst.msk [vmem:[%s286 + $0xe0] sm:$0xff] %vm871, %v5232
        %5265 = vst.msk [vmem:[%s286 + $0xe8] sm:$0xff] %vm871, %v5233
        %5266 = vst.msk [vmem:[%s286 + $0xf0] sm:$0xff] %vm871, %v5234
        %5267 = vst.msk [vmem:[%s286 + $0xf8] sm:$0xff] %vm871, %v5235
        %s5268 = sand.u32 %s180, 1
        %s5269 = scalar_lea.sflag [#allocation5], %s5268
        %s5270 = sand.u32 %s180, 1
        %s5271 = smul.addr %s5270, 256
        %s5272 = scalar_lea.vmem [#allocation4], %s5271
        // Predicated region
        $region53: #{basic_block_forward.1} parent=43 // pred_check
          %p5273 = pneg %p190
        $region54: #{basic_block_forward.1} parent=43 // pred_check_branch
          %5275 = sbr.rel (%p5273) target = $region56
        $region55: #{basic_block_forward.1} parent=43 // pred_region
          %s5276 = smul.u32 16, %s25
          %5278 = vsyncadd %s5269, 0
          %s5279 = smul.addr %s5276, 2
          %s5280 = smul.addr %s24, 32
          %s5281 = sadd.s32 %s5279, %s5280
          %s5282 = smul.addr %s5281, 8
          %s5283 = scalar_lea.hbm %s6, %s5282
          %s5284 = sshll.u32 %s5272, 4
          %s5285 = int_to_ptr.vmem [resolvable:$true] %s5284
          %s5286 = sshll.u32 %s5283, 4
          %s5287 = int_to_ptr.hbm [resolvable:$true] %s5286
          %5292 = dma.vmem_to_hbm [thread:$0]  %s5285, 4096, %s5287, %s5269, 128, 128, 8
        $region56: #{basic_block_forward.1} parent=43 // pred_fallthru
          _
      $region44: #{basic_block_forward.1} parent=5 // pred_fallthru
        _
      %p5293 = scmp.le.s32.totalorder 2, %s15
      // Predicated region
      $region57: #{basic_block_forward.1} parent=5 // pred_check
        %p5294 = pneg %p5293
      $region58: #{basic_block_forward.1} parent=5 // pred_check_branch
        %5296 = sbr.rel (%p5294) target = $region60
      $region59: #{basic_block_forward.1} parent=5 // pred_region
        %s5297 = ssub.s32 %s15, 2
        // Predicated region
        $region61: #{basic_block_forward.1} parent=59 // pred_check
          %p5298 = pneg %p196
        $region62: #{basic_block_forward.1} parent=59 // pred_check_branch
          %5300 = sbr.rel (%p5298) target = $region64
        $region63: #{basic_block_forward.1} parent=59 // pred_region
          %s5301 = sand.u32 %s181, 1
          %s5302 = scalar_lea.sflag [#allocation5], %s5301
          %s5303 = sand.u32 %s181, 1
          %s5304 = smul.addr %s5303, 256
          %s5305 = scalar_lea.vmem [#allocation4], %s5304
          %5307 = dma.done %s5302, 4096
        $region64: #{basic_block_forward.1} parent=59 // pred_fallthru
          _
      $region60: #{basic_block_forward.1} parent=5 // pred_fallthru
        _
    $region6: #{basic_block_forward.1} parent=1 // loop_footer
      %s19 = sadd.s32 1, %s15
    $region7: #{basic_block_forward.1} parent=1 // loop_footer_branch
      %14 = sbr.rel target = $region3
    $region8: #{basic_block_forward.1} parent=1 // loop_exit
      _
    %5308 = vsyncpa [#allocation5], 1
    %s5309 = scalar_lea.sflag [#allocation5], 1
    %5310 = vsyncpa %s5309, 1

</llo_original>
